<compile_context>
chip_gen: v6e
topology: v6e:2x2x1
jax: 0.10.0
libtpu: 0.0.40
codegen_flags: <defaults>
</compile_context>

<pallas_src>
import math

import numpy as np
import jax
import jax.numpy as jnp
from jax import lax
from jax.experimental import pallas as pl
from jax.experimental.pallas import tpu as pltpu

# ----- static configuration (small demo sizes, consistent with the module) ---
T_STEPS = 2
A_DIM = 8            # image width  (A)
B_DIM = 8            # image height (B)
N_ATT = 4            # attention grid size N
Z_SIZE = 8
ENC_SIZE = 32
DEC_SIZE = 32        # torch code applies mu_linear(dec->z) to h_enc, so == ENC
BATCH = 4

IMG = A_DIM * B_DIM                    # 64
NN = N_ATT * N_ATT                     # 16
_HALF_LOG_2PI = 0.5 * math.log(2.0 * math.pi)


# --------------------------------------------------------------------------
# the Pallas kernel: whole DRAW forward (all T timesteps) in one invocation
# --------------------------------------------------------------------------
def draw_kernel(
    # inputs
    x_ref, e_ref, lse_ref, lsd_ref,
    waw_ref, baw_ref, wfold_ref,
    whd_ref, whhE_ref, be_ref,
    wms_ref, bms_ref,
    wihd_ref, whhD_ref, bd_ref,
    gg_ref, rfy_ref, sp_ref, ru_ref, rw_ref, sj_ref, rv_ref,
    # outputs
    stats_ref, lenc_ref, ldec_ref, canvas_ref,
):
    E, D, Z, N = ENC_SIZE, DEC_SIZE, Z_SIZE, N_ATT
    f32 = jnp.float32

    # lane indices for the flattened filterbank layout: m = attn_idx*8 + coord
    lane_f = lax.broadcasted_iota(jnp.int32, (1, N * A_DIM), 1).astype(f32)
    grp = jnp.floor(lane_f * (1.0 / A_DIM))      # attention row index (i or j)
    pos = lane_f - grp * A_DIM                   # image coordinate   (p or q)

    def attn_params(h):
        # fused attention-window / write-patch linear (first 5 cols = window)
        out = jnp.dot(h, waw_ref[...], preferred_element_type=f32) + baw_ref[...]
        p = out[:, 0:5]
        gx = (A_DIM + 1.0) / 2.0 * (p[:, 0:1] + 1.0)
        gy = (B_DIM + 1.0) / 2.0 * (p[:, 1:2] + 1.0)
        sigma2 = jnp.exp(p[:, 2:3])
        delta = (max(A_DIM, B_DIM) - 1.0) / (N - 1.0) * jnp.exp(p[:, 3:4])
        gamma = jnp.exp(p[:, 4:5])
        return out, gx, gy, sigma2, delta, gamma

    def fb_flat(g, sigma2, delta):
        # flattened filterbank, layout m = attn_idx*8 + coord -> (BATCH, N*8)
        mu = (grp - (N / 2.0 + 0.5)) * delta + g
        t = (pos - mu) / (2.0 * sigma2)
        f = jnp.exp(-t * t)
        norm = jnp.dot(f, gg_ref[...], preferred_element_type=f32) + 1e-9
        return f / norm

    def mdl(h, log_s):
        # getHistoryStats (history=None) + getMDL(RN=True, COMP=0, s=s)
        numel = float(h.shape[0] * h.shape[1])
        total = jnp.sum(jnp.sum(h, axis=1, keepdims=True), axis=0, keepdims=True)
        mean = total / numel
        d = h - mean
        var = jnp.sum(jnp.sum(d * d, axis=1, keepdims=True), axis=0,
                      keepdims=True) / (numel - 1.0)          # unbiased (torch.std)
        std = jnp.sqrt(var)
        logp = -(d * d) * (0.5 / var) - (0.5 * jnp.log(var) + _HALF_LOG_2PI)
        lpm = jnp.max(jnp.max(logp, axis=1, keepdims=True), axis=0, keepdims=True)
        sum_exp = jnp.sum(jnp.sum(jnp.exp(logp - lpm), axis=1, keepdims=True),
                          axis=0, keepdims=True)
        sum_p = lpm + jnp.log(sum_exp)
        # incoming COMP == 0; reuse the shifted exponentials for both branches
        comp_a = jnp.log(1.0 + jnp.exp(lpm) * sum_exp)   # branch COMP_max > max(lp)
        comp_b = lpm + jnp.log(jnp.exp(-lpm) + sum_exp)  # else branch
        comp = jnp.where(lpm < 0.0, comp_a, comp_b)
        l_nml = comp - sum_p - log_s
        return (l_nml * h, l_nml, mean, std,
                jnp.full((1, 1), numel, f32), comp)

    def lstm(gates, c_prev, width):
        i = jax.nn.sigmoid(gates[:, 0:width])
        f = jax.nn.sigmoid(gates[:, width:2 * width])
        g = jnp.tanh(gates[:, 2 * width:3 * width])
        o = jax.nn.sigmoid(gates[:, 3 * width:4 * width])
        c = f * c_prev + i * g
        return o * jnp.tanh(c), c

    x2 = x_ref[...]                     # (BATCH, 64) flat image, p*A + q
    log_s_enc = lse_ref[...]
    log_s_dec = lsd_ref[...]

    def step(t, carry):
        h_enc, c_enc, h_dec, c_dec, canvas = carry

        # ------------------------------ read() -----------------------------
        _, gx, gy, sigma2, delta, gamma = attn_params(h_dec)
        fy = fb_flat(gy, sigma2, delta)              # (B, 32)  layout i*8 + p
        fx = fb_flat(gx, sigma2, delta)              # (B, 32)  layout j*8 + q
        x_hat = x2 - jax.nn.sigmoid(canvas)          # (B, 64)

        fy_exp = jnp.dot(fy, rfy_ref[...], preferred_element_type=f32)  # (B,256)
        fx_exp = jnp.concatenate([fx] * N, axis=1)                      # (B,128)

        def glimpse_fold(img):                       # img: (B, 64), p-major
            img_t = jnp.concatenate([img] * N, axis=1)                  # (B,256)
            u = jnp.dot(fy_exp * img_t, sp_ref[...],
                        preferred_element_type=f32)                     # (B,32)
            u_exp = jnp.dot(u, ru_ref[...], preferred_element_type=f32) # (B,128)
            return u_exp * fx_exp                    # (B,128) layout i*32+j*8+q

        read_pre = jnp.concatenate(
            [glimpse_fold(x2), glimpse_fold(x_hat)], axis=1)            # (B,256)
        read_gates = gamma * jnp.dot(read_pre, wfold_ref[...],
                                     preferred_element_type=f32)        # (B,4E)

        # -------------------------- encoder LSTM ---------------------------
        gates_e = (read_gates
                   + jnp.dot(h_dec, whd_ref[...], preferred_element_type=f32)
                   + jnp.dot(h_enc, whhE_ref[...], preferred_element_type=f32)
                   + be_ref[...])
        h_enc_raw, c_enc = lstm(gates_e, c_enc, E)
        h_enc, l_e, mean_e, std_e, numel_e, comp_e = mdl(h_enc_raw, log_s_enc)
        lenc_ref[t] = l_e

        # ------------------------------ sampleQ -----------------------------
        ms = jnp.dot(h_enc, wms_ref[...], preferred_element_type=f32) + bms_ref[...]
        z = ms[:, 0:Z] + jnp.exp(ms[:, Z:2 * Z]) * e_ref[t]

        # -------------------------- decoder LSTM ---------------------------
        gates_d = (jnp.dot(z, wihd_ref[...], preferred_element_type=f32)
                   + jnp.dot(h_dec, whhD_ref[...], preferred_element_type=f32)
                   + bd_ref[...])
        h_dec_raw, c_dec = lstm(gates_d, c_dec, D)
        h_dec, l_d, mean_d, std_d, numel_d, comp_d = mdl(h_dec_raw, log_s_dec)
        ldec_ref[t] = l_d

        stats_ref[t] = jnp.concatenate(
            [mean_e, std_e, numel_e, comp_e, mean_d, std_d, numel_d, comp_d],
            axis=1)

        # ------------------------------ write() -----------------------------
        aw, gxw, gyw, sigma2w, deltaw, gammaw = attn_params(h_dec)
        w_flat = aw[:, 5:5 + NN]                     # (B, 16)  layout i*4 + j
        fyw = fb_flat(gyw, sigma2w, deltaw)          # (B, 32)  layout i*8 + p
        fxw = fb_flat(gxw, sigma2w, deltaw)          # (B, 32)  layout j*8 + q

        w_rep = jnp.dot(w_flat, rw_ref[...], preferred_element_type=f32)   # (B,128)
        fxw_t = jnp.concatenate([fxw] * N, axis=1)                         # (B,128)
        v = jnp.dot(w_rep * fxw_t, sj_ref[...],
                    preferred_element_type=f32)                            # (B,32)
        v_exp = jnp.dot(v, rv_ref[...], preferred_element_type=f32)        # (B,256)
        fyw_exp = jnp.dot(fyw, rfy_ref[...], preferred_element_type=f32)   # (B,256)
        pw = fyw_exp * v_exp                         # (B,256) layout i*64+p*8+q
        wr = (pw[:, 0:IMG] + pw[:, IMG:2 * IMG]
              + pw[:, 2 * IMG:3 * IMG] + pw[:, 3 * IMG:4 * IMG])           # (B,64)
        canvas = canvas + wr / gammaw

        return (h_enc, c_enc, h_dec, c_dec, canvas)

    zeros_e = jnp.zeros((BATCH, E), f32)
    zeros_d = jnp.zeros((BATCH, D), f32)
    init = (zeros_e, zeros_e, zeros_d, zeros_d, jnp.zeros((BATCH, IMG), f32))
    carry = lax.fori_loop(0, T_STEPS, step, init, unroll=True)
    canvas_ref[...] = carry[4]


# --------------------------------------------------------------------------
# host-side glue: parameter setup (torch-equivalent init + layout transforms)
# --------------------------------------------------------------------------
def _structure_constants():
    N, A = N_ATT, A_DIM
    gg = np.kron(np.eye(N), np.ones((A, A)))                 # (32, 32) group sums
    rfy = np.zeros((N * A, N * A * A), np.float32)           # (32, 256)
    sp = np.zeros((N * A * A, N * A), np.float32)            # (256, 32)
    rv = np.zeros((N * A, N * A * A), np.float32)            # (32, 256)
    ru = np.zeros((N * A, N * N * A), np.float32)            # (32, 128)
    rw = np.zeros((N * N, N * N * A), np.float32)            # (16, 128)
    sj = np.zeros((N * N * A, N * A), np.float32)            # (128, 32)
    for i in range(N):
        for p in range(A):
            for q in range(A):
                rfy[i * A + p, i * A * A + p * A + q] = 1.0
                sp[i * A * A + p * A + q, i * A + q] = 1.0
                rv[i * A + q, i * A * A + p * A + q] = 1.0
        for j in range(N):
            for q in range(A):
                ru[i * A + q, i * N * A + j * A + q] = 1.0
                rw[i * N + j, i * N * A + j * A + q] = 1.0
                sj[i * N * A + j * A + q, i * A + q] = 1.0
    arrs = dict(gg=gg, rfy=rfy, sp=sp, ru=ru, rw=rw, sj=sj, rv=rv)
    return {k: jnp.asarray(v, jnp.float32) for k, v in arrs.items()}


def build_params(key):
    E, D, Z, N = ENC_SIZE, DEC_SIZE, Z_SIZE, N_ATT
    nn2 = N * N
    in_enc = 2 * nn2 + D
    keys = jax.random.split(key, 16)

    def uni(k, shape, fan):
        bound = 1.0 / (fan ** 0.5)
        return jax.random.uniform(k, shape, jnp.float32, -bound, bound)

    w_ih_enc = uni(keys[0], (4 * E, in_enc), E)
    w_hh_enc = uni(keys[1], (4 * E, E), E)
    b_ih_enc = uni(keys[2], (4 * E,), E)
    b_hh_enc = uni(keys[3], (4 * E,), E)
    w_mu = uni(keys[4], (Z, D), D)
    b_mu = uni(keys[5], (Z,), D)
    w_sig = uni(keys[6], (Z, D), D)
    b_sig = uni(keys[7], (Z,), D)
    w_ih_dec = uni(keys[8], (4 * D, Z), D)
    w_hh_dec = uni(keys[9], (4 * D, D), D)
    b_ih_dec = uni(keys[10], (4 * D,), D)
    b_hh_dec = uni(keys[11], (4 * D,), D)
    w_attn = uni(keys[12], (5, D), D)
    b_attn = uni(keys[13], (5,), D)
    w_write = uni(keys[14], (nn2, D), D)
    b_write = uni(keys[15], (nn2,), D)

    def pad_cols(a, width):
        return jnp.pad(a, ((0, 0), (0, width - a.shape[1])))

    wih_t = w_ih_enc.T                       # (64, 128): [glimpse_x|glimpse_xhat|h_dec]
    w1 = wih_t[:nn2]                         # (16, 128)
    w2 = wih_t[nn2:2 * nn2]                  # (16, 128)
    # expand each glimpse weight row over the 8 image coords it will be summed over
    w_fold = jnp.concatenate([jnp.repeat(w1, A_DIM, axis=0),
                              jnp.repeat(w2, A_DIM, axis=0)], axis=0)   # (256, 128)

    params = dict(
        w_fold=w_fold,
        whd_enc=wih_t[2 * nn2:],                                         # (32, 128)
        whh_enc=w_hh_enc.T,                                              # (32, 128)
        b_enc=(b_ih_enc + b_hh_enc).reshape(1, 4 * E),
        w_ms=pad_cols(jnp.concatenate([w_mu.T, w_sig.T], axis=1), 128),  # (32, 128)
        b_ms=pad_cols(jnp.concatenate([b_mu, b_sig]).reshape(1, -1), 128),
        wih_dec=w_ih_dec.T,                                              # (8, 128)
        whh_dec=w_hh_dec.T,                                              # (32, 128)
        b_dec=(b_ih_dec + b_hh_dec).reshape(1, 4 * D),
        w_aw=pad_cols(jnp.concatenate([w_attn.T, w_write.T], axis=1), 128),  # (32,128)
        b_aw=pad_cols(jnp.concatenate([b_attn, b_write]).reshape(1, -1), 128),
    )
    params.update(_structure_constants())
    return params


@jax.jit
def draw_forward(x, e, s_enc, s_dec, params):
    x2 = x.reshape(BATCH, IMG)
    log_s_enc = jnp.log(s_enc)
    log_s_dec = jnp.log(s_dec)
    p = params
    inputs = (x2, e, log_s_enc, log_s_dec,
              p['w_aw'], p['b_aw'], p['w_fold'],
              p['whd_enc'], p['whh_enc'], p['b_enc'],
              p['w_ms'], p['b_ms'],
              p['wih_dec'], p['whh_dec'], p['b_dec'],
              p['gg'], p['rfy'], p['sp'], p['ru'], p['rw'], p['sj'], p['rv'])

    vmem = pl.BlockSpec(memory_space=pltpu.MemorySpace.VMEM)
    out_shape = (
        jax.ShapeDtypeStruct((T_STEPS, 1, 8), jnp.float32),        # mean/std/numel/COMP (enc, dec)
        jax.ShapeDtypeStruct((T_STEPS, BATCH, ENC_SIZE), jnp.float32),  # l_nml for h_enc
        jax.ShapeDtypeStruct((T_STEPS, BATCH, DEC_SIZE), jnp.float32),  # l_nml for h_dec
        jax.ShapeDtypeStruct((BATCH, IMG), jnp.float32),                # final canvas cs[T-1]
    )
    stats, l_enc, l_dec, canvas = pl.pallas_call(
        draw_kernel,
        out_shape=out_shape,
        in_specs=[vmem] * len(inputs),
        out_specs=[vmem] * len(out_shape),
    )(*inputs)
    return stats, l_enc, l_dec, canvas.reshape(BATCH, B_DIM, A_DIM)


if __name__ == "__main__":
    key = jax.random.PRNGKey(0)
    k_param, k_x, k_e = jax.random.split(key, 3)
    params = build_params(k_param)

    x = jax.random.uniform(k_x, (BATCH, B_DIM, A_DIM), jnp.float32)      # image in [0,1)
    e = jax.random.normal(k_e, (T_STEPS, BATCH, Z_SIZE), jnp.float32)    # pre-sampled N(0,1)
    s_enc = jnp.ones((BATCH, ENC_SIZE), jnp.float32)                     # y is None -> ones
    s_dec = jnp.ones((BATCH, DEC_SIZE), jnp.float32)

    stats, l_enc, l_dec, canvas = draw_forward(x, e, s_enc, s_dec, params)
    jax.block_until_ready((stats, l_enc, l_dec, canvas))

    # mirror the torch return structure (x_history_new, COMP_new, l_new)
    x_history_new, comp_new, l_new = [], [], []
    for t in range(T_STEPS):
        x_history_new.append([stats[t, 0, 0], stats[t, 0, 1], stats[t, 0, 2]])
        comp_new.append(stats[t, 0, 3])
        l_new.append(l_enc[t])
        x_history_new.append([stats[t, 0, 4], stats[t, 0, 5], stats[t, 0, 6]])
        comp_new.append(stats[t, 0, 7])
        l_new.append(l_dec[t])

    print("KERNEL_OK")
</pallas_src>

<mosaic_0001>
module attributes {stable_mosaic.version = 11 : i64} {
  func.func @draw_kernel(%arg0: memref<4x64xf32, #tpu.memory_space<vmem>>, %arg1: memref<2x4x8xf32, #tpu.memory_space<vmem>>, %arg2: memref<4x32xf32, #tpu.memory_space<vmem>>, %arg3: memref<4x32xf32, #tpu.memory_space<vmem>>, %arg4: memref<32x128xf32, #tpu.memory_space<vmem>>, %arg5: memref<1x128xf32, #tpu.memory_space<vmem>>, %arg6: memref<256x128xf32, #tpu.memory_space<vmem>>, %arg7: memref<32x128xf32, #tpu.memory_space<vmem>>, %arg8: memref<32x128xf32, #tpu.memory_space<vmem>>, %arg9: memref<1x128xf32, #tpu.memory_space<vmem>>, %arg10: memref<32x128xf32, #tpu.memory_space<vmem>>, %arg11: memref<1x128xf32, #tpu.memory_space<vmem>>, %arg12: memref<8x128xf32, #tpu.memory_space<vmem>>, %arg13: memref<32x128xf32, #tpu.memory_space<vmem>>, %arg14: memref<1x128xf32, #tpu.memory_space<vmem>>, %arg15: memref<32x32xf32, #tpu.memory_space<vmem>>, %arg16: memref<32x256xf32, #tpu.memory_space<vmem>>, %arg17: memref<256x32xf32, #tpu.memory_space<vmem>>, %arg18: memref<32x128xf32, #tpu.memory_space<vmem>>, %arg19: memref<16x128xf32, #tpu.memory_space<vmem>>, %arg20: memref<128x32xf32, #tpu.memory_space<vmem>>, %arg21: memref<32x256xf32, #tpu.memory_space<vmem>>, %arg22: memref<2x1x8xf32, #tpu.memory_space<vmem>>, %arg23: memref<2x4x32xf32, #tpu.memory_space<vmem>>, %arg24: memref<2x4x32xf32, #tpu.memory_space<vmem>>, %arg25: memref<4x64xf32, #tpu.memory_space<vmem>>) attributes {dimension_semantics = [], scalar_prefetch = 0 : i64, scratch_operands = 0 : i64, tpu.core_type = #tpu.core_type<tc>} {
    %0 = tpu.iota {dimensions = array<i32: 1>} : vector<1x32xi32>
    %1 = arith.sitofp %0 : vector<1x32xi32> to vector<1x32xf32>
    %cst = arith.constant 1.250000e-01 : f32
    %2 = vector.broadcast %cst : f32 to vector<1x32xf32>
    %3 = arith.mulf %1, %2 : vector<1x32xf32>
    %4 = math.floor %3 : vector<1x32xf32>
    %cst_0 = arith.constant 8.000000e+00 : f32
    %5 = vector.broadcast %cst_0 : f32 to vector<1x32xf32>
    %6 = arith.mulf %4, %5 : vector<1x32xf32>
    %7 = arith.subf %1, %6 : vector<1x32xf32>
    %c0 = arith.constant 0 : index
    %c0_1 = arith.constant 0 : index
    %8 = vector.load %arg0[%c0, %c0_1] : memref<4x64xf32, #tpu.memory_space<vmem>>, vector<4x64xf32>
    %c0_2 = arith.constant 0 : index
    %c0_3 = arith.constant 0 : index
    %9 = vector.load %arg2[%c0_2, %c0_3] : memref<4x32xf32, #tpu.memory_space<vmem>>, vector<4x32xf32>
    %c0_4 = arith.constant 0 : index
    %c0_5 = arith.constant 0 : index
    %10 = vector.load %arg3[%c0_4, %c0_5] : memref<4x32xf32, #tpu.memory_space<vmem>>, vector<4x32xf32>
    %cst_6 = arith.constant 0.000000e+00 : f32
    %11 = vector.broadcast %cst_6 : f32 to vector<4x32xf32>
    %cst_7 = arith.constant 0.000000e+00 : f32
    %12 = vector.broadcast %cst_7 : f32 to vector<4x32xf32>
    %cst_8 = arith.constant 0.000000e+00 : f32
    %13 = vector.broadcast %cst_8 : f32 to vector<4x64xf32>
    %c0_i32 = arith.constant 0 : i32
    %c0_9 = arith.constant 0 : index
    %c0_10 = arith.constant 0 : index
    %14 = vector.load %arg4[%c0_9, %c0_10] : memref<32x128xf32, #tpu.memory_space<vmem>>, vector<32x128xf32>
    %cst_11 = arith.constant dense<0.000000e+00> : vector<4x128xf32>
    %15 = tpu.matmul %12, %14, %cst_11 {dimension_numbers = #tpu.dot_dimension_numbers<[1], [0], [0], [1], [0, 0, 1, 1], [], []>} : vector<4x32xf32>, vector<32x128xf32>, vector<4x128xf32> -> vector<4x128xf32>
    %c0_12 = arith.constant 0 : index
    %c0_13 = arith.constant 0 : index
    %16 = vector.load %arg5[%c0_12, %c0_13] : memref<1x128xf32, #tpu.memory_space<vmem>>, vector<1x128xf32>
    %17 = vector.broadcast %16 : vector<1x128xf32> to vector<4x128xf32>
    %18 = arith.addf %15, %17 : vector<4x128xf32>
    %19 = vector.extract_strided_slice %18 {offsets = [0, 0], sizes = [4, 5], strides = [1, 1]} : vector<4x128xf32> to vector<4x5xf32>
    %20 = vector.extract_strided_slice %19 {offsets = [0, 0], sizes = [4, 1], strides = [1, 1]} : vector<4x5xf32> to vector<4x1xf32>
    %cst_14 = arith.constant 1.000000e+00 : f32
    %21 = vector.broadcast %cst_14 : f32 to vector<4x1xf32>
    %22 = arith.addf %20, %21 : vector<4x1xf32>
    %cst_15 = arith.constant 4.500000e+00 : f32
    %23 = vector.broadcast %cst_15 : f32 to vector<4x1xf32>
    %24 = arith.mulf %23, %22 : vector<4x1xf32>
    %25 = vector.extract_strided_slice %19 {offsets = [0, 1], sizes = [4, 1], strides = [1, 1]} : vector<4x5xf32> to vector<4x1xf32>
    %cst_16 = arith.constant 1.000000e+00 : f32
    %26 = vector.broadcast %cst_16 : f32 to vector<4x1xf32>
    %27 = arith.addf %25, %26 : vector<4x1xf32>
    %cst_17 = arith.constant 4.500000e+00 : f32
    %28 = vector.broadcast %cst_17 : f32 to vector<4x1xf32>
    %29 = arith.mulf %28, %27 : vector<4x1xf32>
    %30 = vector.extract_strided_slice %19 {offsets = [0, 2], sizes = [4, 1], strides = [1, 1]} : vector<4x5xf32> to vector<4x1xf32>
    %31 = math.exp %30 : vector<4x1xf32>
    %32 = vector.extract_strided_slice %19 {offsets = [0, 3], sizes = [4, 1], strides = [1, 1]} : vector<4x5xf32> to vector<4x1xf32>
    %33 = math.exp %32 : vector<4x1xf32>
    %cst_18 = arith.constant 2.33333325 : f32
    %34 = vector.broadcast %cst_18 : f32 to vector<4x1xf32>
    %35 = arith.mulf %34, %33 : vector<4x1xf32>
    %36 = vector.extract_strided_slice %19 {offsets = [0, 4], sizes = [4, 1], strides = [1, 1]} : vector<4x5xf32> to vector<4x1xf32>
    %37 = math.exp %36 : vector<4x1xf32>
    %cst_19 = arith.constant 2.500000e+00 : f32
    %38 = vector.broadcast %cst_19 : f32 to vector<1x32xf32>
    %39 = arith.subf %4, %38 : vector<1x32xf32>
    %40 = vector.broadcast %39 : vector<1x32xf32> to vector<4x32xf32>
    %41 = vector.broadcast %35 : vector<4x1xf32> to vector<4x32xf32>
    %42 = arith.mulf %40, %41 : vector<4x32xf32>
    %43 = vector.broadcast %29 : vector<4x1xf32> to vector<4x32xf32>
    %44 = arith.addf %42, %43 : vector<4x32xf32>
    %45 = vector.broadcast %7 : vector<1x32xf32> to vector<4x32xf32>
    %46 = arith.subf %45, %44 : vector<4x32xf32>
    %cst_20 = arith.constant 2.000000e+00 : f32
    %47 = vector.broadcast %cst_20 : f32 to vector<4x1xf32>
    %48 = arith.mulf %47, %31 : vector<4x1xf32>
    %49 = vector.broadcast %48 : vector<4x1xf32> to vector<4x32xf32>
    %50 = arith.divf %46, %49 : vector<4x32xf32>
    %cst_21 = arith.constant 0.000000e+00 : f32
    %51 = vector.broadcast %cst_21 : f32 to vector<4x32xf32>
    %52 = arith.subf %51, %50 : vector<4x32xf32>
    %53 = arith.mulf %52, %50 : vector<4x32xf32>
    %54 = math.exp %53 : vector<4x32xf32>
    %c0_22 = arith.constant 0 : index
    %c0_23 = arith.constant 0 : index
    %55 = vector.load %arg15[%c0_22, %c0_23] : memref<32x32xf32, #tpu.memory_space<vmem>>, vector<32x32xf32>
    %cst_24 = arith.constant dense<0.000000e+00> : vector<4x32xf32>
    %56 = tpu.matmul %54, %55, %cst_24 {dimension_numbers = #tpu.dot_dimension_numbers<[1], [0], [0], [1], [0, 0, 1, 1], [], []>} : vector<4x32xf32>, vector<32x32xf32>, vector<4x32xf32> -> vector<4x32xf32>
    %cst_25 = arith.constant 9.99999971E-10 : f32
    %57 = vector.broadcast %cst_25 : f32 to vector<4x32xf32>
    %58 = arith.addf %56, %57 : vector<4x32xf32>
    %59 = arith.divf %54, %58 : vector<4x32xf32>
    %cst_26 = arith.constant 2.500000e+00 : f32
    %60 = vector.broadcast %cst_26 : f32 to vector<1x32xf32>
    %61 = arith.subf %4, %60 : vector<1x32xf32>
    %62 = vector.broadcast %61 : vector<1x32xf32> to vector<4x32xf32>
    %63 = vector.broadcast %35 : vector<4x1xf32> to vector<4x32xf32>
    %64 = arith.mulf %62, %63 : vector<4x32xf32>
    %65 = vector.broadcast %24 : vector<4x1xf32> to vector<4x32xf32>
    %66 = arith.addf %64, %65 : vector<4x32xf32>
    %67 = vector.broadcast %7 : vector<1x32xf32> to vector<4x32xf32>
    %68 = arith.subf %67, %66 : vector<4x32xf32>
    %cst_27 = arith.constant 2.000000e+00 : f32
    %69 = vector.broadcast %cst_27 : f32 to vector<4x1xf32>
    %70 = arith.mulf %69, %31 : vector<4x1xf32>
    %71 = vector.broadcast %70 : vector<4x1xf32> to vector<4x32xf32>
    %72 = arith.divf %68, %71 : vector<4x32xf32>
    %cst_28 = arith.constant 0.000000e+00 : f32
    %73 = vector.broadcast %cst_28 : f32 to vector<4x32xf32>
    %74 = arith.subf %73, %72 : vector<4x32xf32>
    %75 = arith.mulf %74, %72 : vector<4x32xf32>
    %76 = math.exp %75 : vector<4x32xf32>
    %c0_29 = arith.constant 0 : index
    %c0_30 = arith.constant 0 : index
    %77 = vector.load %arg15[%c0_29, %c0_30] : memref<32x32xf32, #tpu.memory_space<vmem>>, vector<32x32xf32>
    %cst_31 = arith.constant dense<0.000000e+00> : vector<4x32xf32>
    %78 = tpu.matmul %76, %77, %cst_31 {dimension_numbers = #tpu.dot_dimension_numbers<[1], [0], [0], [1], [0, 0, 1, 1], [], []>} : vector<4x32xf32>, vector<32x32xf32>, vector<4x32xf32> -> vector<4x32xf32>
    %cst_32 = arith.constant 9.99999971E-10 : f32
    %79 = vector.broadcast %cst_32 : f32 to vector<4x32xf32>
    %80 = arith.addf %78, %79 : vector<4x32xf32>
    %81 = arith.divf %76, %80 : vector<4x32xf32>
    %82 = arith.negf %13 : vector<4x64xf32>
    %83 = math.exp %82 : vector<4x64xf32>
    %cst_33 = arith.constant 1.000000e+00 : f32
    %84 = vector.broadcast %cst_33 : f32 to vector<4x64xf32>
    %85 = arith.addf %84, %83 : vector<4x64xf32>
    %86 = arith.divf %84, %85 : vector<4x64xf32>
    %87 = arith.subf %8, %86 : vector<4x64xf32>
    %c0_34 = arith.constant 0 : index
    %c0_35 = arith.constant 0 : index
    %88 = vector.load %arg16[%c0_34, %c0_35] : memref<32x256xf32, #tpu.memory_space<vmem>>, vector<32x256xf32>
    %cst_36 = arith.constant dense<0.000000e+00> : vector<4x256xf32>
    %89 = tpu.matmul %59, %88, %cst_36 {dimension_numbers = #tpu.dot_dimension_numbers<[1], [0], [0], [1], [0, 0, 1, 1], [], []>} : vector<4x32xf32>, vector<32x256xf32>, vector<4x256xf32> -> vector<4x256xf32>
    %90 = tpu.concatenate %81, %81, %81, %81 in 1 : vector<4x32xf32>, vector<4x32xf32>, vector<4x32xf32>, vector<4x32xf32> -> vector<4x128xf32>
    %91 = tpu.concatenate %8, %8, %8, %8 in 1 : vector<4x64xf32>, vector<4x64xf32>, vector<4x64xf32>, vector<4x64xf32> -> vector<4x256xf32>
    %92 = arith.mulf %89, %91 : vector<4x256xf32>
    %c0_37 = arith.constant 0 : index
    %c0_38 = arith.constant 0 : index
    %93 = vector.load %arg17[%c0_37, %c0_38] : memref<256x32xf32, #tpu.memory_space<vmem>>, vector<256x32xf32>
    %cst_39 = arith.constant dense<0.000000e+00> : vector<4x32xf32>
    %94 = tpu.matmul %92, %93, %cst_39 {dimension_numbers = #tpu.dot_dimension_numbers<[1], [0], [0], [1], [0, 0, 1, 1], [], []>} : vector<4x256xf32>, vector<256x32xf32>, vector<4x32xf32> -> vector<4x32xf32>
    %c0_40 = arith.constant 0 : index
    %c0_41 = arith.constant 0 : index
    %95 = vector.load %arg18[%c0_40, %c0_41] : memref<32x128xf32, #tpu.memory_space<vmem>>, vector<32x128xf32>
    %cst_42 = arith.constant dense<0.000000e+00> : vector<4x128xf32>
    %96 = tpu.matmul %94, %95, %cst_42 {dimension_numbers = #tpu.dot_dimension_numbers<[1], [0], [0], [1], [0, 0, 1, 1], [], []>} : vector<4x32xf32>, vector<32x128xf32>, vector<4x128xf32> -> vector<4x128xf32>
    %97 = arith.mulf %96, %90 : vector<4x128xf32>
    %98 = tpu.concatenate %87, %87, %87, %87 in 1 : vector<4x64xf32>, vector<4x64xf32>, vector<4x64xf32>, vector<4x64xf32> -> vector<4x256xf32>
    %99 = arith.mulf %89, %98 : vector<4x256xf32>
    %c0_43 = arith.constant 0 : index
    %c0_44 = arith.constant 0 : index
    %100 = vector.load %arg17[%c0_43, %c0_44] : memref<256x32xf32, #tpu.memory_space<vmem>>, vector<256x32xf32>
    %cst_45 = arith.constant dense<0.000000e+00> : vector<4x32xf32>
    %101 = tpu.matmul %99, %100, %cst_45 {dimension_numbers = #tpu.dot_dimension_numbers<[1], [0], [0], [1], [0, 0, 1, 1], [], []>} : vector<4x256xf32>, vector<256x32xf32>, vector<4x32xf32> -> vector<4x32xf32>
    %c0_46 = arith.constant 0 : index
    %c0_47 = arith.constant 0 : index
    %102 = vector.load %arg18[%c0_46, %c0_47] : memref<32x128xf32, #tpu.memory_space<vmem>>, vector<32x128xf32>
    %cst_48 = arith.constant dense<0.000000e+00> : vector<4x128xf32>
    %103 = tpu.matmul %101, %102, %cst_48 {dimension_numbers = #tpu.dot_dimension_numbers<[1], [0], [0], [1], [0, 0, 1, 1], [], []>} : vector<4x32xf32>, vector<32x128xf32>, vector<4x128xf32> -> vector<4x128xf32>
    %104 = arith.mulf %103, %90 : vector<4x128xf32>
    %105 = tpu.concatenate %97, %104 in 1 : vector<4x128xf32>, vector<4x128xf32> -> vector<4x256xf32>
    %c0_49 = arith.constant 0 : index
    %c0_50 = arith.constant 0 : index
    %106 = vector.load %arg6[%c0_49, %c0_50] : memref<256x128xf32, #tpu.memory_space<vmem>>, vector<256x128xf32>
    %cst_51 = arith.constant dense<0.000000e+00> : vector<4x128xf32>
    %107 = tpu.matmul %105, %106, %cst_51 {dimension_numbers = #tpu.dot_dimension_numbers<[1], [0], [0], [1], [0, 0, 1, 1], [], []>} : vector<4x256xf32>, vector<256x128xf32>, vector<4x128xf32> -> vector<4x128xf32>
    %108 = vector.broadcast %37 : vector<4x1xf32> to vector<4x128xf32>
    %109 = arith.mulf %108, %107 : vector<4x128xf32>
    %c0_52 = arith.constant 0 : index
    %c0_53 = arith.constant 0 : index
    %110 = vector.load %arg7[%c0_52, %c0_53] : memref<32x128xf32, #tpu.memory_space<vmem>>, vector<32x128xf32>
    %cst_54 = arith.constant dense<0.000000e+00> : vector<4x128xf32>
    %111 = tpu.matmul %12, %110, %cst_54 {dimension_numbers = #tpu.dot_dimension_numbers<[1], [0], [0], [1], [0, 0, 1, 1], [], []>} : vector<4x32xf32>, vector<32x128xf32>, vector<4x128xf32> -> vector<4x128xf32>
    %112 = arith.addf %109, %111 : vector<4x128xf32>
    %c0_55 = arith.constant 0 : index
    %c0_56 = arith.constant 0 : index
    %113 = vector.load %arg8[%c0_55, %c0_56] : memref<32x128xf32, #tpu.memory_space<vmem>>, vector<32x128xf32>
    %cst_57 = arith.constant dense<0.000000e+00> : vector<4x128xf32>
    %114 = tpu.matmul %11, %113, %cst_57 {dimension_numbers = #tpu.dot_dimension_numbers<[1], [0], [0], [1], [0, 0, 1, 1], [], []>} : vector<4x32xf32>, vector<32x128xf32>, vector<4x128xf32> -> vector<4x128xf32>
    %115 = arith.addf %112, %114 : vector<4x128xf32>
    %c0_58 = arith.constant 0 : index
    %c0_59 = arith.constant 0 : index
    %116 = vector.load %arg9[%c0_58, %c0_59] : memref<1x128xf32, #tpu.memory_space<vmem>>, vector<1x128xf32>
    %117 = vector.broadcast %116 : vector<1x128xf32> to vector<4x128xf32>
    %118 = arith.addf %115, %117 : vector<4x128xf32>
    %119 = vector.extract_strided_slice %118 {offsets = [0, 0], sizes = [4, 32], strides = [1, 1]} : vector<4x128xf32> to vector<4x32xf32>
    %120 = arith.negf %119 : vector<4x32xf32>
    %121 = math.exp %120 : vector<4x32xf32>
    %cst_60 = arith.constant 1.000000e+00 : f32
    %122 = vector.broadcast %cst_60 : f32 to vector<4x32xf32>
    %123 = arith.addf %122, %121 : vector<4x32xf32>
    %124 = arith.divf %122, %123 : vector<4x32xf32>
    %125 = vector.extract_strided_slice %118 {offsets = [0, 32], sizes = [4, 32], strides = [1, 1]} : vector<4x128xf32> to vector<4x32xf32>
    %126 = arith.negf %125 : vector<4x32xf32>
    %127 = math.exp %126 : vector<4x32xf32>
    %cst_61 = arith.constant 1.000000e+00 : f32
    %128 = vector.broadcast %cst_61 : f32 to vector<4x32xf32>
    %129 = arith.addf %128, %127 : vector<4x32xf32>
    %130 = arith.divf %128, %129 : vector<4x32xf32>
    %131 = vector.extract_strided_slice %118 {offsets = [0, 64], sizes = [4, 32], strides = [1, 1]} : vector<4x128xf32> to vector<4x32xf32>
    %132 = math.tanh %131 : vector<4x32xf32>
    %133 = vector.extract_strided_slice %118 {offsets = [0, 96], sizes = [4, 32], strides = [1, 1]} : vector<4x128xf32> to vector<4x32xf32>
    %134 = arith.negf %133 : vector<4x32xf32>
    %135 = math.exp %134 : vector<4x32xf32>
    %cst_62 = arith.constant 1.000000e+00 : f32
    %136 = vector.broadcast %cst_62 : f32 to vector<4x32xf32>
    %137 = arith.addf %136, %135 : vector<4x32xf32>
    %138 = arith.divf %136, %137 : vector<4x32xf32>
    %139 = arith.mulf %130, %11 : vector<4x32xf32>
    %140 = arith.mulf %124, %132 : vector<4x32xf32>
    %141 = arith.addf %139, %140 : vector<4x32xf32>
    %142 = math.tanh %141 : vector<4x32xf32>
    %143 = arith.mulf %138, %142 : vector<4x32xf32>
    %cst_63 = arith.constant dense<0.000000e+00> : vector<4xf32>
    %144 = vector.multi_reduction <add>, %143, %cst_63 [1] : vector<4x32xf32> to vector<4xf32>
    %145 = vector.shape_cast %144 : vector<4xf32> to vector<4x1xf32>
    %cst_64 = arith.constant dense<0.000000e+00> : vector<1xf32>
    %146 = vector.multi_reduction <add>, %145, %cst_64 [0] : vector<4x1xf32> to vector<1xf32>
    %147 = vector.shape_cast %146 : vector<1xf32> to vector<1x1xf32>
    %cst_65 = arith.constant 1.280000e+02 : f32
    %148 = vector.broadcast %cst_65 : f32 to vector<1x1xf32>
    %149 = arith.divf %147, %148 : vector<1x1xf32>
    %150 = vector.broadcast %149 : vector<1x1xf32> to vector<4x32xf32>
    %151 = arith.subf %143, %150 : vector<4x32xf32>
    %152 = arith.mulf %151, %151 : vector<4x32xf32>
    %cst_66 = arith.constant dense<0.000000e+00> : vector<4xf32>
    %153 = vector.multi_reduction <add>, %152, %cst_66 [1] : vector<4x32xf32> to vector<4xf32>
    %154 = vector.shape_cast %153 : vector<4xf32> to vector<4x1xf32>
    %cst_67 = arith.constant dense<0.000000e+00> : vector<1xf32>
    %155 = vector.multi_reduction <add>, %154, %cst_67 [0] : vector<4x1xf32> to vector<1xf32>
    %156 = vector.shape_cast %155 : vector<1xf32> to vector<1x1xf32>
    %cst_68 = arith.constant 1.270000e+02 : f32
    %157 = vector.broadcast %cst_68 : f32 to vector<1x1xf32>
    %158 = arith.divf %156, %157 : vector<1x1xf32>
    %159 = math.sqrt %158 : vector<1x1xf32>
    %160 = arith.mulf %151, %151 : vector<4x32xf32>
    %cst_69 = arith.constant 0.000000e+00 : f32
    %161 = vector.broadcast %cst_69 : f32 to vector<4x32xf32>
    %162 = arith.subf %161, %160 : vector<4x32xf32>
    %cst_70 = arith.constant 5.000000e-01 : f32
    %163 = vector.broadcast %cst_70 : f32 to vector<1x1xf32>
    %164 = arith.divf %163, %158 : vector<1x1xf32>
    %165 = vector.broadcast %164 : vector<1x1xf32> to vector<4x32xf32>
    %166 = arith.mulf %162, %165 : vector<4x32xf32>
    %167 = math.log %158 : vector<1x1xf32>
    %cst_71 = arith.constant 5.000000e-01 : f32
    %168 = vector.broadcast %cst_71 : f32 to vector<1x1xf32>
    %169 = arith.mulf %168, %167 : vector<1x1xf32>
    %cst_72 = arith.constant 0.918938517 : f32
    %170 = vector.broadcast %cst_72 : f32 to vector<1x1xf32>
    %171 = arith.addf %169, %170 : vector<1x1xf32>
    %172 = vector.broadcast %171 : vector<1x1xf32> to vector<4x32xf32>
    %173 = arith.subf %166, %172 : vector<4x32xf32>
    %cst_73 = arith.constant dense<0xFF800000> : vector<4xf32>
    %174 = vector.multi_reduction <maximumf>, %173, %cst_73 [1] : vector<4x32xf32> to vector<4xf32>
    %175 = vector.shape_cast %174 : vector<4xf32> to vector<4x1xf32>
    %cst_74 = arith.constant dense<0xFF800000> : vector<1xf32>
    %176 = vector.multi_reduction <maximumf>, %175, %cst_74 [0] : vector<4x1xf32> to vector<1xf32>
    %177 = vector.shape_cast %176 : vector<1xf32> to vector<1x1xf32>
    %178 = vector.broadcast %177 : vector<1x1xf32> to vector<4x32xf32>
    %179 = arith.subf %173, %178 : vector<4x32xf32>
    %180 = math.exp %179 : vector<4x32xf32>
    %cst_75 = arith.constant dense<0.000000e+00> : vector<4xf32>
    %181 = vector.multi_reduction <add>, %180, %cst_75 [1] : vector<4x32xf32> to vector<4xf32>
    %182 = vector.shape_cast %181 : vector<4xf32> to vector<4x1xf32>
    %cst_76 = arith.constant dense<0.000000e+00> : vector<1xf32>
    %183 = vector.multi_reduction <add>, %182, %cst_76 [0] : vector<4x1xf32> to vector<1xf32>
    %184 = vector.shape_cast %183 : vector<1xf32> to vector<1x1xf32>
    %185 = math.log %184 : vector<1x1xf32>
    %186 = arith.addf %177, %185 : vector<1x1xf32>
    %187 = math.exp %177 : vector<1x1xf32>
    %188 = arith.mulf %187, %184 : vector<1x1xf32>
    %cst_77 = arith.constant 1.000000e+00 : f32
    %189 = vector.broadcast %cst_77 : f32 to vector<1x1xf32>
    %190 = arith.addf %189, %188 : vector<1x1xf32>
    %191 = math.log %190 : vector<1x1xf32>
    %cst_78 = arith.constant 0.000000e+00 : f32
    %192 = vector.broadcast %cst_78 : f32 to vector<1x1xf32>
    %193 = arith.subf %192, %177 : vector<1x1xf32>
    %194 = math.exp %193 : vector<1x1xf32>
    %195 = arith.addf %194, %184 : vector<1x1xf32>
    %196 = math.log %195 : vector<1x1xf32>
    %197 = arith.addf %177, %196 : vector<1x1xf32>
    %cst_79 = arith.constant 0.000000e+00 : f32
    %198 = vector.broadcast %cst_79 : f32 to vector<1x1xf32>
    %199 = arith.cmpf olt, %177, %198 : vector<1x1xf32>
    %200 = arith.select %199, %191, %197 : vector<1x1xi1>, vector<1x1xf32>
    %201 = arith.subf %200, %186 : vector<1x1xf32>
    %202 = vector.broadcast %201 : vector<1x1xf32> to vector<4x32xf32>
    %203 = arith.subf %202, %9 : vector<4x32xf32>
    %204 = arith.mulf %203, %143 : vector<4x32xf32>
    %cst_80 = arith.constant 1.280000e+02 : f32
    %205 = vector.broadcast %cst_80 : f32 to vector<1x1xf32>
    %206 = arith.index_cast %c0_i32 : i32 to index
    %c0_81 = arith.constant 0 : index
    %c0_82 = arith.constant 0 : index
    %207 = vector.load %arg23[%206, %c0_81, %c0_82] : memref<2x4x32xf32, #tpu.memory_space<vmem>>, vector<1x4x32xf32>
    %208 = vector.shape_cast %207 : vector<1x4x32xf32> to vector<4x32xf32>
    %209 = vector.shape_cast %203 : vector<4x32xf32> to vector<1x4x32xf32>
    tpu.vector_store %arg23[%206, %c0_81, %c0_82], %209 {strides = array<i32>} : memref<2x4x32xf32, #tpu.memory_space<vmem>>, vector<1x4x32xf32>,
    %c0_83 = arith.constant 0 : index
    %c0_84 = arith.constant 0 : index
    %210 = vector.load %arg10[%c0_83, %c0_84] : memref<32x128xf32, #tpu.memory_space<vmem>>, vector<32x128xf32>
    %cst_85 = arith.constant dense<0.000000e+00> : vector<4x128xf32>
    %211 = tpu.matmul %204, %210, %cst_85 {dimension_numbers = #tpu.dot_dimension_numbers<[1], [0], [0], [1], [0, 0, 1, 1], [], []>} : vector<4x32xf32>, vector<32x128xf32>, vector<4x128xf32> -> vector<4x128xf32>
    %c0_86 = arith.constant 0 : index
    %c0_87 = arith.constant 0 : index
    %212 = vector.load %arg11[%c0_86, %c0_87] : memref<1x128xf32, #tpu.memory_space<vmem>>, vector<1x128xf32>
    %213 = vector.broadcast %212 : vector<1x128xf32> to vector<4x128xf32>
    %214 = arith.addf %211, %213 : vector<4x128xf32>
    %215 = vector.extract_strided_slice %214 {offsets = [0, 0], sizes = [4, 8], strides = [1, 1]} : vector<4x128xf32> to vector<4x8xf32>
    %216 = vector.extract_strided_slice %214 {offsets = [0, 8], sizes = [4, 8], strides = [1, 1]} : vector<4x128xf32> to vector<4x8xf32>
    %217 = math.exp %216 : vector<4x8xf32>
    %218 = arith.index_cast %c0_i32 : i32 to index
    %c0_88 = arith.constant 0 : index
    %c0_89 = arith.constant 0 : index
    %219 = vector.load %arg1[%218, %c0_88, %c0_89] : memref<2x4x8xf32, #tpu.memory_space<vmem>>, vector<1x4x8xf32>
    %220 = vector.shape_cast %219 : vector<1x4x8xf32> to vector<4x8xf32>
    %221 = arith.mulf %217, %220 : vector<4x8xf32>
    %222 = arith.addf %215, %221 : vector<4x8xf32>
    %c0_90 = arith.constant 0 : index
    %c0_91 = arith.constant 0 : index
    %223 = vector.load %arg12[%c0_90, %c0_91] : memref<8x128xf32, #tpu.memory_space<vmem>>, vector<8x128xf32>
    %cst_92 = arith.constant dense<0.000000e+00> : vector<4x128xf32>
    %224 = tpu.matmul %222, %223, %cst_92 {dimension_numbers = #tpu.dot_dimension_numbers<[1], [0], [0], [1], [0, 0, 1, 1], [], []>} : vector<4x8xf32>, vector<8x128xf32>, vector<4x128xf32> -> vector<4x128xf32>
    %c0_93 = arith.constant 0 : index
    %c0_94 = arith.constant 0 : index
    %225 = vector.load %arg13[%c0_93, %c0_94] : memref<32x128xf32, #tpu.memory_space<vmem>>, vector<32x128xf32>
    %cst_95 = arith.constant dense<0.000000e+00> : vector<4x128xf32>
    %226 = tpu.matmul %12, %225, %cst_95 {dimension_numbers = #tpu.dot_dimension_numbers<[1], [0], [0], [1], [0, 0, 1, 1], [], []>} : vector<4x32xf32>, vector<32x128xf32>, vector<4x128xf32> -> vector<4x128xf32>
    %227 = arith.addf %224, %226 : vector<4x128xf32>
    %c0_96 = arith.constant 0 : index
    %c0_97 = arith.constant 0 : index
    %228 = vector.load %arg14[%c0_96, %c0_97] : memref<1x128xf32, #tpu.memory_space<vmem>>, vector<1x128xf32>
    %229 = vector.broadcast %228 : vector<1x128xf32> to vector<4x128xf32>
    %230 = arith.addf %227, %229 : vector<4x128xf32>
    %231 = vector.extract_strided_slice %230 {offsets = [0, 0], sizes = [4, 32], strides = [1, 1]} : vector<4x128xf32> to vector<4x32xf32>
    %232 = arith.negf %231 : vector<4x32xf32>
    %233 = math.exp %232 : vector<4x32xf32>
    %cst_98 = arith.constant 1.000000e+00 : f32
    %234 = vector.broadcast %cst_98 : f32 to vector<4x32xf32>
    %235 = arith.addf %234, %233 : vector<4x32xf32>
    %236 = arith.divf %234, %235 : vector<4x32xf32>
    %237 = vector.extract_strided_slice %230 {offsets = [0, 32], sizes = [4, 32], strides = [1, 1]} : vector<4x128xf32> to vector<4x32xf32>
    %238 = arith.negf %237 : vector<4x32xf32>
    %239 = math.exp %238 : vector<4x32xf32>
    %cst_99 = arith.constant 1.000000e+00 : f32
    %240 = vector.broadcast %cst_99 : f32 to vector<4x32xf32>
    %241 = arith.addf %240, %239 : vector<4x32xf32>
    %242 = arith.divf %240, %241 : vector<4x32xf32>
    %243 = vector.extract_strided_slice %230 {offsets = [0, 64], sizes = [4, 32], strides = [1, 1]} : vector<4x128xf32> to vector<4x32xf32>
    %244 = math.tanh %243 : vector<4x32xf32>
    %245 = vector.extract_strided_slice %230 {offsets = [0, 96], sizes = [4, 32], strides = [1, 1]} : vector<4x128xf32> to vector<4x32xf32>
    %246 = arith.negf %245 : vector<4x32xf32>
    %247 = math.exp %246 : vector<4x32xf32>
    %cst_100 = arith.constant 1.000000e+00 : f32
    %248 = vector.broadcast %cst_100 : f32 to vector<4x32xf32>
    %249 = arith.addf %248, %247 : vector<4x32xf32>
    %250 = arith.divf %248, %249 : vector<4x32xf32>
    %251 = arith.mulf %242, %12 : vector<4x32xf32>
    %252 = arith.mulf %236, %244 : vector<4x32xf32>
    %253 = arith.addf %251, %252 : vector<4x32xf32>
    %254 = math.tanh %253 : vector<4x32xf32>
    %255 = arith.mulf %250, %254 : vector<4x32xf32>
    %cst_101 = arith.constant dense<0.000000e+00> : vector<4xf32>
    %256 = vector.multi_reduction <add>, %255, %cst_101 [1] : vector<4x32xf32> to vector<4xf32>
    %257 = vector.shape_cast %256 : vector<4xf32> to vector<4x1xf32>
    %cst_102 = arith.constant dense<0.000000e+00> : vector<1xf32>
    %258 = vector.multi_reduction <add>, %257, %cst_102 [0] : vector<4x1xf32> to vector<1xf32>
    %259 = vector.shape_cast %258 : vector<1xf32> to vector<1x1xf32>
    %cst_103 = arith.constant 1.280000e+02 : f32
    %260 = vector.broadcast %cst_103 : f32 to vector<1x1xf32>
    %261 = arith.divf %259, %260 : vector<1x1xf32>
    %262 = vector.broadcast %261 : vector<1x1xf32> to vector<4x32xf32>
    %263 = arith.subf %255, %262 : vector<4x32xf32>
    %264 = arith.mulf %263, %263 : vector<4x32xf32>
    %cst_104 = arith.constant dense<0.000000e+00> : vector<4xf32>
    %265 = vector.multi_reduction <add>, %264, %cst_104 [1] : vector<4x32xf32> to vector<4xf32>
    %266 = vector.shape_cast %265 : vector<4xf32> to vector<4x1xf32>
    %cst_105 = arith.constant dense<0.000000e+00> : vector<1xf32>
    %267 = vector.multi_reduction <add>, %266, %cst_105 [0] : vector<4x1xf32> to vector<1xf32>
    %268 = vector.shape_cast %267 : vector<1xf32> to vector<1x1xf32>
    %cst_106 = arith.constant 1.270000e+02 : f32
    %269 = vector.broadcast %cst_106 : f32 to vector<1x1xf32>
    %270 = arith.divf %268, %269 : vector<1x1xf32>
    %271 = math.sqrt %270 : vector<1x1xf32>
    %272 = arith.mulf %263, %263 : vector<4x32xf32>
    %cst_107 = arith.constant 0.000000e+00 : f32
    %273 = vector.broadcast %cst_107 : f32 to vector<4x32xf32>
    %274 = arith.subf %273, %272 : vector<4x32xf32>
    %cst_108 = arith.constant 5.000000e-01 : f32
    %275 = vector.broadcast %cst_108 : f32 to vector<1x1xf32>
    %276 = arith.divf %275, %270 : vector<1x1xf32>
    %277 = vector.broadcast %276 : vector<1x1xf32> to vector<4x32xf32>
    %278 = arith.mulf %274, %277 : vector<4x32xf32>
    %279 = math.log %270 : vector<1x1xf32>
    %cst_109 = arith.constant 5.000000e-01 : f32
    %280 = vector.broadcast %cst_109 : f32 to vector<1x1xf32>
    %281 = arith.mulf %280, %279 : vector<1x1xf32>
    %cst_110 = arith.constant 0.918938517 : f32
    %282 = vector.broadcast %cst_110 : f32 to vector<1x1xf32>
    %283 = arith.addf %281, %282 : vector<1x1xf32>
    %284 = vector.broadcast %283 : vector<1x1xf32> to vector<4x32xf32>
    %285 = arith.subf %278, %284 : vector<4x32xf32>
    %cst_111 = arith.constant dense<0xFF800000> : vector<4xf32>
    %286 = vector.multi_reduction <maximumf>, %285, %cst_111 [1] : vector<4x32xf32> to vector<4xf32>
    %287 = vector.shape_cast %286 : vector<4xf32> to vector<4x1xf32>
    %cst_112 = arith.constant dense<0xFF800000> : vector<1xf32>
    %288 = vector.multi_reduction <maximumf>, %287, %cst_112 [0] : vector<4x1xf32> to vector<1xf32>
    %289 = vector.shape_cast %288 : vector<1xf32> to vector<1x1xf32>
    %290 = vector.broadcast %289 : vector<1x1xf32> to vector<4x32xf32>
    %291 = arith.subf %285, %290 : vector<4x32xf32>
    %292 = math.exp %291 : vector<4x32xf32>
    %cst_113 = arith.constant dense<0.000000e+00> : vector<4xf32>
    %293 = vector.multi_reduction <add>, %292, %cst_113 [1] : vector<4x32xf32> to vector<4xf32>
    %294 = vector.shape_cast %293 : vector<4xf32> to vector<4x1xf32>
    %cst_114 = arith.constant dense<0.000000e+00> : vector<1xf32>
    %295 = vector.multi_reduction <add>, %294, %cst_114 [0] : vector<4x1xf32> to vector<1xf32>
    %296 = vector.shape_cast %295 : vector<1xf32> to vector<1x1xf32>
    %297 = math.log %296 : vector<1x1xf32>
    %298 = arith.addf %289, %297 : vector<1x1xf32>
    %299 = math.exp %289 : vector<1x1xf32>
    %300 = arith.mulf %299, %296 : vector<1x1xf32>
    %cst_115 = arith.constant 1.000000e+00 : f32
    %301 = vector.broadcast %cst_115 : f32 to vector<1x1xf32>
    %302 = arith.addf %301, %300 : vector<1x1xf32>
    %303 = math.log %302 : vector<1x1xf32>
    %cst_116 = arith.constant 0.000000e+00 : f32
    %304 = vector.broadcast %cst_116 : f32 to vector<1x1xf32>
    %305 = arith.subf %304, %289 : vector<1x1xf32>
    %306 = math.exp %305 : vector<1x1xf32>
    %307 = arith.addf %306, %296 : vector<1x1xf32>
    %308 = math.log %307 : vector<1x1xf32>
    %309 = arith.addf %289, %308 : vector<1x1xf32>
    %cst_117 = arith.constant 0.000000e+00 : f32
    %310 = vector.broadcast %cst_117 : f32 to vector<1x1xf32>
    %311 = arith.cmpf olt, %289, %310 : vector<1x1xf32>
    %312 = arith.select %311, %303, %309 : vector<1x1xi1>, vector<1x1xf32>
    %313 = arith.subf %312, %298 : vector<1x1xf32>
    %314 = vector.broadcast %313 : vector<1x1xf32> to vector<4x32xf32>
    %315 = arith.subf %314, %10 : vector<4x32xf32>
    %316 = arith.mulf %315, %255 : vector<4x32xf32>
    %cst_118 = arith.constant 1.280000e+02 : f32
    %317 = vector.broadcast %cst_118 : f32 to vector<1x1xf32>
    %318 = arith.index_cast %c0_i32 : i32 to index
    %c0_119 = arith.constant 0 : index
    %c0_120 = arith.constant 0 : index
    %319 = vector.load %arg24[%318, %c0_119, %c0_120] : memref<2x4x32xf32, #tpu.memory_space<vmem>>, vector<1x4x32xf32>
    %320 = vector.shape_cast %319 : vector<1x4x32xf32> to vector<4x32xf32>
    %321 = vector.shape_cast %315 : vector<4x32xf32> to vector<1x4x32xf32>
    tpu.vector_store %arg24[%318, %c0_119, %c0_120], %321 {strides = array<i32>} : memref<2x4x32xf32, #tpu.memory_space<vmem>>, vector<1x4x32xf32>,
    %322 = tpu.concatenate %149, %159, %205, %200, %261, %271, %317, %312 in 1 : vector<1x1xf32>, vector<1x1xf32>, vector<1x1xf32>, vector<1x1xf32>, vector<1x1xf32>, vector<1x1xf32>, vector<1x1xf32>, vector<1x1xf32> -> vector<1x8xf32>
    %323 = arith.index_cast %c0_i32 : i32 to index
    %c0_121 = arith.constant 0 : index
    %c0_122 = arith.constant 0 : index
    %324 = vector.load %arg22[%323, %c0_121, %c0_122] : memref<2x1x8xf32, #tpu.memory_space<vmem>>, vector<1x1x8xf32>
    %325 = vector.shape_cast %324 : vector<1x1x8xf32> to vector<1x8xf32>
    %326 = vector.shape_cast %322 : vector<1x8xf32> to vector<1x1x8xf32>
    tpu.vector_store %arg22[%323, %c0_121, %c0_122], %326 {strides = array<i32>} : memref<2x1x8xf32, #tpu.memory_space<vmem>>, vector<1x1x8xf32>,
    %c0_123 = arith.constant 0 : index
    %c0_124 = arith.constant 0 : index
    %327 = vector.load %arg4[%c0_123, %c0_124] : memref<32x128xf32, #tpu.memory_space<vmem>>, vector<32x128xf32>
    %cst_125 = arith.constant dense<0.000000e+00> : vector<4x128xf32>
    %328 = tpu.matmul %316, %327, %cst_125 {dimension_numbers = #tpu.dot_dimension_numbers<[1], [0], [0], [1], [0, 0, 1, 1], [], []>} : vector<4x32xf32>, vector<32x128xf32>, vector<4x128xf32> -> vector<4x128xf32>
    %c0_126 = arith.constant 0 : index
    %c0_127 = arith.constant 0 : index
    %329 = vector.load %arg5[%c0_126, %c0_127] : memref<1x128xf32, #tpu.memory_space<vmem>>, vector<1x128xf32>
    %330 = vector.broadcast %329 : vector<1x128xf32> to vector<4x128xf32>
    %331 = arith.addf %328, %330 : vector<4x128xf32>
    %332 = vector.extract_strided_slice %331 {offsets = [0, 0], sizes = [4, 5], strides = [1, 1]} : vector<4x128xf32> to vector<4x5xf32>
    %333 = vector.extract_strided_slice %332 {offsets = [0, 0], sizes = [4, 1], strides = [1, 1]} : vector<4x5xf32> to vector<4x1xf32>
    %cst_128 = arith.constant 1.000000e+00 : f32
    %334 = vector.broadcast %cst_128 : f32 to vector<4x1xf32>
    %335 = arith.addf %333, %334 : vector<4x1xf32>
    %cst_129 = arith.constant 4.500000e+00 : f32
    %336 = vector.broadcast %cst_129 : f32 to vector<4x1xf32>
    %337 = arith.mulf %336, %335 : vector<4x1xf32>
    %338 = vector.extract_strided_slice %332 {offsets = [0, 1], sizes = [4, 1], strides = [1, 1]} : vector<4x5xf32> to vector<4x1xf32>
    %cst_130 = arith.constant 1.000000e+00 : f32
    %339 = vector.broadcast %cst_130 : f32 to vector<4x1xf32>
    %340 = arith.addf %338, %339 : vector<4x1xf32>
    %cst_131 = arith.constant 4.500000e+00 : f32
    %341 = vector.broadcast %cst_131 : f32 to vector<4x1xf32>
    %342 = arith.mulf %341, %340 : vector<4x1xf32>
    %343 = vector.extract_strided_slice %332 {offsets = [0, 2], sizes = [4, 1], strides = [1, 1]} : vector<4x5xf32> to vector<4x1xf32>
    %344 = math.exp %343 : vector<4x1xf32>
    %345 = vector.extract_strided_slice %332 {offsets = [0, 3], sizes = [4, 1], strides = [1, 1]} : vector<4x5xf32> to vector<4x1xf32>
    %346 = math.exp %345 : vector<4x1xf32>
    %cst_132 = arith.constant 2.33333325 : f32
    %347 = vector.broadcast %cst_132 : f32 to vector<4x1xf32>
    %348 = arith.mulf %347, %346 : vector<4x1xf32>
    %349 = vector.extract_strided_slice %332 {offsets = [0, 4], sizes = [4, 1], strides = [1, 1]} : vector<4x5xf32> to vector<4x1xf32>
    %350 = math.exp %349 : vector<4x1xf32>
    %351 = vector.extract_strided_slice %331 {offsets = [0, 5], sizes = [4, 16], strides = [1, 1]} : vector<4x128xf32> to vector<4x16xf32>
    %cst_133 = arith.constant 2.500000e+00 : f32
    %352 = vector.broadcast %cst_133 : f32 to vector<1x32xf32>
    %353 = arith.subf %4, %352 : vector<1x32xf32>
    %354 = vector.broadcast %353 : vector<1x32xf32> to vector<4x32xf32>
    %355 = vector.broadcast %348 : vector<4x1xf32> to vector<4x32xf32>
    %356 = arith.mulf %354, %355 : vector<4x32xf32>
    %357 = vector.broadcast %342 : vector<4x1xf32> to vector<4x32xf32>
    %358 = arith.addf %356, %357 : vector<4x32xf32>
    %359 = vector.broadcast %7 : vector<1x32xf32> to vector<4x32xf32>
    %360 = arith.subf %359, %358 : vector<4x32xf32>
    %cst_134 = arith.constant 2.000000e+00 : f32
    %361 = vector.broadcast %cst_134 : f32 to vector<4x1xf32>
    %362 = arith.mulf %361, %344 : vector<4x1xf32>
    %363 = vector.broadcast %362 : vector<4x1xf32> to vector<4x32xf32>
    %364 = arith.divf %360, %363 : vector<4x32xf32>
    %cst_135 = arith.constant 0.000000e+00 : f32
    %365 = vector.broadcast %cst_135 : f32 to vector<4x32xf32>
    %366 = arith.subf %365, %364 : vector<4x32xf32>
    %367 = arith.mulf %366, %364 : vector<4x32xf32>
    %368 = math.exp %367 : vector<4x32xf32>
    %c0_136 = arith.constant 0 : index
    %c0_137 = arith.constant 0 : index
    %369 = vector.load %arg15[%c0_136, %c0_137] : memref<32x32xf32, #tpu.memory_space<vmem>>, vector<32x32xf32>
    %cst_138 = arith.constant dense<0.000000e+00> : vector<4x32xf32>
    %370 = tpu.matmul %368, %369, %cst_138 {dimension_numbers = #tpu.dot_dimension_numbers<[1], [0], [0], [1], [0, 0, 1, 1], [], []>} : vector<4x32xf32>, vector<32x32xf32>, vector<4x32xf32> -> vector<4x32xf32>
    %cst_139 = arith.constant 9.99999971E-10 : f32
    %371 = vector.broadcast %cst_139 : f32 to vector<4x32xf32>
    %372 = arith.addf %370, %371 : vector<4x32xf32>
    %373 = arith.divf %368, %372 : vector<4x32xf32>
    %cst_140 = arith.constant 2.500000e+00 : f32
    %374 = vector.broadcast %cst_140 : f32 to vector<1x32xf32>
    %375 = arith.subf %4, %374 : vector<1x32xf32>
    %376 = vector.broadcast %375 : vector<1x32xf32> to vector<4x32xf32>
    %377 = vector.broadcast %348 : vector<4x1xf32> to vector<4x32xf32>
    %378 = arith.mulf %376, %377 : vector<4x32xf32>
    %379 = vector.broadcast %337 : vector<4x1xf32> to vector<4x32xf32>
    %380 = arith.addf %378, %379 : vector<4x32xf32>
    %381 = vector.broadcast %7 : vector<1x32xf32> to vector<4x32xf32>
    %382 = arith.subf %381, %380 : vector<4x32xf32>
    %cst_141 = arith.constant 2.000000e+00 : f32
    %383 = vector.broadcast %cst_141 : f32 to vector<4x1xf32>
    %384 = arith.mulf %383, %344 : vector<4x1xf32>
    %385 = vector.broadcast %384 : vector<4x1xf32> to vector<4x32xf32>
    %386 = arith.divf %382, %385 : vector<4x32xf32>
    %cst_142 = arith.constant 0.000000e+00 : f32
    %387 = vector.broadcast %cst_142 : f32 to vector<4x32xf32>
    %388 = arith.subf %387, %386 : vector<4x32xf32>
    %389 = arith.mulf %388, %386 : vector<4x32xf32>
    %390 = math.exp %389 : vector<4x32xf32>
    %c0_143 = arith.constant 0 : index
    %c0_144 = arith.constant 0 : index
    %391 = vector.load %arg15[%c0_143, %c0_144] : memref<32x32xf32, #tpu.memory_space<vmem>>, vector<32x32xf32>
    %cst_145 = arith.constant dense<0.000000e+00> : vector<4x32xf32>
    %392 = tpu.matmul %390, %391, %cst_145 {dimension_numbers = #tpu.dot_dimension_numbers<[1], [0], [0], [1], [0, 0, 1, 1], [], []>} : vector<4x32xf32>, vector<32x32xf32>, vector<4x32xf32> -> vector<4x32xf32>
    %cst_146 = arith.constant 9.99999971E-10 : f32
    %393 = vector.broadcast %cst_146 : f32 to vector<4x32xf32>
    %394 = arith.addf %392, %393 : vector<4x32xf32>
    %395 = arith.divf %390, %394 : vector<4x32xf32>
    %c0_147 = arith.constant 0 : index
    %c0_148 = arith.constant 0 : index
    %396 = vector.load %arg19[%c0_147, %c0_148] : memref<16x128xf32, #tpu.memory_space<vmem>>, vector<16x128xf32>
    %cst_149 = arith.constant dense<0.000000e+00> : vector<4x128xf32>
    %397 = tpu.matmul %351, %396, %cst_149 {dimension_numbers = #tpu.dot_dimension_numbers<[1], [0], [0], [1], [0, 0, 1, 1], [], []>} : vector<4x16xf32>, vector<16x128xf32>, vector<4x128xf32> -> vector<4x128xf32>
    %398 = tpu.concatenate %395, %395, %395, %395 in 1 : vector<4x32xf32>, vector<4x32xf32>, vector<4x32xf32>, vector<4x32xf32> -> vector<4x128xf32>
    %399 = arith.mulf %397, %398 : vector<4x128xf32>
    %c0_150 = arith.constant 0 : index
    %c0_151 = arith.constant 0 : index
    %400 = vector.load %arg20[%c0_150, %c0_151] : memref<128x32xf32, #tpu.memory_space<vmem>>, vector<128x32xf32>
    %cst_152 = arith.constant dense<0.000000e+00> : vector<4x32xf32>
    %401 = tpu.matmul %399, %400, %cst_152 {dimension_numbers = #tpu.dot_dimension_numbers<[1], [0], [0], [1], [0, 0, 1, 1], [], []>} : vector<4x128xf32>, vector<128x32xf32>, vector<4x32xf32> -> vector<4x32xf32>
    %c0_153 = arith.constant 0 : index
    %c0_154 = arith.constant 0 : index
    %402 = vector.load %arg21[%c0_153, %c0_154] : memref<32x256xf32, #tpu.memory_space<vmem>>, vector<32x256xf32>
    %cst_155 = arith.constant dense<0.000000e+00> : vector<4x256xf32>
    %403 = tpu.matmul %401, %402, %cst_155 {dimension_numbers = #tpu.dot_dimension_numbers<[1], [0], [0], [1], [0, 0, 1, 1], [], []>} : vector<4x32xf32>, vector<32x256xf32>, vector<4x256xf32> -> vector<4x256xf32>
    %c0_156 = arith.constant 0 : index
    %c0_157 = arith.constant 0 : index
    %404 = vector.load %arg16[%c0_156, %c0_157] : memref<32x256xf32, #tpu.memory_space<vmem>>, vector<32x256xf32>
    %cst_158 = arith.constant dense<0.000000e+00> : vector<4x256xf32>
    %405 = tpu.matmul %373, %404, %cst_158 {dimension_numbers = #tpu.dot_dimension_numbers<[1], [0], [0], [1], [0, 0, 1, 1], [], []>} : vector<4x32xf32>, vector<32x256xf32>, vector<4x256xf32> -> vector<4x256xf32>
    %406 = arith.mulf %405, %403 : vector<4x256xf32>
    %407 = vector.extract_strided_slice %406 {offsets = [0, 0], sizes = [4, 64], strides = [1, 1]} : vector<4x256xf32> to vector<4x64xf32>
    %408 = vector.extract_strided_slice %406 {offsets = [0, 64], sizes = [4, 64], strides = [1, 1]} : vector<4x256xf32> to vector<4x64xf32>
    %409 = arith.addf %407, %408 : vector<4x64xf32>
    %410 = vector.extract_strided_slice %406 {offsets = [0, 128], sizes = [4, 64], strides = [1, 1]} : vector<4x256xf32> to vector<4x64xf32>
    %411 = arith.addf %409, %410 : vector<4x64xf32>
    %412 = vector.extract_strided_slice %406 {offsets = [0, 192], sizes = [4, 64], strides = [1, 1]} : vector<4x256xf32> to vector<4x64xf32>
    %413 = arith.addf %411, %412 : vector<4x64xf32>
    %414 = vector.broadcast %350 : vector<4x1xf32> to vector<4x64xf32>
    %415 = arith.divf %413, %414 : vector<4x64xf32>
    %416 = arith.addf %13, %415 : vector<4x64xf32>
    %c1_i32 = arith.constant 1 : i32
    %c0_159 = arith.constant 0 : index
    %c0_160 = arith.constant 0 : index
    %417 = vector.load %arg4[%c0_159, %c0_160] : memref<32x128xf32, #tpu.memory_space<vmem>>, vector<32x128xf32>
    %cst_161 = arith.constant dense<0.000000e+00> : vector<4x128xf32>
    %418 = tpu.matmul %316, %417, %cst_161 {dimension_numbers = #tpu.dot_dimension_numbers<[1], [0], [0], [1], [0, 0, 1, 1], [], []>} : vector<4x32xf32>, vector<32x128xf32>, vector<4x128xf32> -> vector<4x128xf32>
    %c0_162 = arith.constant 0 : index
    %c0_163 = arith.constant 0 : index
    %419 = vector.load %arg5[%c0_162, %c0_163] : memref<1x128xf32, #tpu.memory_space<vmem>>, vector<1x128xf32>
    %420 = vector.broadcast %419 : vector<1x128xf32> to vector<4x128xf32>
    %421 = arith.addf %418, %420 : vector<4x128xf32>
    %422 = vector.extract_strided_slice %421 {offsets = [0, 0], sizes = [4, 5], strides = [1, 1]} : vector<4x128xf32> to vector<4x5xf32>
    %423 = vector.extract_strided_slice %422 {offsets = [0, 0], sizes = [4, 1], strides = [1, 1]} : vector<4x5xf32> to vector<4x1xf32>
    %cst_164 = arith.constant 1.000000e+00 : f32
    %424 = vector.broadcast %cst_164 : f32 to vector<4x1xf32>
    %425 = arith.addf %423, %424 : vector<4x1xf32>
    %cst_165 = arith.constant 4.500000e+00 : f32
    %426 = vector.broadcast %cst_165 : f32 to vector<4x1xf32>
    %427 = arith.mulf %426, %425 : vector<4x1xf32>
    %428 = vector.extract_strided_slice %422 {offsets = [0, 1], sizes = [4, 1], strides = [1, 1]} : vector<4x5xf32> to vector<4x1xf32>
    %cst_166 = arith.constant 1.000000e+00 : f32
    %429 = vector.broadcast %cst_166 : f32 to vector<4x1xf32>
    %430 = arith.addf %428, %429 : vector<4x1xf32>
    %cst_167 = arith.constant 4.500000e+00 : f32
    %431 = vector.broadcast %cst_167 : f32 to vector<4x1xf32>
    %432 = arith.mulf %431, %430 : vector<4x1xf32>
    %433 = vector.extract_strided_slice %422 {offsets = [0, 2], sizes = [4, 1], strides = [1, 1]} : vector<4x5xf32> to vector<4x1xf32>
    %434 = math.exp %433 : vector<4x1xf32>
    %435 = vector.extract_strided_slice %422 {offsets = [0, 3], sizes = [4, 1], strides = [1, 1]} : vector<4x5xf32> to vector<4x1xf32>
    %436 = math.exp %435 : vector<4x1xf32>
    %cst_168 = arith.constant 2.33333325 : f32
    %437 = vector.broadcast %cst_168 : f32 to vector<4x1xf32>
    %438 = arith.mulf %437, %436 : vector<4x1xf32>
    %439 = vector.extract_strided_slice %422 {offsets = [0, 4], sizes = [4, 1], strides = [1, 1]} : vector<4x5xf32> to vector<4x1xf32>
    %440 = math.exp %439 : vector<4x1xf32>
    %cst_169 = arith.constant 2.500000e+00 : f32
    %441 = vector.broadcast %cst_169 : f32 to vector<1x32xf32>
    %442 = arith.subf %4, %441 : vector<1x32xf32>
    %443 = vector.broadcast %442 : vector<1x32xf32> to vector<4x32xf32>
    %444 = vector.broadcast %438 : vector<4x1xf32> to vector<4x32xf32>
    %445 = arith.mulf %443, %444 : vector<4x32xf32>
    %446 = vector.broadcast %432 : vector<4x1xf32> to vector<4x32xf32>
    %447 = arith.addf %445, %446 : vector<4x32xf32>
    %448 = vector.broadcast %7 : vector<1x32xf32> to vector<4x32xf32>
    %449 = arith.subf %448, %447 : vector<4x32xf32>
    %cst_170 = arith.constant 2.000000e+00 : f32
    %450 = vector.broadcast %cst_170 : f32 to vector<4x1xf32>
    %451 = arith.mulf %450, %434 : vector<4x1xf32>
    %452 = vector.broadcast %451 : vector<4x1xf32> to vector<4x32xf32>
    %453 = arith.divf %449, %452 : vector<4x32xf32>
    %cst_171 = arith.constant 0.000000e+00 : f32
    %454 = vector.broadcast %cst_171 : f32 to vector<4x32xf32>
    %455 = arith.subf %454, %453 : vector<4x32xf32>
    %456 = arith.mulf %455, %453 : vector<4x32xf32>
    %457 = math.exp %456 : vector<4x32xf32>
    %c0_172 = arith.constant 0 : index
    %c0_173 = arith.constant 0 : index
    %458 = vector.load %arg15[%c0_172, %c0_173] : memref<32x32xf32, #tpu.memory_space<vmem>>, vector<32x32xf32>
    %cst_174 = arith.constant dense<0.000000e+00> : vector<4x32xf32>
    %459 = tpu.matmul %457, %458, %cst_174 {dimension_numbers = #tpu.dot_dimension_numbers<[1], [0], [0], [1], [0, 0, 1, 1], [], []>} : vector<4x32xf32>, vector<32x32xf32>, vector<4x32xf32> -> vector<4x32xf32>
    %cst_175 = arith.constant 9.99999971E-10 : f32
    %460 = vector.broadcast %cst_175 : f32 to vector<4x32xf32>
    %461 = arith.addf %459, %460 : vector<4x32xf32>
    %462 = arith.divf %457, %461 : vector<4x32xf32>
    %cst_176 = arith.constant 2.500000e+00 : f32
    %463 = vector.broadcast %cst_176 : f32 to vector<1x32xf32>
    %464 = arith.subf %4, %463 : vector<1x32xf32>
    %465 = vector.broadcast %464 : vector<1x32xf32> to vector<4x32xf32>
    %466 = vector.broadcast %438 : vector<4x1xf32> to vector<4x32xf32>
    %467 = arith.mulf %465, %466 : vector<4x32xf32>
    %468 = vector.broadcast %427 : vector<4x1xf32> to vector<4x32xf32>
    %469 = arith.addf %467, %468 : vector<4x32xf32>
    %470 = vector.broadcast %7 : vector<1x32xf32> to vector<4x32xf32>
    %471 = arith.subf %470, %469 : vector<4x32xf32>
    %cst_177 = arith.constant 2.000000e+00 : f32
    %472 = vector.broadcast %cst_177 : f32 to vector<4x1xf32>
    %473 = arith.mulf %472, %434 : vector<4x1xf32>
    %474 = vector.broadcast %473 : vector<4x1xf32> to vector<4x32xf32>
    %475 = arith.divf %471, %474 : vector<4x32xf32>
    %cst_178 = arith.constant 0.000000e+00 : f32
    %476 = vector.broadcast %cst_178 : f32 to vector<4x32xf32>
    %477 = arith.subf %476, %475 : vector<4x32xf32>
    %478 = arith.mulf %477, %475 : vector<4x32xf32>
    %479 = math.exp %478 : vector<4x32xf32>
    %c0_179 = arith.constant 0 : index
    %c0_180 = arith.constant 0 : index
    %480 = vector.load %arg15[%c0_179, %c0_180] : memref<32x32xf32, #tpu.memory_space<vmem>>, vector<32x32xf32>
    %cst_181 = arith.constant dense<0.000000e+00> : vector<4x32xf32>
    %481 = tpu.matmul %479, %480, %cst_181 {dimension_numbers = #tpu.dot_dimension_numbers<[1], [0], [0], [1], [0, 0, 1, 1], [], []>} : vector<4x32xf32>, vector<32x32xf32>, vector<4x32xf32> -> vector<4x32xf32>
    %cst_182 = arith.constant 9.99999971E-10 : f32
    %482 = vector.broadcast %cst_182 : f32 to vector<4x32xf32>
    %483 = arith.addf %481, %482 : vector<4x32xf32>
    %484 = arith.divf %479, %483 : vector<4x32xf32>
    %485 = arith.negf %416 : vector<4x64xf32>
    %486 = math.exp %485 : vector<4x64xf32>
    %cst_183 = arith.constant 1.000000e+00 : f32
    %487 = vector.broadcast %cst_183 : f32 to vector<4x64xf32>
    %488 = arith.addf %487, %486 : vector<4x64xf32>
    %489 = arith.divf %487, %488 : vector<4x64xf32>
    %490 = arith.subf %8, %489 : vector<4x64xf32>
    %c0_184 = arith.constant 0 : index
    %c0_185 = arith.constant 0 : index
    %491 = vector.load %arg16[%c0_184, %c0_185] : memref<32x256xf32, #tpu.memory_space<vmem>>, vector<32x256xf32>
    %cst_186 = arith.constant dense<0.000000e+00> : vector<4x256xf32>
    %492 = tpu.matmul %462, %491, %cst_186 {dimension_numbers = #tpu.dot_dimension_numbers<[1], [0], [0], [1], [0, 0, 1, 1], [], []>} : vector<4x32xf32>, vector<32x256xf32>, vector<4x256xf32> -> vector<4x256xf32>
    %493 = tpu.concatenate %484, %484, %484, %484 in 1 : vector<4x32xf32>, vector<4x32xf32>, vector<4x32xf32>, vector<4x32xf32> -> vector<4x128xf32>
    %494 = tpu.concatenate %8, %8, %8, %8 in 1 : vector<4x64xf32>, vector<4x64xf32>, vector<4x64xf32>, vector<4x64xf32> -> vector<4x256xf32>
    %495 = arith.mulf %492, %494 : vector<4x256xf32>
    %c0_187 = arith.constant 0 : index
    %c0_188 = arith.constant 0 : index
    %496 = vector.load %arg17[%c0_187, %c0_188] : memref<256x32xf32, #tpu.memory_space<vmem>>, vector<256x32xf32>
    %cst_189 = arith.constant dense<0.000000e+00> : vector<4x32xf32>
    %497 = tpu.matmul %495, %496, %cst_189 {dimension_numbers = #tpu.dot_dimension_numbers<[1], [0], [0], [1], [0, 0, 1, 1], [], []>} : vector<4x256xf32>, vector<256x32xf32>, vector<4x32xf32> -> vector<4x32xf32>
    %c0_190 = arith.constant 0 : index
    %c0_191 = arith.constant 0 : index
    %498 = vector.load %arg18[%c0_190, %c0_191] : memref<32x128xf32, #tpu.memory_space<vmem>>, vector<32x128xf32>
    %cst_192 = arith.constant dense<0.000000e+00> : vector<4x128xf32>
    %499 = tpu.matmul %497, %498, %cst_192 {dimension_numbers = #tpu.dot_dimension_numbers<[1], [0], [0], [1], [0, 0, 1, 1], [], []>} : vector<4x32xf32>, vector<32x128xf32>, vector<4x128xf32> -> vector<4x128xf32>
    %500 = arith.mulf %499, %493 : vector<4x128xf32>
    %501 = tpu.concatenate %490, %490, %490, %490 in 1 : vector<4x64xf32>, vector<4x64xf32>, vector<4x64xf32>, vector<4x64xf32> -> vector<4x256xf32>
    %502 = arith.mulf %492, %501 : vector<4x256xf32>
    %c0_193 = arith.constant 0 : index
    %c0_194 = arith.constant 0 : index
    %503 = vector.load %arg17[%c0_193, %c0_194] : memref<256x32xf32, #tpu.memory_space<vmem>>, vector<256x32xf32>
    %cst_195 = arith.constant dense<0.000000e+00> : vector<4x32xf32>
    %504 = tpu.matmul %502, %503, %cst_195 {dimension_numbers = #tpu.dot_dimension_numbers<[1], [0], [0], [1], [0, 0, 1, 1], [], []>} : vector<4x256xf32>, vector<256x32xf32>, vector<4x32xf32> -> vector<4x32xf32>
    %c0_196 = arith.constant 0 : index
    %c0_197 = arith.constant 0 : index
    %505 = vector.load %arg18[%c0_196, %c0_197] : memref<32x128xf32, #tpu.memory_space<vmem>>, vector<32x128xf32>
    %cst_198 = arith.constant dense<0.000000e+00> : vector<4x128xf32>
    %506 = tpu.matmul %504, %505, %cst_198 {dimension_numbers = #tpu.dot_dimension_numbers<[1], [0], [0], [1], [0, 0, 1, 1], [], []>} : vector<4x32xf32>, vector<32x128xf32>, vector<4x128xf32> -> vector<4x128xf32>
    %507 = arith.mulf %506, %493 : vector<4x128xf32>
    %508 = tpu.concatenate %500, %507 in 1 : vector<4x128xf32>, vector<4x128xf32> -> vector<4x256xf32>
    %c0_199 = arith.constant 0 : index
    %c0_200 = arith.constant 0 : index
    %509 = vector.load %arg6[%c0_199, %c0_200] : memref<256x128xf32, #tpu.memory_space<vmem>>, vector<256x128xf32>
    %cst_201 = arith.constant dense<0.000000e+00> : vector<4x128xf32>
    %510 = tpu.matmul %508, %509, %cst_201 {dimension_numbers = #tpu.dot_dimension_numbers<[1], [0], [0], [1], [0, 0, 1, 1], [], []>} : vector<4x256xf32>, vector<256x128xf32>, vector<4x128xf32> -> vector<4x128xf32>
    %511 = vector.broadcast %440 : vector<4x1xf32> to vector<4x128xf32>
    %512 = arith.mulf %511, %510 : vector<4x128xf32>
    %c0_202 = arith.constant 0 : index
    %c0_203 = arith.constant 0 : index
    %513 = vector.load %arg7[%c0_202, %c0_203] : memref<32x128xf32, #tpu.memory_space<vmem>>, vector<32x128xf32>
    %cst_204 = arith.constant dense<0.000000e+00> : vector<4x128xf32>
    %514 = tpu.matmul %316, %513, %cst_204 {dimension_numbers = #tpu.dot_dimension_numbers<[1], [0], [0], [1], [0, 0, 1, 1], [], []>} : vector<4x32xf32>, vector<32x128xf32>, vector<4x128xf32> -> vector<4x128xf32>
    %515 = arith.addf %512, %514 : vector<4x128xf32>
    %c0_205 = arith.constant 0 : index
    %c0_206 = arith.constant 0 : index
    %516 = vector.load %arg8[%c0_205, %c0_206] : memref<32x128xf32, #tpu.memory_space<vmem>>, vector<32x128xf32>
    %cst_207 = arith.constant dense<0.000000e+00> : vector<4x128xf32>
    %517 = tpu.matmul %204, %516, %cst_207 {dimension_numbers = #tpu.dot_dimension_numbers<[1], [0], [0], [1], [0, 0, 1, 1], [], []>} : vector<4x32xf32>, vector<32x128xf32>, vector<4x128xf32> -> vector<4x128xf32>
    %518 = arith.addf %515, %517 : vector<4x128xf32>
    %c0_208 = arith.constant 0 : index
    %c0_209 = arith.constant 0 : index
    %519 = vector.load %arg9[%c0_208, %c0_209] : memref<1x128xf32, #tpu.memory_space<vmem>>, vector<1x128xf32>
    %520 = vector.broadcast %519 : vector<1x128xf32> to vector<4x128xf32>
    %521 = arith.addf %518, %520 : vector<4x128xf32>
    %522 = vector.extract_strided_slice %521 {offsets = [0, 0], sizes = [4, 32], strides = [1, 1]} : vector<4x128xf32> to vector<4x32xf32>
    %523 = arith.negf %522 : vector<4x32xf32>
    %524 = math.exp %523 : vector<4x32xf32>
    %cst_210 = arith.constant 1.000000e+00 : f32
    %525 = vector.broadcast %cst_210 : f32 to vector<4x32xf32>
    %526 = arith.addf %525, %524 : vector<4x32xf32>
    %527 = arith.divf %525, %526 : vector<4x32xf32>
    %528 = vector.extract_strided_slice %521 {offsets = [0, 32], sizes = [4, 32], strides = [1, 1]} : vector<4x128xf32> to vector<4x32xf32>
    %529 = arith.negf %528 : vector<4x32xf32>
    %530 = math.exp %529 : vector<4x32xf32>
    %cst_211 = arith.constant 1.000000e+00 : f32
    %531 = vector.broadcast %cst_211 : f32 to vector<4x32xf32>
    %532 = arith.addf %531, %530 : vector<4x32xf32>
    %533 = arith.divf %531, %532 : vector<4x32xf32>
    %534 = vector.extract_strided_slice %521 {offsets = [0, 64], sizes = [4, 32], strides = [1, 1]} : vector<4x128xf32> to vector<4x32xf32>
    %535 = math.tanh %534 : vector<4x32xf32>
    %536 = vector.extract_strided_slice %521 {offsets = [0, 96], sizes = [4, 32], strides = [1, 1]} : vector<4x128xf32> to vector<4x32xf32>
    %537 = arith.negf %536 : vector<4x32xf32>
    %538 = math.exp %537 : vector<4x32xf32>
    %cst_212 = arith.constant 1.000000e+00 : f32
    %539 = vector.broadcast %cst_212 : f32 to vector<4x32xf32>
    %540 = arith.addf %539, %538 : vector<4x32xf32>
    %541 = arith.divf %539, %540 : vector<4x32xf32>
    %542 = arith.mulf %533, %141 : vector<4x32xf32>
    %543 = arith.mulf %527, %535 : vector<4x32xf32>
    %544 = arith.addf %542, %543 : vector<4x32xf32>
    %545 = math.tanh %544 : vector<4x32xf32>
    %546 = arith.mulf %541, %545 : vector<4x32xf32>
    %cst_213 = arith.constant dense<0.000000e+00> : vector<4xf32>
    %547 = vector.multi_reduction <add>, %546, %cst_213 [1] : vector<4x32xf32> to vector<4xf32>
    %548 = vector.shape_cast %547 : vector<4xf32> to vector<4x1xf32>
    %cst_214 = arith.constant dense<0.000000e+00> : vector<1xf32>
    %549 = vector.multi_reduction <add>, %548, %cst_214 [0] : vector<4x1xf32> to vector<1xf32>
    %550 = vector.shape_cast %549 : vector<1xf32> to vector<1x1xf32>
    %cst_215 = arith.constant 1.280000e+02 : f32
    %551 = vector.broadcast %cst_215 : f32 to vector<1x1xf32>
    %552 = arith.divf %550, %551 : vector<1x1xf32>
    %553 = vector.broadcast %552 : vector<1x1xf32> to vector<4x32xf32>
    %554 = arith.subf %546, %553 : vector<4x32xf32>
    %555 = arith.mulf %554, %554 : vector<4x32xf32>
    %cst_216 = arith.constant dense<0.000000e+00> : vector<4xf32>
    %556 = vector.multi_reduction <add>, %555, %cst_216 [1] : vector<4x32xf32> to vector<4xf32>
    %557 = vector.shape_cast %556 : vector<4xf32> to vector<4x1xf32>
    %cst_217 = arith.constant dense<0.000000e+00> : vector<1xf32>
    %558 = vector.multi_reduction <add>, %557, %cst_217 [0] : vector<4x1xf32> to vector<1xf32>
    %559 = vector.shape_cast %558 : vector<1xf32> to vector<1x1xf32>
    %cst_218 = arith.constant 1.270000e+02 : f32
    %560 = vector.broadcast %cst_218 : f32 to vector<1x1xf32>
    %561 = arith.divf %559, %560 : vector<1x1xf32>
    %562 = math.sqrt %561 : vector<1x1xf32>
    %563 = arith.mulf %554, %554 : vector<4x32xf32>
    %cst_219 = arith.constant 0.000000e+00 : f32
    %564 = vector.broadcast %cst_219 : f32 to vector<4x32xf32>
    %565 = arith.subf %564, %563 : vector<4x32xf32>
    %cst_220 = arith.constant 5.000000e-01 : f32
    %566 = vector.broadcast %cst_220 : f32 to vector<1x1xf32>
    %567 = arith.divf %566, %561 : vector<1x1xf32>
    %568 = vector.broadcast %567 : vector<1x1xf32> to vector<4x32xf32>
    %569 = arith.mulf %565, %568 : vector<4x32xf32>
    %570 = math.log %561 : vector<1x1xf32>
    %cst_221 = arith.constant 5.000000e-01 : f32
    %571 = vector.broadcast %cst_221 : f32 to vector<1x1xf32>
    %572 = arith.mulf %571, %570 : vector<1x1xf32>
    %cst_222 = arith.constant 0.918938517 : f32
    %573 = vector.broadcast %cst_222 : f32 to vector<1x1xf32>
    %574 = arith.addf %572, %573 : vector<1x1xf32>
    %575 = vector.broadcast %574 : vector<1x1xf32> to vector<4x32xf32>
    %576 = arith.subf %569, %575 : vector<4x32xf32>
    %cst_223 = arith.constant dense<0xFF800000> : vector<4xf32>
    %577 = vector.multi_reduction <maximumf>, %576, %cst_223 [1] : vector<4x32xf32> to vector<4xf32>
    %578 = vector.shape_cast %577 : vector<4xf32> to vector<4x1xf32>
    %cst_224 = arith.constant dense<0xFF800000> : vector<1xf32>
    %579 = vector.multi_reduction <maximumf>, %578, %cst_224 [0] : vector<4x1xf32> to vector<1xf32>
    %580 = vector.shape_cast %579 : vector<1xf32> to vector<1x1xf32>
    %581 = vector.broadcast %580 : vector<1x1xf32> to vector<4x32xf32>
    %582 = arith.subf %576, %581 : vector<4x32xf32>
    %583 = math.exp %582 : vector<4x32xf32>
    %cst_225 = arith.constant dense<0.000000e+00> : vector<4xf32>
    %584 = vector.multi_reduction <add>, %583, %cst_225 [1] : vector<4x32xf32> to vector<4xf32>
    %585 = vector.shape_cast %584 : vector<4xf32> to vector<4x1xf32>
    %cst_226 = arith.constant dense<0.000000e+00> : vector<1xf32>
    %586 = vector.multi_reduction <add>, %585, %cst_226 [0] : vector<4x1xf32> to vector<1xf32>
    %587 = vector.shape_cast %586 : vector<1xf32> to vector<1x1xf32>
    %588 = math.log %587 : vector<1x1xf32>
    %589 = arith.addf %580, %588 : vector<1x1xf32>
    %590 = math.exp %580 : vector<1x1xf32>
    %591 = arith.mulf %590, %587 : vector<1x1xf32>
    %cst_227 = arith.constant 1.000000e+00 : f32
    %592 = vector.broadcast %cst_227 : f32 to vector<1x1xf32>
    %593 = arith.addf %592, %591 : vector<1x1xf32>
    %594 = math.log %593 : vector<1x1xf32>
    %cst_228 = arith.constant 0.000000e+00 : f32
    %595 = vector.broadcast %cst_228 : f32 to vector<1x1xf32>
    %596 = arith.subf %595, %580 : vector<1x1xf32>
    %597 = math.exp %596 : vector<1x1xf32>
    %598 = arith.addf %597, %587 : vector<1x1xf32>
    %599 = math.log %598 : vector<1x1xf32>
    %600 = arith.addf %580, %599 : vector<1x1xf32>
    %cst_229 = arith.constant 0.000000e+00 : f32
    %601 = vector.broadcast %cst_229 : f32 to vector<1x1xf32>
    %602 = arith.cmpf olt, %580, %601 : vector<1x1xf32>
    %603 = arith.select %602, %594, %600 : vector<1x1xi1>, vector<1x1xf32>
    %604 = arith.subf %603, %589 : vector<1x1xf32>
    %605 = vector.broadcast %604 : vector<1x1xf32> to vector<4x32xf32>
    %606 = arith.subf %605, %9 : vector<4x32xf32>
    %607 = arith.mulf %606, %546 : vector<4x32xf32>
    %cst_230 = arith.constant 1.280000e+02 : f32
    %608 = vector.broadcast %cst_230 : f32 to vector<1x1xf32>
    %609 = arith.index_cast %c1_i32 : i32 to index
    %c0_231 = arith.constant 0 : index
    %c0_232 = arith.constant 0 : index
    %610 = vector.load %arg23[%609, %c0_231, %c0_232] : memref<2x4x32xf32, #tpu.memory_space<vmem>>, vector<1x4x32xf32>
    %611 = vector.shape_cast %610 : vector<1x4x32xf32> to vector<4x32xf32>
    %612 = vector.shape_cast %606 : vector<4x32xf32> to vector<1x4x32xf32>
    tpu.vector_store %arg23[%609, %c0_231, %c0_232], %612 {strides = array<i32>} : memref<2x4x32xf32, #tpu.memory_space<vmem>>, vector<1x4x32xf32>,
    %c0_233 = arith.constant 0 : index
    %c0_234 = arith.constant 0 : index
    %613 = vector.load %arg10[%c0_233, %c0_234] : memref<32x128xf32, #tpu.memory_space<vmem>>, vector<32x128xf32>
    %cst_235 = arith.constant dense<0.000000e+00> : vector<4x128xf32>
    %614 = tpu.matmul %607, %613, %cst_235 {dimension_numbers = #tpu.dot_dimension_numbers<[1], [0], [0], [1], [0, 0, 1, 1], [], []>} : vector<4x32xf32>, vector<32x128xf32>, vector<4x128xf32> -> vector<4x128xf32>
    %c0_236 = arith.constant 0 : index
    %c0_237 = arith.constant 0 : index
    %615 = vector.load %arg11[%c0_236, %c0_237] : memref<1x128xf32, #tpu.memory_space<vmem>>, vector<1x128xf32>
    %616 = vector.broadcast %615 : vector<1x128xf32> to vector<4x128xf32>
    %617 = arith.addf %614, %616 : vector<4x128xf32>
    %618 = vector.extract_strided_slice %617 {offsets = [0, 0], sizes = [4, 8], strides = [1, 1]} : vector<4x128xf32> to vector<4x8xf32>
    %619 = vector.extract_strided_slice %617 {offsets = [0, 8], sizes = [4, 8], strides = [1, 1]} : vector<4x128xf32> to vector<4x8xf32>
    %620 = math.exp %619 : vector<4x8xf32>
    %621 = arith.index_cast %c1_i32 : i32 to index
    %c0_238 = arith.constant 0 : index
    %c0_239 = arith.constant 0 : index
    %622 = vector.load %arg1[%621, %c0_238, %c0_239] : memref<2x4x8xf32, #tpu.memory_space<vmem>>, vector<1x4x8xf32>
    %623 = vector.shape_cast %622 : vector<1x4x8xf32> to vector<4x8xf32>
    %624 = arith.mulf %620, %623 : vector<4x8xf32>
    %625 = arith.addf %618, %624 : vector<4x8xf32>
    %c0_240 = arith.constant 0 : index
    %c0_241 = arith.constant 0 : index
    %626 = vector.load %arg12[%c0_240, %c0_241] : memref<8x128xf32, #tpu.memory_space<vmem>>, vector<8x128xf32>
    %cst_242 = arith.constant dense<0.000000e+00> : vector<4x128xf32>
    %627 = tpu.matmul %625, %626, %cst_242 {dimension_numbers = #tpu.dot_dimension_numbers<[1], [0], [0], [1], [0, 0, 1, 1], [], []>} : vector<4x8xf32>, vector<8x128xf32>, vector<4x128xf32> -> vector<4x128xf32>
    %c0_243 = arith.constant 0 : index
    %c0_244 = arith.constant 0 : index
    %628 = vector.load %arg13[%c0_243, %c0_244] : memref<32x128xf32, #tpu.memory_space<vmem>>, vector<32x128xf32>
    %cst_245 = arith.constant dense<0.000000e+00> : vector<4x128xf32>
    %629 = tpu.matmul %316, %628, %cst_245 {dimension_numbers = #tpu.dot_dimension_numbers<[1], [0], [0], [1], [0, 0, 1, 1], [], []>} : vector<4x32xf32>, vector<32x128xf32>, vector<4x128xf32> -> vector<4x128xf32>
    %630 = arith.addf %627, %629 : vector<4x128xf32>
    %c0_246 = arith.constant 0 : index
    %c0_247 = arith.constant 0 : index
    %631 = vector.load %arg14[%c0_246, %c0_247] : memref<1x128xf32, #tpu.memory_space<vmem>>, vector<1x128xf32>
    %632 = vector.broadcast %631 : vector<1x128xf32> to vector<4x128xf32>
    %633 = arith.addf %630, %632 : vector<4x128xf32>
    %634 = vector.extract_strided_slice %633 {offsets = [0, 0], sizes = [4, 32], strides = [1, 1]} : vector<4x128xf32> to vector<4x32xf32>
    %635 = arith.negf %634 : vector<4x32xf32>
    %636 = math.exp %635 : vector<4x32xf32>
    %cst_248 = arith.constant 1.000000e+00 : f32
    %637 = vector.broadcast %cst_248 : f32 to vector<4x32xf32>
    %638 = arith.addf %637, %636 : vector<4x32xf32>
    %639 = arith.divf %637, %638 : vector<4x32xf32>
    %640 = vector.extract_strided_slice %633 {offsets = [0, 32], sizes = [4, 32], strides = [1, 1]} : vector<4x128xf32> to vector<4x32xf32>
    %641 = arith.negf %640 : vector<4x32xf32>
    %642 = math.exp %641 : vector<4x32xf32>
    %cst_249 = arith.constant 1.000000e+00 : f32
    %643 = vector.broadcast %cst_249 : f32 to vector<4x32xf32>
    %644 = arith.addf %643, %642 : vector<4x32xf32>
    %645 = arith.divf %643, %644 : vector<4x32xf32>
    %646 = vector.extract_strided_slice %633 {offsets = [0, 64], sizes = [4, 32], strides = [1, 1]} : vector<4x128xf32> to vector<4x32xf32>
    %647 = math.tanh %646 : vector<4x32xf32>
    %648 = vector.extract_strided_slice %633 {offsets = [0, 96], sizes = [4, 32], strides = [1, 1]} : vector<4x128xf32> to vector<4x32xf32>
    %649 = arith.negf %648 : vector<4x32xf32>
    %650 = math.exp %649 : vector<4x32xf32>
    %cst_250 = arith.constant 1.000000e+00 : f32
    %651 = vector.broadcast %cst_250 : f32 to vector<4x32xf32>
    %652 = arith.addf %651, %650 : vector<4x32xf32>
    %653 = arith.divf %651, %652 : vector<4x32xf32>
    %654 = arith.mulf %645, %253 : vector<4x32xf32>
    %655 = arith.mulf %639, %647 : vector<4x32xf32>
    %656 = arith.addf %654, %655 : vector<4x32xf32>
    %657 = math.tanh %656 : vector<4x32xf32>
    %658 = arith.mulf %653, %657 : vector<4x32xf32>
    %cst_251 = arith.constant dense<0.000000e+00> : vector<4xf32>
    %659 = vector.multi_reduction <add>, %658, %cst_251 [1] : vector<4x32xf32> to vector<4xf32>
    %660 = vector.shape_cast %659 : vector<4xf32> to vector<4x1xf32>
    %cst_252 = arith.constant dense<0.000000e+00> : vector<1xf32>
    %661 = vector.multi_reduction <add>, %660, %cst_252 [0] : vector<4x1xf32> to vector<1xf32>
    %662 = vector.shape_cast %661 : vector<1xf32> to vector<1x1xf32>
    %cst_253 = arith.constant 1.280000e+02 : f32
    %663 = vector.broadcast %cst_253 : f32 to vector<1x1xf32>
    %664 = arith.divf %662, %663 : vector<1x1xf32>
    %665 = vector.broadcast %664 : vector<1x1xf32> to vector<4x32xf32>
    %666 = arith.subf %658, %665 : vector<4x32xf32>
    %667 = arith.mulf %666, %666 : vector<4x32xf32>
    %cst_254 = arith.constant dense<0.000000e+00> : vector<4xf32>
    %668 = vector.multi_reduction <add>, %667, %cst_254 [1] : vector<4x32xf32> to vector<4xf32>
    %669 = vector.shape_cast %668 : vector<4xf32> to vector<4x1xf32>
    %cst_255 = arith.constant dense<0.000000e+00> : vector<1xf32>
    %670 = vector.multi_reduction <add>, %669, %cst_255 [0] : vector<4x1xf32> to vector<1xf32>
    %671 = vector.shape_cast %670 : vector<1xf32> to vector<1x1xf32>
    %cst_256 = arith.constant 1.270000e+02 : f32
    %672 = vector.broadcast %cst_256 : f32 to vector<1x1xf32>
    %673 = arith.divf %671, %672 : vector<1x1xf32>
    %674 = math.sqrt %673 : vector<1x1xf32>
    %675 = arith.mulf %666, %666 : vector<4x32xf32>
    %cst_257 = arith.constant 0.000000e+00 : f32
    %676 = vector.broadcast %cst_257 : f32 to vector<4x32xf32>
    %677 = arith.subf %676, %675 : vector<4x32xf32>
    %cst_258 = arith.constant 5.000000e-01 : f32
    %678 = vector.broadcast %cst_258 : f32 to vector<1x1xf32>
    %679 = arith.divf %678, %673 : vector<1x1xf32>
    %680 = vector.broadcast %679 : vector<1x1xf32> to vector<4x32xf32>
    %681 = arith.mulf %677, %680 : vector<4x32xf32>
    %682 = math.log %673 : vector<1x1xf32>
    %cst_259 = arith.constant 5.000000e-01 : f32
    %683 = vector.broadcast %cst_259 : f32 to vector<1x1xf32>
    %684 = arith.mulf %683, %682 : vector<1x1xf32>
    %cst_260 = arith.constant 0.918938517 : f32
    %685 = vector.broadcast %cst_260 : f32 to vector<1x1xf32>
    %686 = arith.addf %684, %685 : vector<1x1xf32>
    %687 = vector.broadcast %686 : vector<1x1xf32> to vector<4x32xf32>
    %688 = arith.subf %681, %687 : vector<4x32xf32>
    %cst_261 = arith.constant dense<0xFF800000> : vector<4xf32>
    %689 = vector.multi_reduction <maximumf>, %688, %cst_261 [1] : vector<4x32xf32> to vector<4xf32>
    %690 = vector.shape_cast %689 : vector<4xf32> to vector<4x1xf32>
    %cst_262 = arith.constant dense<0xFF800000> : vector<1xf32>
    %691 = vector.multi_reduction <maximumf>, %690, %cst_262 [0] : vector<4x1xf32> to vector<1xf32>
    %692 = vector.shape_cast %691 : vector<1xf32> to vector<1x1xf32>
    %693 = vector.broadcast %692 : vector<1x1xf32> to vector<4x32xf32>
    %694 = arith.subf %688, %693 : vector<4x32xf32>
    %695 = math.exp %694 : vector<4x32xf32>
    %cst_263 = arith.constant dense<0.000000e+00> : vector<4xf32>
    %696 = vector.multi_reduction <add>, %695, %cst_263 [1] : vector<4x32xf32> to vector<4xf32>
    %697 = vector.shape_cast %696 : vector<4xf32> to vector<4x1xf32>
    %cst_264 = arith.constant dense<0.000000e+00> : vector<1xf32>
    %698 = vector.multi_reduction <add>, %697, %cst_264 [0] : vector<4x1xf32> to vector<1xf32>
    %699 = vector.shape_cast %698 : vector<1xf32> to vector<1x1xf32>
    %700 = math.log %699 : vector<1x1xf32>
    %701 = arith.addf %692, %700 : vector<1x1xf32>
    %702 = math.exp %692 : vector<1x1xf32>
    %703 = arith.mulf %702, %699 : vector<1x1xf32>
    %cst_265 = arith.constant 1.000000e+00 : f32
    %704 = vector.broadcast %cst_265 : f32 to vector<1x1xf32>
    %705 = arith.addf %704, %703 : vector<1x1xf32>
    %706 = math.log %705 : vector<1x1xf32>
    %cst_266 = arith.constant 0.000000e+00 : f32
    %707 = vector.broadcast %cst_266 : f32 to vector<1x1xf32>
    %708 = arith.subf %707, %692 : vector<1x1xf32>
    %709 = math.exp %708 : vector<1x1xf32>
    %710 = arith.addf %709, %699 : vector<1x1xf32>
    %711 = math.log %710 : vector<1x1xf32>
    %712 = arith.addf %692, %711 : vector<1x1xf32>
    %cst_267 = arith.constant 0.000000e+00 : f32
    %713 = vector.broadcast %cst_267 : f32 to vector<1x1xf32>
    %714 = arith.cmpf olt, %692, %713 : vector<1x1xf32>
    %715 = arith.select %714, %706, %712 : vector<1x1xi1>, vector<1x1xf32>
    %716 = arith.subf %715, %701 : vector<1x1xf32>
    %717 = vector.broadcast %716 : vector<1x1xf32> to vector<4x32xf32>
    %718 = arith.subf %717, %10 : vector<4x32xf32>
    %719 = arith.mulf %718, %658 : vector<4x32xf32>
    %cst_268 = arith.constant 1.280000e+02 : f32
    %720 = vector.broadcast %cst_268 : f32 to vector<1x1xf32>
    %721 = arith.index_cast %c1_i32 : i32 to index
    %c0_269 = arith.constant 0 : index
    %c0_270 = arith.constant 0 : index
    %722 = vector.load %arg24[%721, %c0_269, %c0_270] : memref<2x4x32xf32, #tpu.memory_space<vmem>>, vector<1x4x32xf32>
    %723 = vector.shape_cast %722 : vector<1x4x32xf32> to vector<4x32xf32>
    %724 = vector.shape_cast %718 : vector<4x32xf32> to vector<1x4x32xf32>
    tpu.vector_store %arg24[%721, %c0_269, %c0_270], %724 {strides = array<i32>} : memref<2x4x32xf32, #tpu.memory_space<vmem>>, vector<1x4x32xf32>,
    %725 = tpu.concatenate %552, %562, %608, %603, %664, %674, %720, %715 in 1 : vector<1x1xf32>, vector<1x1xf32>, vector<1x1xf32>, vector<1x1xf32>, vector<1x1xf32>, vector<1x1xf32>, vector<1x1xf32>, vector<1x1xf32> -> vector<1x8xf32>
    %726 = arith.index_cast %c1_i32 : i32 to index
    %c0_271 = arith.constant 0 : index
    %c0_272 = arith.constant 0 : index
    %727 = vector.load %arg22[%726, %c0_271, %c0_272] : memref<2x1x8xf32, #tpu.memory_space<vmem>>, vector<1x1x8xf32>
    %728 = vector.shape_cast %727 : vector<1x1x8xf32> to vector<1x8xf32>
    %729 = vector.shape_cast %725 : vector<1x8xf32> to vector<1x1x8xf32>
    tpu.vector_store %arg22[%726, %c0_271, %c0_272], %729 {strides = array<i32>} : memref<2x1x8xf32, #tpu.memory_space<vmem>>, vector<1x1x8xf32>,
    %c0_273 = arith.constant 0 : index
    %c0_274 = arith.constant 0 : index
    %730 = vector.load %arg4[%c0_273, %c0_274] : memref<32x128xf32, #tpu.memory_space<vmem>>, vector<32x128xf32>
    %cst_275 = arith.constant dense<0.000000e+00> : vector<4x128xf32>
    %731 = tpu.matmul %719, %730, %cst_275 {dimension_numbers = #tpu.dot_dimension_numbers<[1], [0], [0], [1], [0, 0, 1, 1], [], []>} : vector<4x32xf32>, vector<32x128xf32>, vector<4x128xf32> -> vector<4x128xf32>
    %c0_276 = arith.constant 0 : index
    %c0_277 = arith.constant 0 : index
    %732 = vector.load %arg5[%c0_276, %c0_277] : memref<1x128xf32, #tpu.memory_space<vmem>>, vector<1x128xf32>
    %733 = vector.broadcast %732 : vector<1x128xf32> to vector<4x128xf32>
    %734 = arith.addf %731, %733 : vector<4x128xf32>
    %735 = vector.extract_strided_slice %734 {offsets = [0, 0], sizes = [4, 5], strides = [1, 1]} : vector<4x128xf32> to vector<4x5xf32>
    %736 = vector.extract_strided_slice %735 {offsets = [0, 0], sizes = [4, 1], strides = [1, 1]} : vector<4x5xf32> to vector<4x1xf32>
    %cst_278 = arith.constant 1.000000e+00 : f32
    %737 = vector.broadcast %cst_278 : f32 to vector<4x1xf32>
    %738 = arith.addf %736, %737 : vector<4x1xf32>
    %cst_279 = arith.constant 4.500000e+00 : f32
    %739 = vector.broadcast %cst_279 : f32 to vector<4x1xf32>
    %740 = arith.mulf %739, %738 : vector<4x1xf32>
    %741 = vector.extract_strided_slice %735 {offsets = [0, 1], sizes = [4, 1], strides = [1, 1]} : vector<4x5xf32> to vector<4x1xf32>
    %cst_280 = arith.constant 1.000000e+00 : f32
    %742 = vector.broadcast %cst_280 : f32 to vector<4x1xf32>
    %743 = arith.addf %741, %742 : vector<4x1xf32>
    %cst_281 = arith.constant 4.500000e+00 : f32
    %744 = vector.broadcast %cst_281 : f32 to vector<4x1xf32>
    %745 = arith.mulf %744, %743 : vector<4x1xf32>
    %746 = vector.extract_strided_slice %735 {offsets = [0, 2], sizes = [4, 1], strides = [1, 1]} : vector<4x5xf32> to vector<4x1xf32>
    %747 = math.exp %746 : vector<4x1xf32>
    %748 = vector.extract_strided_slice %735 {offsets = [0, 3], sizes = [4, 1], strides = [1, 1]} : vector<4x5xf32> to vector<4x1xf32>
    %749 = math.exp %748 : vector<4x1xf32>
    %cst_282 = arith.constant 2.33333325 : f32
    %750 = vector.broadcast %cst_282 : f32 to vector<4x1xf32>
    %751 = arith.mulf %750, %749 : vector<4x1xf32>
    %752 = vector.extract_strided_slice %735 {offsets = [0, 4], sizes = [4, 1], strides = [1, 1]} : vector<4x5xf32> to vector<4x1xf32>
    %753 = math.exp %752 : vector<4x1xf32>
    %754 = vector.extract_strided_slice %734 {offsets = [0, 5], sizes = [4, 16], strides = [1, 1]} : vector<4x128xf32> to vector<4x16xf32>
    %cst_283 = arith.constant 2.500000e+00 : f32
    %755 = vector.broadcast %cst_283 : f32 to vector<1x32xf32>
    %756 = arith.subf %4, %755 : vector<1x32xf32>
    %757 = vector.broadcast %756 : vector<1x32xf32> to vector<4x32xf32>
    %758 = vector.broadcast %751 : vector<4x1xf32> to vector<4x32xf32>
    %759 = arith.mulf %757, %758 : vector<4x32xf32>
    %760 = vector.broadcast %745 : vector<4x1xf32> to vector<4x32xf32>
    %761 = arith.addf %759, %760 : vector<4x32xf32>
    %762 = vector.broadcast %7 : vector<1x32xf32> to vector<4x32xf32>
    %763 = arith.subf %762, %761 : vector<4x32xf32>
    %cst_284 = arith.constant 2.000000e+00 : f32
    %764 = vector.broadcast %cst_284 : f32 to vector<4x1xf32>
    %765 = arith.mulf %764, %747 : vector<4x1xf32>
    %766 = vector.broadcast %765 : vector<4x1xf32> to vector<4x32xf32>
    %767 = arith.divf %763, %766 : vector<4x32xf32>
    %cst_285 = arith.constant 0.000000e+00 : f32
    %768 = vector.broadcast %cst_285 : f32 to vector<4x32xf32>
    %769 = arith.subf %768, %767 : vector<4x32xf32>
    %770 = arith.mulf %769, %767 : vector<4x32xf32>
    %771 = math.exp %770 : vector<4x32xf32>
    %c0_286 = arith.constant 0 : index
    %c0_287 = arith.constant 0 : index
    %772 = vector.load %arg15[%c0_286, %c0_287] : memref<32x32xf32, #tpu.memory_space<vmem>>, vector<32x32xf32>
    %cst_288 = arith.constant dense<0.000000e+00> : vector<4x32xf32>
    %773 = tpu.matmul %771, %772, %cst_288 {dimension_numbers = #tpu.dot_dimension_numbers<[1], [0], [0], [1], [0, 0, 1, 1], [], []>} : vector<4x32xf32>, vector<32x32xf32>, vector<4x32xf32> -> vector<4x32xf32>
    %cst_289 = arith.constant 9.99999971E-10 : f32
    %774 = vector.broadcast %cst_289 : f32 to vector<4x32xf32>
    %775 = arith.addf %773, %774 : vector<4x32xf32>
    %776 = arith.divf %771, %775 : vector<4x32xf32>
    %cst_290 = arith.constant 2.500000e+00 : f32
    %777 = vector.broadcast %cst_290 : f32 to vector<1x32xf32>
    %778 = arith.subf %4, %777 : vector<1x32xf32>
    %779 = vector.broadcast %778 : vector<1x32xf32> to vector<4x32xf32>
    %780 = vector.broadcast %751 : vector<4x1xf32> to vector<4x32xf32>
    %781 = arith.mulf %779, %780 : vector<4x32xf32>
    %782 = vector.broadcast %740 : vector<4x1xf32> to vector<4x32xf32>
    %783 = arith.addf %781, %782 : vector<4x32xf32>
    %784 = vector.broadcast %7 : vector<1x32xf32> to vector<4x32xf32>
    %785 = arith.subf %784, %783 : vector<4x32xf32>
    %cst_291 = arith.constant 2.000000e+00 : f32
    %786 = vector.broadcast %cst_291 : f32 to vector<4x1xf32>
    %787 = arith.mulf %786, %747 : vector<4x1xf32>
    %788 = vector.broadcast %787 : vector<4x1xf32> to vector<4x32xf32>
    %789 = arith.divf %785, %788 : vector<4x32xf32>
    %cst_292 = arith.constant 0.000000e+00 : f32
    %790 = vector.broadcast %cst_292 : f32 to vector<4x32xf32>
    %791 = arith.subf %790, %789 : vector<4x32xf32>
    %792 = arith.mulf %791, %789 : vector<4x32xf32>
    %793 = math.exp %792 : vector<4x32xf32>
    %c0_293 = arith.constant 0 : index
    %c0_294 = arith.constant 0 : index
    %794 = vector.load %arg15[%c0_293, %c0_294] : memref<32x32xf32, #tpu.memory_space<vmem>>, vector<32x32xf32>
    %cst_295 = arith.constant dense<0.000000e+00> : vector<4x32xf32>
    %795 = tpu.matmul %793, %794, %cst_295 {dimension_numbers = #tpu.dot_dimension_numbers<[1], [0], [0], [1], [0, 0, 1, 1], [], []>} : vector<4x32xf32>, vector<32x32xf32>, vector<4x32xf32> -> vector<4x32xf32>
    %cst_296 = arith.constant 9.99999971E-10 : f32
    %796 = vector.broadcast %cst_296 : f32 to vector<4x32xf32>
    %797 = arith.addf %795, %796 : vector<4x32xf32>
    %798 = arith.divf %793, %797 : vector<4x32xf32>
    %c0_297 = arith.constant 0 : index
    %c0_298 = arith.constant 0 : index
    %799 = vector.load %arg19[%c0_297, %c0_298] : memref<16x128xf32, #tpu.memory_space<vmem>>, vector<16x128xf32>
    %cst_299 = arith.constant dense<0.000000e+00> : vector<4x128xf32>
    %800 = tpu.matmul %754, %799, %cst_299 {dimension_numbers = #tpu.dot_dimension_numbers<[1], [0], [0], [1], [0, 0, 1, 1], [], []>} : vector<4x16xf32>, vector<16x128xf32>, vector<4x128xf32> -> vector<4x128xf32>
    %801 = tpu.concatenate %798, %798, %798, %798 in 1 : vector<4x32xf32>, vector<4x32xf32>, vector<4x32xf32>, vector<4x32xf32> -> vector<4x128xf32>
    %802 = arith.mulf %800, %801 : vector<4x128xf32>
    %c0_300 = arith.constant 0 : index
    %c0_301 = arith.constant 0 : index
    %803 = vector.load %arg20[%c0_300, %c0_301] : memref<128x32xf32, #tpu.memory_space<vmem>>, vector<128x32xf32>
    %cst_302 = arith.constant dense<0.000000e+00> : vector<4x32xf32>
    %804 = tpu.matmul %802, %803, %cst_302 {dimension_numbers = #tpu.dot_dimension_numbers<[1], [0], [0], [1], [0, 0, 1, 1], [], []>} : vector<4x128xf32>, vector<128x32xf32>, vector<4x32xf32> -> vector<4x32xf32>
    %c0_303 = arith.constant 0 : index
    %c0_304 = arith.constant 0 : index
    %805 = vector.load %arg21[%c0_303, %c0_304] : memref<32x256xf32, #tpu.memory_space<vmem>>, vector<32x256xf32>
    %cst_305 = arith.constant dense<0.000000e+00> : vector<4x256xf32>
    %806 = tpu.matmul %804, %805, %cst_305 {dimension_numbers = #tpu.dot_dimension_numbers<[1], [0], [0], [1], [0, 0, 1, 1], [], []>} : vector<4x32xf32>, vector<32x256xf32>, vector<4x256xf32> -> vector<4x256xf32>
    %c0_306 = arith.constant 0 : index
    %c0_307 = arith.constant 0 : index
    %807 = vector.load %arg16[%c0_306, %c0_307] : memref<32x256xf32, #tpu.memory_space<vmem>>, vector<32x256xf32>
    %cst_308 = arith.constant dense<0.000000e+00> : vector<4x256xf32>
    %808 = tpu.matmul %776, %807, %cst_308 {dimension_numbers = #tpu.dot_dimension_numbers<[1], [0], [0], [1], [0, 0, 1, 1], [], []>} : vector<4x32xf32>, vector<32x256xf32>, vector<4x256xf32> -> vector<4x256xf32>
    %809 = arith.mulf %808, %806 : vector<4x256xf32>
    %810 = vector.extract_strided_slice %809 {offsets = [0, 0], sizes = [4, 64], strides = [1, 1]} : vector<4x256xf32> to vector<4x64xf32>
    %811 = vector.extract_strided_slice %809 {offsets = [0, 64], sizes = [4, 64], strides = [1, 1]} : vector<4x256xf32> to vector<4x64xf32>
    %812 = arith.addf %810, %811 : vector<4x64xf32>
    %813 = vector.extract_strided_slice %809 {offsets = [0, 128], sizes = [4, 64], strides = [1, 1]} : vector<4x256xf32> to vector<4x64xf32>
    %814 = arith.addf %812, %813 : vector<4x64xf32>
    %815 = vector.extract_strided_slice %809 {offsets = [0, 192], sizes = [4, 64], strides = [1, 1]} : vector<4x256xf32> to vector<4x64xf32>
    %816 = arith.addf %814, %815 : vector<4x64xf32>
    %817 = vector.broadcast %753 : vector<4x1xf32> to vector<4x64xf32>
    %818 = arith.divf %816, %817 : vector<4x64xf32>
    %819 = arith.addf %416, %818 : vector<4x64xf32>
    %c2_i32 = arith.constant 2 : i32
    %c0_309 = arith.constant 0 : index
    %c0_310 = arith.constant 0 : index
    %820 = vector.load %arg25[%c0_309, %c0_310] : memref<4x64xf32, #tpu.memory_space<vmem>>, vector<4x64xf32>
    tpu.vector_store %arg25[%c0_309, %c0_310], %819 {strides = array<i32>} : memref<4x64xf32, #tpu.memory_space<vmem>>, vector<4x64xf32>,
    return
  }
}

</mosaic_0001>

<llo_original>
// kernel: draw_forward.1
$region0: #{draw_forward.1}
  #allocation0 [shape = 'u32[]', space=smem, size = 0x4, offset = 0x4, fixed_abs, tag = 'smem constant byte address 0x4 - core index']
  #allocation1 [shape = 'u32[144,128]{1,0:T(1,128)}', space=vmem, size = 0x12000, scoped, tag = 'internal scratch']
  %s0 = inlined_call_operand.vmem [shape: f32[4,64], index: 0, kind: input, shape index: {}]
  %s1 = inlined_call_operand.hbm [shape: f32[2,4,8], index: 1, kind: input, shape index: {}]
  %s2 = inlined_call_operand.vmem [shape: f32[4,32], index: 2, kind: input, shape index: {}]
  %s3 = inlined_call_operand.vmem [shape: f32[4,32], index: 3, kind: input, shape index: {}]
  %s4 = inlined_call_operand.vmem [shape: f32[32,128], index: 4, kind: input, shape index: {}]
  %s5 = inlined_call_operand.hbm [shape: f32[1,128], index: 5, kind: input, shape index: {}]
  %s6 = inlined_call_operand.vmem [shape: f32[256,128], index: 6, kind: input, shape index: {}]
  %s7 = inlined_call_operand.vmem [shape: f32[32,128], index: 7, kind: input, shape index: {}]
  %s8 = inlined_call_operand.hbm [shape: f32[32,128], index: 8, kind: input, shape index: {}]
  %s9 = inlined_call_operand.hbm [shape: f32[1,128], index: 9, kind: input, shape index: {}]
  %s10 = inlined_call_operand.hbm [shape: f32[32,128], index: 10, kind: input, shape index: {}]
  %s11 = inlined_call_operand.hbm [shape: f32[1,128], index: 11, kind: input, shape index: {}]
  %s12 = inlined_call_operand.vmem [shape: f32[8,128], index: 12, kind: input, shape index: {}]
  %s13 = inlined_call_operand.hbm [shape: f32[32,128], index: 13, kind: input, shape index: {}]
  %s14 = inlined_call_operand.hbm [shape: f32[1,128], index: 14, kind: input, shape index: {}]
  %s15 = inlined_call_operand.hbm [shape: f32[32,32], index: 15, kind: input, shape index: {}]
  %s16 = inlined_call_operand.vmem [shape: f32[32,256], index: 16, kind: input, shape index: {}]
  %s17 = inlined_call_operand.vmem [shape: f32[256,32], index: 17, kind: input, shape index: {}]
  %s18 = inlined_call_operand.hbm [shape: f32[32,128], index: 18, kind: input, shape index: {}]
  %s19 = inlined_call_operand.hbm [shape: f32[16,128], index: 19, kind: input, shape index: {}]
  %s20 = inlined_call_operand.vmem [shape: f32[128,32], index: 20, kind: input, shape index: {}]
  %s21 = inlined_call_operand.vmem [shape: f32[32,256], index: 21, kind: input, shape index: {}]
  %s22 = inlined_call_operand.hbm [shape: f32[2,1,8], index: 22, kind: output, shape index: {0}]
  %s23 = inlined_call_operand.hbm [shape: f32[2,4,32], index: 23, kind: output, shape index: {1}]
  %s24 = inlined_call_operand.hbm [shape: f32[2,4,32], index: 24, kind: output, shape index: {2}]
  %s25 = inlined_call_operand.vmem [shape: f32[4,64], index: 25, kind: output, shape index: {3}]
  %26 = xla_tuple %s22, %s23, %s24, %s25
  %s27 = sld [smem:[#allocation0]]
  $region166: #{draw_forward.1} parent=0
    _
  %s29 = ssub.s32 1, %s27
  %s30 = scalar_select 0, %s29, %s27
  $region1: #{draw_forward.1} parent=0
    #allocation2 [shape = 'u8[4096]{0}', space=vmem, size = 0x1000, scoped, tag = 'input window, operand 1, single buffered']
    #allocation3 [shape = 's32[1]{0}', space=sflag, size = 0x4, scoped, tag = 'scoped memory for draw_forward.1']
    #allocation4 [shape = 's32[1]{0}', space=sflag, size = 0x4, scoped, tag = 'scoped memory for draw_forward.1']
    #allocation5 [shape = 'u8[512]{0}', space=vmem, size = 0x400, scoped, tag = 'input window, operand 5, single buffered']
    #allocation6 [shape = 's32[1]{0}', space=sflag, size = 0x4, scoped, tag = 'scoped memory for draw_forward.1']
    #allocation7 [shape = 'u8[16384]{0}', space=vmem, size = 0x4000, scoped, tag = 'input window, operand 8, single buffered']
    #allocation8 [shape = 'u8[512]{0}', space=vmem, size = 0x400, scoped, tag = 'input window, operand 9, single buffered']
    #allocation9 [shape = 's32[1]{0}', space=sflag, size = 0x4, scoped, tag = 'scoped memory for draw_forward.1']
    #allocation10 [shape = 'u8[16384]{0}', space=vmem, size = 0x4000, scoped, tag = 'input window, operand 10, single buffered']
    #allocation11 [shape = 'u8[512]{0}', space=vmem, size = 0x400, scoped, tag = 'input window, operand 11, single buffered']
    #allocation12 [shape = 's32[1]{0}', space=sflag, size = 0x4, scoped, tag = 'scoped memory for draw_forward.1']
    #allocation13 [shape = 'u8[16384]{0}', space=vmem, size = 0x4000, scoped, tag = 'input window, operand 13, single buffered']
    #allocation14 [shape = 'u8[512]{0}', space=vmem, size = 0x400, scoped, tag = 'input window, operand 14, single buffered']
    #allocation15 [shape = 's32[1]{0}', space=sflag, size = 0x4, scoped, tag = 'scoped memory for draw_forward.1']
    #allocation16 [shape = 'u8[16384]{0}', space=vmem, size = 0x4000, scoped, tag = 'input window, operand 15, single buffered']
    #allocation17 [shape = 'u8[16384]{0}', space=vmem, size = 0x4000, scoped, tag = 'input window, operand 18, single buffered']
    #allocation18 [shape = 's32[1]{0}', space=sflag, size = 0x4, scoped, tag = 'scoped memory for draw_forward.1']
    #allocation19 [shape = 'u8[8192]{0}', space=vmem, size = 0x2000, scoped, tag = 'input window, operand 19, single buffered']
    #allocation20 [shape = 'u8[1024]{0}', space=vmem, size = 0x400, scoped, tag = 'output window, operand 0, single buffered']
    #allocation21 [shape = 'u8[4096]{0}', space=vmem, size = 0x1000, scoped, tag = 'output window, operand 1, single buffered']
    #allocation22 [shape = 's32[1]{0}', space=sflag, size = 0x4, scoped, tag = 'scoped memory for draw_forward.1']
    #allocation23 [shape = 'u8[4096]{0}', space=vmem, size = 0x1000, scoped, tag = 'output window, operand 2, single buffered']
    %31 = vsyncpa [#allocation3], 0
    %32 = vsyncpa [#allocation6], 0
    %33 = vsyncpa [#allocation9], 0
    %34 = vsyncpa [#allocation12], 0
    %35 = vsyncpa [#allocation15], 0
    %36 = vsyncpa [#allocation18], 0
    %37 = vsyncpa [#allocation4], 0
    %38 = vsyncpa [#allocation22], 0
    // Predicated region
    $region2: #{draw_forward.1} parent=1 // pred_check
      _
    $region3: #{draw_forward.1} parent=1 // pred_check_branch
      %40 = sbr.rel (0) target = $region5
    $region4: #{draw_forward.1} parent=1 // pred_region
      _
    $region5: #{draw_forward.1} parent=1 // pred_fallthru
      _
    // Predicated region
    $region6: #{draw_forward.1} parent=1 // pred_check
      _
    $region7: #{draw_forward.1} parent=1 // pred_check_branch
      %42 = sbr.rel (0) target = $region9
    $region8: #{draw_forward.1} parent=1 // pred_region
      %s44 = ssub.s32 128, 128
      %45 = vsyncadd [#allocation3], %s44
      %s46 = sshll.u32 [#allocation2], 4
      %s47 = int_to_ptr.vmem [resolvable:$true] %s46
      %52 = dma.hbm_to_vmem [thread:$0]  %s1, 128, %s47, [#allocation3], 64, 64, 4
    $region9: #{draw_forward.1} parent=1 // pred_fallthru
      _
    // Predicated region
    $region10: #{draw_forward.1} parent=1 // pred_check
      _
    $region11: #{draw_forward.1} parent=1 // pred_check_branch
      %54 = sbr.rel (0) target = $region13
    $region12: #{draw_forward.1} parent=1 // pred_region
      _
    $region13: #{draw_forward.1} parent=1 // pred_fallthru
      _
    // Predicated region
    $region14: #{draw_forward.1} parent=1 // pred_check
      _
    $region15: #{draw_forward.1} parent=1 // pred_check_branch
      %56 = sbr.rel (0) target = $region17
    $region16: #{draw_forward.1} parent=1 // pred_region
      _
    $region17: #{draw_forward.1} parent=1 // pred_fallthru
      _
    // Predicated region
    $region18: #{draw_forward.1} parent=1 // pred_check
      _
    $region19: #{draw_forward.1} parent=1 // pred_check_branch
      %58 = sbr.rel (0) target = $region21
    $region20: #{draw_forward.1} parent=1 // pred_region
      _
    $region21: #{draw_forward.1} parent=1 // pred_fallthru
      _
    // Predicated region
    $region22: #{draw_forward.1} parent=1 // pred_check
      _
    $region23: #{draw_forward.1} parent=1 // pred_check_branch
      %60 = sbr.rel (0) target = $region25
    $region24: #{draw_forward.1} parent=1 // pred_region
      %s62 = ssub.s32 16, 16
      %63 = vsyncadd [#allocation6], %s62
      %s65 = sshll.u32 [#allocation5], 4
      %s66 = int_to_ptr.vmem [resolvable:$true] %s65
      %68 = dma.hbm_to_vmem [thread:$0]  %s5, 16, %s66, [#allocation6]
    $region25: #{draw_forward.1} parent=1 // pred_fallthru
      _
    // Predicated region
    $region26: #{draw_forward.1} parent=1 // pred_check
      _
    $region27: #{draw_forward.1} parent=1 // pred_check_branch
      %70 = sbr.rel (0) target = $region29
    $region28: #{draw_forward.1} parent=1 // pred_region
      _
    $region29: #{draw_forward.1} parent=1 // pred_fallthru
      _
    // Predicated region
    $region30: #{draw_forward.1} parent=1 // pred_check
      _
    $region31: #{draw_forward.1} parent=1 // pred_check_branch
      %72 = sbr.rel (0) target = $region33
    $region32: #{draw_forward.1} parent=1 // pred_region
      _
    $region33: #{draw_forward.1} parent=1 // pred_fallthru
      _
    // Predicated region
    $region34: #{draw_forward.1} parent=1 // pred_check
      _
    $region35: #{draw_forward.1} parent=1 // pred_check_branch
      %74 = sbr.rel (0) target = $region37
    $region36: #{draw_forward.1} parent=1 // pred_region
      %s76 = ssub.s32 512, 512
      %77 = vsyncadd [#allocation6], %s76
      %s78 = sshll.u32 [#allocation7], 4
      %s79 = int_to_ptr.vmem [resolvable:$true] %s78
      %84 = dma.hbm_to_vmem [thread:$0]  %s8, 512, %s79, [#allocation6], 128, 128, 8
    $region37: #{draw_forward.1} parent=1 // pred_fallthru
      _
    // Predicated region
    $region38: #{draw_forward.1} parent=1 // pred_check
      _
    $region39: #{draw_forward.1} parent=1 // pred_check_branch
      %86 = sbr.rel (0) target = $region41
    $region40: #{draw_forward.1} parent=1 // pred_region
      %s88 = ssub.s32 16, 16
      %89 = vsyncadd [#allocation9], %s88
      %s91 = sshll.u32 [#allocation8], 4
      %s92 = int_to_ptr.vmem [resolvable:$true] %s91
      %94 = dma.hbm_to_vmem [thread:$0]  %s9, 16, %s92, [#allocation9]
    $region41: #{draw_forward.1} parent=1 // pred_fallthru
      _
    // Predicated region
    $region42: #{draw_forward.1} parent=1 // pred_check
      _
    $region43: #{draw_forward.1} parent=1 // pred_check_branch
      %96 = sbr.rel (0) target = $region45
    $region44: #{draw_forward.1} parent=1 // pred_region
      %s98 = ssub.s32 512, 512
      %99 = vsyncadd [#allocation9], %s98
      %s100 = sshll.u32 [#allocation10], 4
      %s101 = int_to_ptr.vmem [resolvable:$true] %s100
      %106 = dma.hbm_to_vmem [thread:$0]  %s10, 512, %s101, [#allocation9], 128, 128, 8
    $region45: #{draw_forward.1} parent=1 // pred_fallthru
      _
    // Predicated region
    $region46: #{draw_forward.1} parent=1 // pred_check
      _
    $region47: #{draw_forward.1} parent=1 // pred_check_branch
      %108 = sbr.rel (0) target = $region49
    $region48: #{draw_forward.1} parent=1 // pred_region
      %s110 = ssub.s32 16, 16
      %111 = vsyncadd [#allocation12], %s110
      %s113 = sshll.u32 [#allocation11], 4
      %s114 = int_to_ptr.vmem [resolvable:$true] %s113
      %116 = dma.hbm_to_vmem [thread:$0]  %s11, 16, %s114, [#allocation12]
    $region49: #{draw_forward.1} parent=1 // pred_fallthru
      _
    // Predicated region
    $region50: #{draw_forward.1} parent=1 // pred_check
      _
    $region51: #{draw_forward.1} parent=1 // pred_check_branch
      %118 = sbr.rel (0) target = $region53
    $region52: #{draw_forward.1} parent=1 // pred_region
      _
    $region53: #{draw_forward.1} parent=1 // pred_fallthru
      _
    // Predicated region
    $region54: #{draw_forward.1} parent=1 // pred_check
      _
    $region55: #{draw_forward.1} parent=1 // pred_check_branch
      %120 = sbr.rel (0) target = $region57
    $region56: #{draw_forward.1} parent=1 // pred_region
      %s122 = ssub.s32 512, 512
      %123 = vsyncadd [#allocation12], %s122
      %s124 = sshll.u32 [#allocation13], 4
      %s125 = int_to_ptr.vmem [resolvable:$true] %s124
      %130 = dma.hbm_to_vmem [thread:$0]  %s13, 512, %s125, [#allocation12], 128, 128, 8
    $region57: #{draw_forward.1} parent=1 // pred_fallthru
      _
    // Predicated region
    $region58: #{draw_forward.1} parent=1 // pred_check
      _
    $region59: #{draw_forward.1} parent=1 // pred_check_branch
      %132 = sbr.rel (0) target = $region61
    $region60: #{draw_forward.1} parent=1 // pred_region
      %s134 = ssub.s32 16, 16
      %135 = vsyncadd [#allocation15], %s134
      %s137 = sshll.u32 [#allocation14], 4
      %s138 = int_to_ptr.vmem [resolvable:$true] %s137
      %140 = dma.hbm_to_vmem [thread:$0]  %s14, 16, %s138, [#allocation15]
    $region61: #{draw_forward.1} parent=1 // pred_fallthru
      _
    // Predicated region
    $region62: #{draw_forward.1} parent=1 // pred_check
      _
    $region63: #{draw_forward.1} parent=1 // pred_check_branch
      %142 = sbr.rel (0) target = $region65
    $region64: #{draw_forward.1} parent=1 // pred_region
      %s144 = ssub.s32 512, 512
      %145 = vsyncadd [#allocation15], %s144
      %s146 = sshll.u32 [#allocation16], 4
      %s147 = int_to_ptr.vmem [resolvable:$true] %s146
      %152 = dma.hbm_to_vmem [thread:$0]  %s15, 512, %s147, [#allocation15], 128, 128, 8
    $region65: #{draw_forward.1} parent=1 // pred_fallthru
      _
    // Predicated region
    $region66: #{draw_forward.1} parent=1 // pred_check
      _
    $region67: #{draw_forward.1} parent=1 // pred_check_branch
      %154 = sbr.rel (0) target = $region69
    $region68: #{draw_forward.1} parent=1 // pred_region
      _
    $region69: #{draw_forward.1} parent=1 // pred_fallthru
      _
    // Predicated region
    $region70: #{draw_forward.1} parent=1 // pred_check
      _
    $region71: #{draw_forward.1} parent=1 // pred_check_branch
      %156 = sbr.rel (0) target = $region73
    $region72: #{draw_forward.1} parent=1 // pred_region
      _
    $region73: #{draw_forward.1} parent=1 // pred_fallthru
      _
    // Predicated region
    $region74: #{draw_forward.1} parent=1 // pred_check
      _
    $region75: #{draw_forward.1} parent=1 // pred_check_branch
      %158 = sbr.rel (0) target = $region77
    $region76: #{draw_forward.1} parent=1 // pred_region
      %s160 = ssub.s32 512, 512
      %161 = vsyncadd [#allocation18], %s160
      %s162 = sshll.u32 [#allocation17], 4
      %s163 = int_to_ptr.vmem [resolvable:$true] %s162
      %168 = dma.hbm_to_vmem [thread:$0]  %s18, 512, %s163, [#allocation18], 128, 128, 8
    $region77: #{draw_forward.1} parent=1 // pred_fallthru
      _
    // Predicated region
    $region78: #{draw_forward.1} parent=1 // pred_check
      _
    $region79: #{draw_forward.1} parent=1 // pred_check_branch
      %170 = sbr.rel (0) target = $region81
    $region80: #{draw_forward.1} parent=1 // pred_region
      %s172 = ssub.s32 256, 256
      %173 = vsyncadd [#allocation18], %s172
      %s174 = sshll.u32 [#allocation19], 4
      %s175 = int_to_ptr.vmem [resolvable:$true] %s174
      %180 = dma.hbm_to_vmem [thread:$0]  %s19, 256, %s175, [#allocation18], 128, 128, 8
    $region81: #{draw_forward.1} parent=1 // pred_fallthru
      _
    // Predicated region
    $region82: #{draw_forward.1} parent=1 // pred_check
      _
    $region83: #{draw_forward.1} parent=1 // pred_check_branch
      %182 = sbr.rel (0) target = $region85
    $region84: #{draw_forward.1} parent=1 // pred_region
      _
    $region85: #{draw_forward.1} parent=1 // pred_fallthru
      _
    // Predicated region
    $region86: #{draw_forward.1} parent=1 // pred_check
      _
    $region87: #{draw_forward.1} parent=1 // pred_check_branch
      %184 = sbr.rel (0) target = $region89
    $region88: #{draw_forward.1} parent=1 // pred_region
      _
    $region89: #{draw_forward.1} parent=1 // pred_fallthru
      _
    // Predicated region
    $region90: #{draw_forward.1} parent=1 // pred_check
      _
    $region91: #{draw_forward.1} parent=1 // pred_check_branch
      %186 = sbr.rel (0) target = $region93
    $region92: #{draw_forward.1} parent=1 // pred_region
      %187 = dma.done [#allocation3], 128
    $region93: #{draw_forward.1} parent=1 // pred_fallthru
      _
    // Predicated region
    $region94: #{draw_forward.1} parent=1 // pred_check
      _
    $region95: #{draw_forward.1} parent=1 // pred_check_branch
      %189 = sbr.rel (0) target = $region97
    $region96: #{draw_forward.1} parent=1 // pred_region
      %190 = dma.done [#allocation6], 16
    $region97: #{draw_forward.1} parent=1 // pred_fallthru
      _
    // Predicated region
    $region98: #{draw_forward.1} parent=1 // pred_check
      _
    $region99: #{draw_forward.1} parent=1 // pred_check_branch
      %192 = sbr.rel (0) target = $region101
    $region100: #{draw_forward.1} parent=1 // pred_region
      %193 = dma.done [#allocation6], 512
    $region101: #{draw_forward.1} parent=1 // pred_fallthru
      _
    // Predicated region
    $region102: #{draw_forward.1} parent=1 // pred_check
      _
    $region103: #{draw_forward.1} parent=1 // pred_check_branch
      %195 = sbr.rel (0) target = $region105
    $region104: #{draw_forward.1} parent=1 // pred_region
      %196 = dma.done [#allocation9], 16
    $region105: #{draw_forward.1} parent=1 // pred_fallthru
      _
    // Predicated region
    $region106: #{draw_forward.1} parent=1 // pred_check
      _
    $region107: #{draw_forward.1} parent=1 // pred_check_branch
      %198 = sbr.rel (0) target = $region109
    $region108: #{draw_forward.1} parent=1 // pred_region
      %199 = dma.done [#allocation9], 512
    $region109: #{draw_forward.1} parent=1 // pred_fallthru
      _
    // Predicated region
    $region110: #{draw_forward.1} parent=1 // pred_check
      _
    $region111: #{draw_forward.1} parent=1 // pred_check_branch
      %201 = sbr.rel (0) target = $region113
    $region112: #{draw_forward.1} parent=1 // pred_region
      %202 = dma.done [#allocation12], 16
    $region113: #{draw_forward.1} parent=1 // pred_fallthru
      _
    // Predicated region
    $region114: #{draw_forward.1} parent=1 // pred_check
      _
    $region115: #{draw_forward.1} parent=1 // pred_check_branch
      %204 = sbr.rel (0) target = $region117
    $region116: #{draw_forward.1} parent=1 // pred_region
      %205 = dma.done [#allocation12], 512
    $region117: #{draw_forward.1} parent=1 // pred_fallthru
      _
    // Predicated region
    $region118: #{draw_forward.1} parent=1 // pred_check
      _
    $region119: #{draw_forward.1} parent=1 // pred_check_branch
      %207 = sbr.rel (0) target = $region121
    $region120: #{draw_forward.1} parent=1 // pred_region
      %208 = dma.done [#allocation15], 16
    $region121: #{draw_forward.1} parent=1 // pred_fallthru
      _
    // Predicated region
    $region122: #{draw_forward.1} parent=1 // pred_check
      _
    $region123: #{draw_forward.1} parent=1 // pred_check_branch
      %210 = sbr.rel (0) target = $region125
    $region124: #{draw_forward.1} parent=1 // pred_region
      %211 = dma.done [#allocation15], 512
    $region125: #{draw_forward.1} parent=1 // pred_fallthru
      _
    // Predicated region
    $region126: #{draw_forward.1} parent=1 // pred_check
      _
    $region127: #{draw_forward.1} parent=1 // pred_check_branch
      %213 = sbr.rel (0) target = $region129
    $region128: #{draw_forward.1} parent=1 // pred_region
      %214 = dma.done [#allocation18], 512
    $region129: #{draw_forward.1} parent=1 // pred_fallthru
      _
    // Predicated region
    $region130: #{draw_forward.1} parent=1 // pred_check
      _
    $region131: #{draw_forward.1} parent=1 // pred_check_branch
      %216 = sbr.rel (0) target = $region133
    $region132: #{draw_forward.1} parent=1 // pred_region
      %217 = dma.done [#allocation18], 256
    $region133: #{draw_forward.1} parent=1 // pred_fallthru
      _
    %v218 = vlaneseq
    %v219 = vand.u32 %v218, 127
    %v220 = vcvt.s32.f32 %v219
    %v221 = vmul.f32 %v220, 0.125
    %v222 = vfloor.f32 %v221
    %v223 = vmul.f32 %v222, 8.0
    %v224 = vsub.f32 %v220, %v223
    %v225 = vld [vmem:[%s0] sm:$0xf]
    %v226 = vld [vmem:[%s2] sm:$0xf]
    %v227 = vld [vmem:[%s3] sm:$0xf]
    %v228 = vld [vmem:[%s4] sm:$0xff]
    %v229 = vld [vmem:[%s4 + $0x8] sm:$0xff]
    %v230 = vld [vmem:[%s4 + $0x10] sm:$0xff]
    %v231 = vld [vmem:[%s4 + $0x18] sm:$0xff]
    %v232 = vld [vmem:[#allocation5] sm:$0x1]
    %v234 = vlaneseq
    %v235 = vshrl.u32 %v234, 7
    %v236 = vsub.s32 0, %v235
    %v237 = vrot.slane %v232, %v236
    %vm239 = vcmask 261120
    %v241 = vsel %vm239, 0.0, 0
    %243 = vmatprep.subr.mxu0 0.0
    %244 = vmatpush1.msra.mxu0 0.0
    %245 = vmatprep.subr.mxu0 0.0
    %246 = vmatpush1.msra.mxu0 0.0
    %247 = vmatprep.subr.mxu0 0.0
    %248 = vmatpush1.msra.mxu0 0.0
    %249 = vmatprep.subr.mxu0 0.0
    %250 = vmatpush1.msra.mxu0 0.0
    %251 = vmatprep.subr.mxu0 0.0
    %252 = vmatpush1.msra.mxu0 0.0
    %253 = vmatprep.subr.mxu0 0.0
    %254 = vmatpush1.msra.mxu0 0.0
    %255 = vmatprep.subr.mxu0 0.0
    %256 = vmatpush1.msra.mxu0 0.0
    %257 = vmatprep.subr.mxu0 0.0
    %258 = vmatpush1.msra.mxu0 0.0
    %259 = vmatprep.subr.mxu0 0.0
    %260 = vmatpush1.msra.mxu0 0.0
    %261 = vmatprep.subr.mxu0 0.0
    %262 = vmatpush1.msra.mxu0 0.0
    %263 = vmatprep.subr.mxu0 0.0
    %264 = vmatpush1.msra.mxu0 0.0
    %265 = vmatprep.subr.mxu0 0.0
    %266 = vmatpush1.msra.mxu0 0.0
    %267 = vmatprep.subr.mxu0 0.0
    %268 = vmatpush1.msra.mxu0 %v231
    %269 = vmatprep.subr.mxu0 0.0
    %270 = vmatpush1.msra.mxu0 %v230
    %271 = vmatprep.subr.mxu0 0.0
    %272 = vmatpush1.msra.mxu0 %v229
    %273 = vmatprep.subr.mxu0 0.0
    %274 = vmatpush1.msra.mxu0 %v228
    %275 = vmatprep.subr.mxu0 0.0
    %276 = vmatpush2.msra.mxu0 0.0
    %277 = vmatprep.subr.mxu0 0.0
    %278 = vmatpush2.msra.mxu0 0.0
    %279 = vmatprep.subr.mxu0 0.0
    %280 = vmatpush2.msra.mxu0 0.0
    %281 = vmatprep.subr.mxu0 0.0
    %282 = vmatpush2.msra.mxu0 0.0
    %283 = vmatprep.subr.mxu0 0.0
    %284 = vmatpush2.msra.mxu0 0.0
    %285 = vmatprep.subr.mxu0 0.0
    %286 = vmatpush2.msra.mxu0 0.0
    %287 = vmatprep.subr.mxu0 0.0
    %288 = vmatpush2.msra.mxu0 0.0
    %289 = vmatprep.subr.mxu0 0.0
    %290 = vmatpush2.msra.mxu0 0.0
    %291 = vmatprep.subr.mxu0 0.0
    %292 = vmatpush2.msra.mxu0 0.0
    %293 = vmatprep.subr.mxu0 0.0
    %294 = vmatpush2.msra.mxu0 0.0
    %295 = vmatprep.subr.mxu0 0.0
    %296 = vmatpush2.msra.mxu0 0.0
    %297 = vmatprep.subr.mxu0 0.0
    %298 = vmatpush2.msra.mxu0 0.0
    %299 = vmatprep.subr.mxu0 0.0
    %300 = vmatpush2.msra.mxu0 0.0
    %301 = vmatprep.subr.mxu0 0.0
    %302 = vmatpush2.msra.mxu0 0.0
    %303 = vmatprep.subr.mxu0 0.0
    %304 = vmatpush2.msra.mxu0 0.0
    %305 = vmatprep.subr.mxu0 0.0
    %306 = vmatpush2.msra.mxu0 0.0
    %307 = vmatprep.mubr.f32.mxu0 0.0
    %308 = vmatmul.mubr.f32.gmra.mxu0 %v241
    %v309 = vpop.f32.mrf.mxu0
    %v310 = vadd.f32 %v237, %v309
    %v311 = vpop.f32.mrf.mxu0
    %312 = vdwg.mxu0
    %v313 = vadd.f32 %v310, 1.0
    %v314 = vmul.f32 %v313, 4.5
    %v315 = vmul.f32 %v310, 1.442695
    %v316 = vpow.pop %v315
    %v317 = vmul.f32 %v316, 2.3333333
    %v318 = vsub.f32 %v222, 2.5
    %320 = vset.pattern.permute.xlu0 3
    %321 = vperm.xlu0 %320, %v317
    %v322 = vpop.permute.xlu0 %321
    %v324 = vmul.f32 %v318, %v322
    %326 = vset.pattern.permute.xlu0 1
    %327 = vperm.xlu0 %326, %v314
    %v328 = vpop.permute.xlu0 %327
    %v330 = vadd.f32 %v324, %v328
    %v331 = vsub.f32 %v224, %v330
    %v332 = vmul.f32 %v316, 2.0
    %334 = vset.pattern.permute.xlu0 2
    %335 = vperm.xlu0 %334, %v332
    %v336 = vpop.permute.xlu0 %335
    %v338 = vrcp.pop %v336
    %v339 = vmul.f32 %v331, %v338
    %v340 = vsub.f32 0.0, %v339
    %v341 = vmul.f32 %v340, %v339
    %v342 = vmul.f32 %v341, 1.442695
    %v343 = vpow.pop %v342
    %v344 = vld [vmem:[#allocation16] sm:$0xff]
    %v345 = vld [vmem:[#allocation16 + $0x8] sm:$0xff]
    %v346 = vld [vmem:[#allocation16 + $0x10] sm:$0xff]
    %v347 = vld [vmem:[#allocation16 + $0x18] sm:$0xff]
    %v349 = vsel %vm239, %v343, 0
    %351 = vmatprep.subr.mxu0 0.0
    %352 = vmatpush1.msra.mxu0 0.0
    %353 = vmatprep.subr.mxu0 0.0
    %354 = vmatpush1.msra.mxu0 0.0
    %355 = vmatprep.subr.mxu0 0.0
    %356 = vmatpush1.msra.mxu0 0.0
    %357 = vmatprep.subr.mxu0 0.0
    %358 = vmatpush1.msra.mxu0 0.0
    %359 = vmatprep.subr.mxu0 0.0
    %360 = vmatpush1.msra.mxu0 0.0
    %361 = vmatprep.subr.mxu0 0.0
    %362 = vmatpush1.msra.mxu0 0.0
    %363 = vmatprep.subr.mxu0 0.0
    %364 = vmatpush1.msra.mxu0 0.0
    %365 = vmatprep.subr.mxu0 0.0
    %366 = vmatpush1.msra.mxu0 0.0
    %367 = vmatprep.subr.mxu0 0.0
    %368 = vmatpush1.msra.mxu0 0.0
    %369 = vmatprep.subr.mxu0 0.0
    %370 = vmatpush1.msra.mxu0 0.0
    %371 = vmatprep.subr.mxu0 0.0
    %372 = vmatpush1.msra.mxu0 0.0
    %373 = vmatprep.subr.mxu0 0.0
    %374 = vmatpush1.msra.mxu0 0.0
    %375 = vmatprep.subr.mxu0 0.0
    %376 = vmatpush1.msra.mxu0 %v347
    %377 = vmatprep.subr.mxu0 0.0
    %378 = vmatpush1.msra.mxu0 %v346
    %379 = vmatprep.subr.mxu0 0.0
    %380 = vmatpush1.msra.mxu0 %v345
    %381 = vmatprep.subr.mxu0 0.0
    %382 = vmatpush1.msra.mxu0 %v344
    %383 = vmatprep.subr.mxu0 0.0
    %384 = vmatpush2.msra.mxu0 0.0
    %385 = vmatprep.subr.mxu0 0.0
    %386 = vmatpush2.msra.mxu0 0.0
    %387 = vmatprep.subr.mxu0 0.0
    %388 = vmatpush2.msra.mxu0 0.0
    %389 = vmatprep.subr.mxu0 0.0
    %390 = vmatpush2.msra.mxu0 0.0
    %391 = vmatprep.subr.mxu0 0.0
    %392 = vmatpush2.msra.mxu0 0.0
    %393 = vmatprep.subr.mxu0 0.0
    %394 = vmatpush2.msra.mxu0 0.0
    %395 = vmatprep.subr.mxu0 0.0
    %396 = vmatpush2.msra.mxu0 0.0
    %397 = vmatprep.subr.mxu0 0.0
    %398 = vmatpush2.msra.mxu0 0.0
    %399 = vmatprep.subr.mxu0 0.0
    %400 = vmatpush2.msra.mxu0 0.0
    %401 = vmatprep.subr.mxu0 0.0
    %402 = vmatpush2.msra.mxu0 0.0
    %403 = vmatprep.subr.mxu0 0.0
    %404 = vmatpush2.msra.mxu0 0.0
    %405 = vmatprep.subr.mxu0 0.0
    %406 = vmatpush2.msra.mxu0 0.0
    %407 = vmatprep.subr.mxu0 0.0
    %408 = vmatpush2.msra.mxu0 0.0
    %409 = vmatprep.subr.mxu0 0.0
    %410 = vmatpush2.msra.mxu0 0.0
    %411 = vmatprep.subr.mxu0 0.0
    %412 = vmatpush2.msra.mxu0 0.0
    %413 = vmatprep.subr.mxu0 0.0
    %414 = vmatpush2.msra.mxu0 0.0
    %415 = vmatprep.mubr.f32.mxu0 0.0
    %416 = vmatmul.mubr.f32.gmra.mxu0 %v349
    %v417 = vpop.f32.mrf.mxu0
    %v418 = vadd.f32 1e-09, %v417
    %v419 = vpop.f32.mrf.mxu0
    %420 = vdwg.mxu0
    %v421 = vrcp.pop %v418
    %v422 = vmul.f32 %v343, %v421
    %423 = vset.pattern.permute.xlu0 0
    %424 = vperm.xlu0 %423, %v314
    %v425 = vpop.permute.xlu0 %424
    %v427 = vadd.f32 %v324, %v425
    %v428 = vsub.f32 %v224, %v427
    %v429 = vmul.f32 %v428, %v338
    %v430 = vsub.f32 0.0, %v429
    %v431 = vmul.f32 %v430, %v429
    %v432 = vmul.f32 %v431, 1.442695
    %v433 = vpow.pop %v432
    %v435 = vsel %vm239, %v433, 0
    %437 = vmatprep.subr.mxu0 0.0
    %438 = vmatpush1.msra.mxu0 0.0
    %439 = vmatprep.subr.mxu0 0.0
    %440 = vmatpush1.msra.mxu0 0.0
    %441 = vmatprep.subr.mxu0 0.0
    %442 = vmatpush1.msra.mxu0 0.0
    %443 = vmatprep.subr.mxu0 0.0
    %444 = vmatpush1.msra.mxu0 0.0
    %445 = vmatprep.subr.mxu0 0.0
    %446 = vmatpush1.msra.mxu0 0.0
    %447 = vmatprep.subr.mxu0 0.0
    %448 = vmatpush1.msra.mxu0 0.0
    %449 = vmatprep.subr.mxu0 0.0
    %450 = vmatpush1.msra.mxu0 0.0
    %451 = vmatprep.subr.mxu0 0.0
    %452 = vmatpush1.msra.mxu0 0.0
    %453 = vmatprep.subr.mxu0 0.0
    %454 = vmatpush1.msra.mxu0 0.0
    %455 = vmatprep.subr.mxu0 0.0
    %456 = vmatpush1.msra.mxu0 0.0
    %457 = vmatprep.subr.mxu0 0.0
    %458 = vmatpush1.msra.mxu0 0.0
    %459 = vmatprep.subr.mxu0 0.0
    %460 = vmatpush1.msra.mxu0 0.0
    %461 = vmatprep.subr.mxu0 0.0
    %462 = vmatpush1.msra.mxu0 %v347
    %463 = vmatprep.subr.mxu0 0.0
    %464 = vmatpush1.msra.mxu0 %v346
    %465 = vmatprep.subr.mxu0 0.0
    %466 = vmatpush1.msra.mxu0 %v345
    %467 = vmatprep.subr.mxu0 0.0
    %468 = vmatpush1.msra.mxu0 %v344
    %469 = vmatprep.subr.mxu0 0.0
    %470 = vmatpush2.msra.mxu0 0.0
    %471 = vmatprep.subr.mxu0 0.0
    %472 = vmatpush2.msra.mxu0 0.0
    %473 = vmatprep.subr.mxu0 0.0
    %474 = vmatpush2.msra.mxu0 0.0
    %475 = vmatprep.subr.mxu0 0.0
    %476 = vmatpush2.msra.mxu0 0.0
    %477 = vmatprep.subr.mxu0 0.0
    %478 = vmatpush2.msra.mxu0 0.0
    %479 = vmatprep.subr.mxu0 0.0
    %480 = vmatpush2.msra.mxu0 0.0
    %481 = vmatprep.subr.mxu0 0.0
    %482 = vmatpush2.msra.mxu0 0.0
    %483 = vmatprep.subr.mxu0 0.0
    %484 = vmatpush2.msra.mxu0 0.0
    %485 = vmatprep.subr.mxu0 0.0
    %486 = vmatpush2.msra.mxu0 0.0
    %487 = vmatprep.subr.mxu0 0.0
    %488 = vmatpush2.msra.mxu0 0.0
    %489 = vmatprep.subr.mxu0 0.0
    %490 = vmatpush2.msra.mxu0 0.0
    %491 = vmatprep.subr.mxu0 0.0
    %492 = vmatpush2.msra.mxu0 0.0
    %493 = vmatprep.subr.mxu0 0.0
    %494 = vmatpush2.msra.mxu0 0.0
    %495 = vmatprep.subr.mxu0 0.0
    %496 = vmatpush2.msra.mxu0 0.0
    %497 = vmatprep.subr.mxu0 0.0
    %498 = vmatpush2.msra.mxu0 0.0
    %499 = vmatprep.subr.mxu0 0.0
    %500 = vmatpush2.msra.mxu0 0.0
    %501 = vmatprep.mubr.f32.mxu0 0.0
    %502 = vmatmul.mubr.f32.gmra.mxu0 %v435
    %v503 = vpop.f32.mrf.mxu0
    %v504 = vadd.f32 1e-09, %v503
    %v505 = vpop.f32.mrf.mxu0
    %506 = vdwg.mxu0
    %v507 = vrcp.pop %v504
    %v508 = vmul.f32 %v433, %v507
    %v509 = vsub.f32 %v225, 0.5
    %v510 = vld [vmem:[%s16] sm:$0xff]
    %v511 = vld [vmem:[%s16 + $0x8] sm:$0xff]
    %v512 = vld [vmem:[%s16 + $0x10] sm:$0xff]
    %v513 = vld [vmem:[%s16 + $0x18] sm:$0xff]
    %v514 = vld [vmem:[%s16 + $0x20] sm:$0xff]
    %v515 = vld [vmem:[%s16 + $0x28] sm:$0xff]
    %v516 = vld [vmem:[%s16 + $0x30] sm:$0xff]
    %v517 = vld [vmem:[%s16 + $0x38] sm:$0xff]
    %v519 = vsel %vm239, %v422, 0
    %521 = vmatprep.subr.mxu0 0.0
    %522 = vmatpush1.msra.mxu0 0.0
    %523 = vmatprep.subr.mxu0 0.0
    %524 = vmatpush1.msra.mxu0 0.0
    %525 = vmatprep.subr.mxu0 0.0
    %526 = vmatpush1.msra.mxu0 0.0
    %527 = vmatprep.subr.mxu0 0.0
    %528 = vmatpush1.msra.mxu0 0.0
    %529 = vmatprep.subr.mxu0 0.0
    %530 = vmatpush1.msra.mxu0 0.0
    %531 = vmatprep.subr.mxu0 0.0
    %532 = vmatpush1.msra.mxu0 0.0
    %533 = vmatprep.subr.mxu0 0.0
    %534 = vmatpush1.msra.mxu0 0.0
    %535 = vmatprep.subr.mxu0 0.0
    %536 = vmatpush1.msra.mxu0 0.0
    %537 = vmatprep.subr.mxu0 0.0
    %538 = vmatpush1.msra.mxu0 0.0
    %539 = vmatprep.subr.mxu0 0.0
    %540 = vmatpush1.msra.mxu0 0.0
    %541 = vmatprep.subr.mxu0 0.0
    %542 = vmatpush1.msra.mxu0 0.0
    %543 = vmatprep.subr.mxu0 0.0
    %544 = vmatpush1.msra.mxu0 0.0
    %545 = vmatprep.subr.mxu0 %v517
    %546 = vmatpush1.msra.mxu0 %v516
    %547 = vmatprep.subr.mxu0 %v515
    %548 = vmatpush1.msra.mxu0 %v514
    %549 = vmatprep.subr.mxu0 %v513
    %550 = vmatpush1.msra.mxu0 %v512
    %551 = vmatprep.subr.mxu0 %v511
    %552 = vmatpush1.msra.mxu0 %v510
    %553 = vmatprep.subr.mxu0 0.0
    %554 = vmatpush2.msra.mxu0 0.0
    %555 = vmatprep.subr.mxu0 0.0
    %556 = vmatpush2.msra.mxu0 0.0
    %557 = vmatprep.subr.mxu0 0.0
    %558 = vmatpush2.msra.mxu0 0.0
    %559 = vmatprep.subr.mxu0 0.0
    %560 = vmatpush2.msra.mxu0 0.0
    %561 = vmatprep.subr.mxu0 0.0
    %562 = vmatpush2.msra.mxu0 0.0
    %563 = vmatprep.subr.mxu0 0.0
    %564 = vmatpush2.msra.mxu0 0.0
    %565 = vmatprep.subr.mxu0 0.0
    %566 = vmatpush2.msra.mxu0 0.0
    %567 = vmatprep.subr.mxu0 0.0
    %568 = vmatpush2.msra.mxu0 0.0
    %569 = vmatprep.subr.mxu0 0.0
    %570 = vmatpush2.msra.mxu0 0.0
    %571 = vmatprep.subr.mxu0 0.0
    %572 = vmatpush2.msra.mxu0 0.0
    %573 = vmatprep.subr.mxu0 0.0
    %574 = vmatpush2.msra.mxu0 0.0
    %575 = vmatprep.subr.mxu0 0.0
    %576 = vmatpush2.msra.mxu0 0.0
    %577 = vmatprep.subr.mxu0 0.0
    %578 = vmatpush2.msra.mxu0 0.0
    %579 = vmatprep.subr.mxu0 0.0
    %580 = vmatpush2.msra.mxu0 0.0
    %581 = vmatprep.subr.mxu0 0.0
    %582 = vmatpush2.msra.mxu0 0.0
    %583 = vmatprep.subr.mxu0 0.0
    %584 = vmatpush2.msra.mxu0 0.0
    %585 = vmatprep.mubr.f32.mxu0 0.0
    %586 = vmatmul.mubr.f32.gmra.mxu0 %v519
    %v587 = vpop.f32.mrf.mxu0
    %v588 = vadd.f32 0.0, %v587
    %v589 = vpop.f32.mrf.mxu0
    %v590 = vadd.f32 0.0, %v589
    %591 = vdwg.mxu0
    %593 = vrot.lane.b32.xlu0 %v508, 32
    %v594 = vpop.permute.xlu0 %593
    %596 = vrot.lane.b32.xlu0 %v508, 64
    %v597 = vpop.permute.xlu0 %596
    %599 = vrot.lane.b32.xlu0 %v508, 96
    %v600 = vpop.permute.xlu0 %599
    %v602 = vsel %vm239, %v508, %v594
    %vm603 = vcmask 523264
    %v604 = vsel %vm603, %v602, %v597
    %vm605 = vcmask 785408
    %v606 = vsel %vm605, %v604, %v600
    %608 = vrot.lane.b32.xlu0 %v225, 64
    %v609 = vpop.permute.xlu0 %608
    %v611 = vsel %vm603, %v225, %v609
    %v612 = vmul.f32 %v588, %v611
    %v613 = vmul.f32 %v590, %v611
    %v614 = vld [vmem:[%s17] sm:$0xff]
    %v615 = vld [vmem:[%s17 + $0x8] sm:$0xff]
    %v616 = vld [vmem:[%s17 + $0x10] sm:$0xff]
    %v617 = vld [vmem:[%s17 + $0x18] sm:$0xff]
    %v618 = vld [vmem:[%s17 + $0x20] sm:$0xff]
    %v619 = vld [vmem:[%s17 + $0x28] sm:$0xff]
    %v620 = vld [vmem:[%s17 + $0x30] sm:$0xff]
    %v621 = vld [vmem:[%s17 + $0x38] sm:$0xff]
    %v622 = vld [vmem:[%s17 + $0x40] sm:$0xff]
    %v623 = vld [vmem:[%s17 + $0x48] sm:$0xff]
    %v624 = vld [vmem:[%s17 + $0x50] sm:$0xff]
    %v625 = vld [vmem:[%s17 + $0x58] sm:$0xff]
    %v626 = vld [vmem:[%s17 + $0x60] sm:$0xff]
    %v627 = vld [vmem:[%s17 + $0x68] sm:$0xff]
    %v628 = vld [vmem:[%s17 + $0x70] sm:$0xff]
    %v629 = vld [vmem:[%s17 + $0x78] sm:$0xff]
    %v630 = vld [vmem:[%s17 + $0x80] sm:$0xff]
    %v631 = vld [vmem:[%s17 + $0x88] sm:$0xff]
    %v632 = vld [vmem:[%s17 + $0x90] sm:$0xff]
    %v633 = vld [vmem:[%s17 + $0x98] sm:$0xff]
    %v634 = vld [vmem:[%s17 + $0xa0] sm:$0xff]
    %v635 = vld [vmem:[%s17 + $0xa8] sm:$0xff]
    %v636 = vld [vmem:[%s17 + $0xb0] sm:$0xff]
    %v637 = vld [vmem:[%s17 + $0xb8] sm:$0xff]
    %v638 = vld [vmem:[%s17 + $0xc0] sm:$0xff]
    %v639 = vld [vmem:[%s17 + $0xc8] sm:$0xff]
    %v640 = vld [vmem:[%s17 + $0xd0] sm:$0xff]
    %v641 = vld [vmem:[%s17 + $0xd8] sm:$0xff]
    %v642 = vld [vmem:[%s17 + $0xe0] sm:$0xff]
    %v643 = vld [vmem:[%s17 + $0xe8] sm:$0xff]
    %v644 = vld [vmem:[%s17 + $0xf0] sm:$0xff]
    %v645 = vld [vmem:[%s17 + $0xf8] sm:$0xff]
    %646 = vmatprep.subr.mxu0 0.0
    %647 = vmatpush1.msra.mxu0 %v629
    %648 = vmatprep.subr.mxu0 0.0
    %649 = vmatpush1.msra.mxu0 %v628
    %650 = vmatprep.subr.mxu0 0.0
    %651 = vmatpush1.msra.mxu0 %v627
    %652 = vmatprep.subr.mxu0 0.0
    %653 = vmatpush1.msra.mxu0 %v626
    %654 = vmatprep.subr.mxu0 0.0
    %655 = vmatpush1.msra.mxu0 %v625
    %656 = vmatprep.subr.mxu0 0.0
    %657 = vmatpush1.msra.mxu0 %v624
    %658 = vmatprep.subr.mxu0 0.0
    %659 = vmatpush1.msra.mxu0 %v623
    %660 = vmatprep.subr.mxu0 0.0
    %661 = vmatpush1.msra.mxu0 %v622
    %662 = vmatprep.subr.mxu0 0.0
    %663 = vmatpush1.msra.mxu0 %v621
    %664 = vmatprep.subr.mxu0 0.0
    %665 = vmatpush1.msra.mxu0 %v620
    %666 = vmatprep.subr.mxu0 0.0
    %667 = vmatpush1.msra.mxu0 %v619
    %668 = vmatprep.subr.mxu0 0.0
    %669 = vmatpush1.msra.mxu0 %v618
    %670 = vmatprep.subr.mxu0 0.0
    %671 = vmatpush1.msra.mxu0 %v617
    %672 = vmatprep.subr.mxu0 0.0
    %673 = vmatpush1.msra.mxu0 %v616
    %674 = vmatprep.subr.mxu0 0.0
    %675 = vmatpush1.msra.mxu0 %v615
    %676 = vmatprep.subr.mxu0 0.0
    %677 = vmatpush1.msra.mxu0 %v614
    %678 = vmatprep.subr.mxu0 0.0
    %679 = vmatpush2.msra.mxu0 %v645
    %680 = vmatprep.subr.mxu0 0.0
    %681 = vmatpush2.msra.mxu0 %v644
    %682 = vmatprep.subr.mxu0 0.0
    %683 = vmatpush2.msra.mxu0 %v643
    %684 = vmatprep.subr.mxu0 0.0
    %685 = vmatpush2.msra.mxu0 %v642
    %686 = vmatprep.subr.mxu0 0.0
    %687 = vmatpush2.msra.mxu0 %v641
    %688 = vmatprep.subr.mxu0 0.0
    %689 = vmatpush2.msra.mxu0 %v640
    %690 = vmatprep.subr.mxu0 0.0
    %691 = vmatpush2.msra.mxu0 %v639
    %692 = vmatprep.subr.mxu0 0.0
    %693 = vmatpush2.msra.mxu0 %v638
    %694 = vmatprep.subr.mxu0 0.0
    %695 = vmatpush2.msra.mxu0 %v637
    %696 = vmatprep.subr.mxu0 0.0
    %697 = vmatpush2.msra.mxu0 %v636
    %698 = vmatprep.subr.mxu0 0.0
    %699 = vmatpush2.msra.mxu0 %v635
    %700 = vmatprep.subr.mxu0 0.0
    %701 = vmatpush2.msra.mxu0 %v634
    %702 = vmatprep.subr.mxu0 0.0
    %703 = vmatpush2.msra.mxu0 %v633
    %704 = vmatprep.subr.mxu0 0.0
    %705 = vmatpush2.msra.mxu0 %v632
    %706 = vmatprep.subr.mxu0 0.0
    %707 = vmatpush2.msra.mxu0 %v631
    %708 = vmatprep.subr.mxu0 0.0
    %709 = vmatpush2.msra.mxu0 %v630
    %710 = vmatprep.mubr.f32.mxu0 %v613
    %711 = vmatmul.mubr.f32.gmra.mxu0 %v612
    %v712 = vpop.f32.mrf.mxu0
    %v713 = vadd.f32 0.0, %v712
    %v714 = vpop.f32.mrf.mxu0
    %715 = vdwg.mxu0
    %v716 = vld [vmem:[#allocation17] sm:$0xff]
    %v717 = vld [vmem:[#allocation17 + $0x8] sm:$0xff]
    %v718 = vld [vmem:[#allocation17 + $0x10] sm:$0xff]
    %v719 = vld [vmem:[#allocation17 + $0x18] sm:$0xff]
    %v721 = vsel %vm239, %v713, 0
    %723 = vmatprep.subr.mxu0 0.0
    %724 = vmatpush1.msra.mxu0 0.0
    %725 = vmatprep.subr.mxu0 0.0
    %726 = vmatpush1.msra.mxu0 0.0
    %727 = vmatprep.subr.mxu0 0.0
    %728 = vmatpush1.msra.mxu0 0.0
    %729 = vmatprep.subr.mxu0 0.0
    %730 = vmatpush1.msra.mxu0 0.0
    %731 = vmatprep.subr.mxu0 0.0
    %732 = vmatpush1.msra.mxu0 0.0
    %733 = vmatprep.subr.mxu0 0.0
    %734 = vmatpush1.msra.mxu0 0.0
    %735 = vmatprep.subr.mxu0 0.0
    %736 = vmatpush1.msra.mxu0 0.0
    %737 = vmatprep.subr.mxu0 0.0
    %738 = vmatpush1.msra.mxu0 0.0
    %739 = vmatprep.subr.mxu0 0.0
    %740 = vmatpush1.msra.mxu0 0.0
    %741 = vmatprep.subr.mxu0 0.0
    %742 = vmatpush1.msra.mxu0 0.0
    %743 = vmatprep.subr.mxu0 0.0
    %744 = vmatpush1.msra.mxu0 0.0
    %745 = vmatprep.subr.mxu0 0.0
    %746 = vmatpush1.msra.mxu0 0.0
    %747 = vmatprep.subr.mxu0 0.0
    %748 = vmatpush1.msra.mxu0 %v719
    %749 = vmatprep.subr.mxu0 0.0
    %750 = vmatpush1.msra.mxu0 %v718
    %751 = vmatprep.subr.mxu0 0.0
    %752 = vmatpush1.msra.mxu0 %v717
    %753 = vmatprep.subr.mxu0 0.0
    %754 = vmatpush1.msra.mxu0 %v716
    %755 = vmatprep.subr.mxu0 0.0
    %756 = vmatpush2.msra.mxu0 0.0
    %757 = vmatprep.subr.mxu0 0.0
    %758 = vmatpush2.msra.mxu0 0.0
    %759 = vmatprep.subr.mxu0 0.0
    %760 = vmatpush2.msra.mxu0 0.0
    %761 = vmatprep.subr.mxu0 0.0
    %762 = vmatpush2.msra.mxu0 0.0
    %763 = vmatprep.subr.mxu0 0.0
    %764 = vmatpush2.msra.mxu0 0.0
    %765 = vmatprep.subr.mxu0 0.0
    %766 = vmatpush2.msra.mxu0 0.0
    %767 = vmatprep.subr.mxu0 0.0
    %768 = vmatpush2.msra.mxu0 0.0
    %769 = vmatprep.subr.mxu0 0.0
    %770 = vmatpush2.msra.mxu0 0.0
    %771 = vmatprep.subr.mxu0 0.0
    %772 = vmatpush2.msra.mxu0 0.0
    %773 = vmatprep.subr.mxu0 0.0
    %774 = vmatpush2.msra.mxu0 0.0
    %775 = vmatprep.subr.mxu0 0.0
    %776 = vmatpush2.msra.mxu0 0.0
    %777 = vmatprep.subr.mxu0 0.0
    %778 = vmatpush2.msra.mxu0 0.0
    %779 = vmatprep.subr.mxu0 0.0
    %780 = vmatpush2.msra.mxu0 0.0
    %781 = vmatprep.subr.mxu0 0.0
    %782 = vmatpush2.msra.mxu0 0.0
    %783 = vmatprep.subr.mxu0 0.0
    %784 = vmatpush2.msra.mxu0 0.0
    %785 = vmatprep.subr.mxu0 0.0
    %786 = vmatpush2.msra.mxu0 0.0
    %787 = vmatprep.mubr.f32.mxu0 0.0
    %788 = vmatmul.mubr.f32.gmra.mxu0 %v721
    %v789 = vpop.f32.mrf.mxu0
    %v790 = vadd.f32 0.0, %v789
    %v791 = vpop.f32.mrf.mxu0
    %792 = vdwg.mxu0
    %v793 = vmul.f32 %v790, %v606
    %795 = vrot.lane.b32.xlu0 %v509, 64
    %v796 = vpop.permute.xlu0 %795
    %v798 = vsel %vm603, %v509, %v796
    %v799 = vmul.f32 %v588, %v798
    %v800 = vmul.f32 %v590, %v798
    %801 = vmatprep.subr.mxu0 0.0
    %802 = vmatpush1.msra.mxu0 %v629
    %803 = vmatprep.subr.mxu0 0.0
    %804 = vmatpush1.msra.mxu0 %v628
    %805 = vmatprep.subr.mxu0 0.0
    %806 = vmatpush1.msra.mxu0 %v627
    %807 = vmatprep.subr.mxu0 0.0
    %808 = vmatpush1.msra.mxu0 %v626
    %809 = vmatprep.subr.mxu0 0.0
    %810 = vmatpush1.msra.mxu0 %v625
    %811 = vmatprep.subr.mxu0 0.0
    %812 = vmatpush1.msra.mxu0 %v624
    %813 = vmatprep.subr.mxu0 0.0
    %814 = vmatpush1.msra.mxu0 %v623
    %815 = vmatprep.subr.mxu0 0.0
    %816 = vmatpush1.msra.mxu0 %v622
    %817 = vmatprep.subr.mxu0 0.0
    %818 = vmatpush1.msra.mxu0 %v621
    %819 = vmatprep.subr.mxu0 0.0
    %820 = vmatpush1.msra.mxu0 %v620
    %821 = vmatprep.subr.mxu0 0.0
    %822 = vmatpush1.msra.mxu0 %v619
    %823 = vmatprep.subr.mxu0 0.0
    %824 = vmatpush1.msra.mxu0 %v618
    %825 = vmatprep.subr.mxu0 0.0
    %826 = vmatpush1.msra.mxu0 %v617
    %827 = vmatprep.subr.mxu0 0.0
    %828 = vmatpush1.msra.mxu0 %v616
    %829 = vmatprep.subr.mxu0 0.0
    %830 = vmatpush1.msra.mxu0 %v615
    %831 = vmatprep.subr.mxu0 0.0
    %832 = vmatpush1.msra.mxu0 %v614
    %833 = vmatprep.subr.mxu0 0.0
    %834 = vmatpush2.msra.mxu0 %v645
    %835 = vmatprep.subr.mxu0 0.0
    %836 = vmatpush2.msra.mxu0 %v644
    %837 = vmatprep.subr.mxu0 0.0
    %838 = vmatpush2.msra.mxu0 %v643
    %839 = vmatprep.subr.mxu0 0.0
    %840 = vmatpush2.msra.mxu0 %v642
    %841 = vmatprep.subr.mxu0 0.0
    %842 = vmatpush2.msra.mxu0 %v641
    %843 = vmatprep.subr.mxu0 0.0
    %844 = vmatpush2.msra.mxu0 %v640
    %845 = vmatprep.subr.mxu0 0.0
    %846 = vmatpush2.msra.mxu0 %v639
    %847 = vmatprep.subr.mxu0 0.0
    %848 = vmatpush2.msra.mxu0 %v638
    %849 = vmatprep.subr.mxu0 0.0
    %850 = vmatpush2.msra.mxu0 %v637
    %851 = vmatprep.subr.mxu0 0.0
    %852 = vmatpush2.msra.mxu0 %v636
    %853 = vmatprep.subr.mxu0 0.0
    %854 = vmatpush2.msra.mxu0 %v635
    %855 = vmatprep.subr.mxu0 0.0
    %856 = vmatpush2.msra.mxu0 %v634
    %857 = vmatprep.subr.mxu0 0.0
    %858 = vmatpush2.msra.mxu0 %v633
    %859 = vmatprep.subr.mxu0 0.0
    %860 = vmatpush2.msra.mxu0 %v632
    %861 = vmatprep.subr.mxu0 0.0
    %862 = vmatpush2.msra.mxu0 %v631
    %863 = vmatprep.subr.mxu0 0.0
    %864 = vmatpush2.msra.mxu0 %v630
    %865 = vmatprep.mubr.f32.mxu0 %v800
    %866 = vmatmul.mubr.f32.gmra.mxu0 %v799
    %v867 = vpop.f32.mrf.mxu0
    %v868 = vadd.f32 0.0, %v867
    %v869 = vpop.f32.mrf.mxu0
    %870 = vdwg.mxu0
    %v872 = vsel %vm239, %v868, 0
    %874 = vmatprep.subr.mxu0 0.0
    %875 = vmatpush1.msra.mxu0 0.0
    %876 = vmatprep.subr.mxu0 0.0
    %877 = vmatpush1.msra.mxu0 0.0
    %878 = vmatprep.subr.mxu0 0.0
    %879 = vmatpush1.msra.mxu0 0.0
    %880 = vmatprep.subr.mxu0 0.0
    %881 = vmatpush1.msra.mxu0 0.0
    %882 = vmatprep.subr.mxu0 0.0
    %883 = vmatpush1.msra.mxu0 0.0
    %884 = vmatprep.subr.mxu0 0.0
    %885 = vmatpush1.msra.mxu0 0.0
    %886 = vmatprep.subr.mxu0 0.0
    %887 = vmatpush1.msra.mxu0 0.0
    %888 = vmatprep.subr.mxu0 0.0
    %889 = vmatpush1.msra.mxu0 0.0
    %890 = vmatprep.subr.mxu0 0.0
    %891 = vmatpush1.msra.mxu0 0.0
    %892 = vmatprep.subr.mxu0 0.0
    %893 = vmatpush1.msra.mxu0 0.0
    %894 = vmatprep.subr.mxu0 0.0
    %895 = vmatpush1.msra.mxu0 0.0
    %896 = vmatprep.subr.mxu0 0.0
    %897 = vmatpush1.msra.mxu0 0.0
    %898 = vmatprep.subr.mxu0 0.0
    %899 = vmatpush1.msra.mxu0 %v719
    %900 = vmatprep.subr.mxu0 0.0
    %901 = vmatpush1.msra.mxu0 %v718
    %902 = vmatprep.subr.mxu0 0.0
    %903 = vmatpush1.msra.mxu0 %v717
    %904 = vmatprep.subr.mxu0 0.0
    %905 = vmatpush1.msra.mxu0 %v716
    %906 = vmatprep.subr.mxu0 0.0
    %907 = vmatpush2.msra.mxu0 0.0
    %908 = vmatprep.subr.mxu0 0.0
    %909 = vmatpush2.msra.mxu0 0.0
    %910 = vmatprep.subr.mxu0 0.0
    %911 = vmatpush2.msra.mxu0 0.0
    %912 = vmatprep.subr.mxu0 0.0
    %913 = vmatpush2.msra.mxu0 0.0
    %914 = vmatprep.subr.mxu0 0.0
    %915 = vmatpush2.msra.mxu0 0.0
    %916 = vmatprep.subr.mxu0 0.0
    %917 = vmatpush2.msra.mxu0 0.0
    %918 = vmatprep.subr.mxu0 0.0
    %919 = vmatpush2.msra.mxu0 0.0
    %920 = vmatprep.subr.mxu0 0.0
    %921 = vmatpush2.msra.mxu0 0.0
    %922 = vmatprep.subr.mxu0 0.0
    %923 = vmatpush2.msra.mxu0 0.0
    %924 = vmatprep.subr.mxu0 0.0
    %925 = vmatpush2.msra.mxu0 0.0
    %926 = vmatprep.subr.mxu0 0.0
    %927 = vmatpush2.msra.mxu0 0.0
    %928 = vmatprep.subr.mxu0 0.0
    %929 = vmatpush2.msra.mxu0 0.0
    %930 = vmatprep.subr.mxu0 0.0
    %931 = vmatpush2.msra.mxu0 0.0
    %932 = vmatprep.subr.mxu0 0.0
    %933 = vmatpush2.msra.mxu0 0.0
    %934 = vmatprep.subr.mxu0 0.0
    %935 = vmatpush2.msra.mxu0 0.0
    %936 = vmatprep.subr.mxu0 0.0
    %937 = vmatpush2.msra.mxu0 0.0
    %938 = vmatprep.mubr.f32.mxu0 0.0
    %939 = vmatmul.mubr.f32.gmra.mxu0 %v872
    %v940 = vpop.f32.mrf.mxu0
    %v941 = vadd.f32 0.0, %v940
    %v942 = vpop.f32.mrf.mxu0
    %943 = vdwg.mxu0
    %v944 = vmul.f32 %v941, %v606
    %v945 = vld [vmem:[%s6] sm:$0xff]
    %v946 = vld [vmem:[%s6 + $0x8] sm:$0xff]
    %v947 = vld [vmem:[%s6 + $0x10] sm:$0xff]
    %v948 = vld [vmem:[%s6 + $0x18] sm:$0xff]
    %v949 = vld [vmem:[%s6 + $0x20] sm:$0xff]
    %v950 = vld [vmem:[%s6 + $0x28] sm:$0xff]
    %v951 = vld [vmem:[%s6 + $0x30] sm:$0xff]
    %v952 = vld [vmem:[%s6 + $0x38] sm:$0xff]
    %v953 = vld [vmem:[%s6 + $0x40] sm:$0xff]
    %v954 = vld [vmem:[%s6 + $0x48] sm:$0xff]
    %v955 = vld [vmem:[%s6 + $0x50] sm:$0xff]
    %v956 = vld [vmem:[%s6 + $0x58] sm:$0xff]
    %v957 = vld [vmem:[%s6 + $0x60] sm:$0xff]
    %v958 = vld [vmem:[%s6 + $0x68] sm:$0xff]
    %v959 = vld [vmem:[%s6 + $0x70] sm:$0xff]
    %v960 = vld [vmem:[%s6 + $0x78] sm:$0xff]
    %v961 = vld [vmem:[%s6 + $0x80] sm:$0xff]
    %v962 = vld [vmem:[%s6 + $0x88] sm:$0xff]
    %v963 = vld [vmem:[%s6 + $0x90] sm:$0xff]
    %v964 = vld [vmem:[%s6 + $0x98] sm:$0xff]
    %v965 = vld [vmem:[%s6 + $0xa0] sm:$0xff]
    %v966 = vld [vmem:[%s6 + $0xa8] sm:$0xff]
    %v967 = vld [vmem:[%s6 + $0xb0] sm:$0xff]
    %v968 = vld [vmem:[%s6 + $0xb8] sm:$0xff]
    %v969 = vld [vmem:[%s6 + $0xc0] sm:$0xff]
    %v970 = vld [vmem:[%s6 + $0xc8] sm:$0xff]
    %v971 = vld [vmem:[%s6 + $0xd0] sm:$0xff]
    %v972 = vld [vmem:[%s6 + $0xd8] sm:$0xff]
    %v973 = vld [vmem:[%s6 + $0xe0] sm:$0xff]
    %v974 = vld [vmem:[%s6 + $0xe8] sm:$0xff]
    %v975 = vld [vmem:[%s6 + $0xf0] sm:$0xff]
    %v976 = vld [vmem:[%s6 + $0xf8] sm:$0xff]
    %977 = vmatprep.subr.mxu0 0.0
    %978 = vmatpush1.msra.mxu0 %v960
    %979 = vmatprep.subr.mxu0 0.0
    %980 = vmatpush1.msra.mxu0 %v959
    %981 = vmatprep.subr.mxu0 0.0
    %982 = vmatpush1.msra.mxu0 %v958
    %983 = vmatprep.subr.mxu0 0.0
    %984 = vmatpush1.msra.mxu0 %v957
    %985 = vmatprep.subr.mxu0 0.0
    %986 = vmatpush1.msra.mxu0 %v956
    %987 = vmatprep.subr.mxu0 0.0
    %988 = vmatpush1.msra.mxu0 %v955
    %989 = vmatprep.subr.mxu0 0.0
    %990 = vmatpush1.msra.mxu0 %v954
    %991 = vmatprep.subr.mxu0 0.0
    %992 = vmatpush1.msra.mxu0 %v953
    %993 = vmatprep.subr.mxu0 0.0
    %994 = vmatpush1.msra.mxu0 %v952
    %995 = vmatprep.subr.mxu0 0.0
    %996 = vmatpush1.msra.mxu0 %v951
    %997 = vmatprep.subr.mxu0 0.0
    %998 = vmatpush1.msra.mxu0 %v950
    %999 = vmatprep.subr.mxu0 0.0
    %1000 = vmatpush1.msra.mxu0 %v949
    %1001 = vmatprep.subr.mxu0 0.0
    %1002 = vmatpush1.msra.mxu0 %v948
    %1003 = vmatprep.subr.mxu0 0.0
    %1004 = vmatpush1.msra.mxu0 %v947
    %1005 = vmatprep.subr.mxu0 0.0
    %1006 = vmatpush1.msra.mxu0 %v946
    %1007 = vmatprep.subr.mxu0 0.0
    %1008 = vmatpush1.msra.mxu0 %v945
    %1009 = vmatprep.subr.mxu0 0.0
    %1010 = vmatpush2.msra.mxu0 %v976
    %1011 = vmatprep.subr.mxu0 0.0
    %1012 = vmatpush2.msra.mxu0 %v975
    %1013 = vmatprep.subr.mxu0 0.0
    %1014 = vmatpush2.msra.mxu0 %v974
    %1015 = vmatprep.subr.mxu0 0.0
    %1016 = vmatpush2.msra.mxu0 %v973
    %1017 = vmatprep.subr.mxu0 0.0
    %1018 = vmatpush2.msra.mxu0 %v972
    %1019 = vmatprep.subr.mxu0 0.0
    %1020 = vmatpush2.msra.mxu0 %v971
    %1021 = vmatprep.subr.mxu0 0.0
    %1022 = vmatpush2.msra.mxu0 %v970
    %1023 = vmatprep.subr.mxu0 0.0
    %1024 = vmatpush2.msra.mxu0 %v969
    %1025 = vmatprep.subr.mxu0 0.0
    %1026 = vmatpush2.msra.mxu0 %v968
    %1027 = vmatprep.subr.mxu0 0.0
    %1028 = vmatpush2.msra.mxu0 %v967
    %1029 = vmatprep.subr.mxu0 0.0
    %1030 = vmatpush2.msra.mxu0 %v966
    %1031 = vmatprep.subr.mxu0 0.0
    %1032 = vmatpush2.msra.mxu0 %v965
    %1033 = vmatprep.subr.mxu0 0.0
    %1034 = vmatpush2.msra.mxu0 %v964
    %1035 = vmatprep.subr.mxu0 0.0
    %1036 = vmatpush2.msra.mxu0 %v963
    %1037 = vmatprep.subr.mxu0 0.0
    %1038 = vmatpush2.msra.mxu0 %v962
    %1039 = vmatprep.subr.mxu0 0.0
    %1040 = vmatpush2.msra.mxu0 %v961
    %1041 = vmatprep.mubr.f32.mxu0 %v944
    %1042 = vmatmul.mubr.f32.gmra.mxu0 %v793
    %v1043 = vpop.f32.mrf.mxu0
    %v1044 = vadd.f32 0.0, %v1043
    %v1045 = vpop.f32.mrf.mxu0
    %1046 = vdwg.mxu0
    %1048 = vset.pattern.permute.xlu0 4
    %1049 = vperm.xlu0 %1048, %v316
    %v1050 = vpop.permute.xlu0 %1049
    %v1052 = vmul.f32 %v1050, %v1044
    %v1053 = vld [vmem:[%s7] sm:$0xff]
    %v1054 = vld [vmem:[%s7 + $0x8] sm:$0xff]
    %v1055 = vld [vmem:[%s7 + $0x10] sm:$0xff]
    %v1056 = vld [vmem:[%s7 + $0x18] sm:$0xff]
    %1057 = vmatprep.subr.mxu0 0.0
    %1058 = vmatpush1.msra.mxu0 0.0
    %1059 = vmatprep.subr.mxu0 0.0
    %1060 = vmatpush1.msra.mxu0 0.0
    %1061 = vmatprep.subr.mxu0 0.0
    %1062 = vmatpush1.msra.mxu0 0.0
    %1063 = vmatprep.subr.mxu0 0.0
    %1064 = vmatpush1.msra.mxu0 0.0
    %1065 = vmatprep.subr.mxu0 0.0
    %1066 = vmatpush1.msra.mxu0 0.0
    %1067 = vmatprep.subr.mxu0 0.0
    %1068 = vmatpush1.msra.mxu0 0.0
    %1069 = vmatprep.subr.mxu0 0.0
    %1070 = vmatpush1.msra.mxu0 0.0
    %1071 = vmatprep.subr.mxu0 0.0
    %1072 = vmatpush1.msra.mxu0 0.0
    %1073 = vmatprep.subr.mxu0 0.0
    %1074 = vmatpush1.msra.mxu0 0.0
    %1075 = vmatprep.subr.mxu0 0.0
    %1076 = vmatpush1.msra.mxu0 0.0
    %1077 = vmatprep.subr.mxu0 0.0
    %1078 = vmatpush1.msra.mxu0 0.0
    %1079 = vmatprep.subr.mxu0 0.0
    %1080 = vmatpush1.msra.mxu0 0.0
    %1081 = vmatprep.subr.mxu0 0.0
    %1082 = vmatpush1.msra.mxu0 %v1056
    %1083 = vmatprep.subr.mxu0 0.0
    %1084 = vmatpush1.msra.mxu0 %v1055
    %1085 = vmatprep.subr.mxu0 0.0
    %1086 = vmatpush1.msra.mxu0 %v1054
    %1087 = vmatprep.subr.mxu0 0.0
    %1088 = vmatpush1.msra.mxu0 %v1053
    %1089 = vmatprep.subr.mxu0 0.0
    %1090 = vmatpush2.msra.mxu0 0.0
    %1091 = vmatprep.subr.mxu0 0.0
    %1092 = vmatpush2.msra.mxu0 0.0
    %1093 = vmatprep.subr.mxu0 0.0
    %1094 = vmatpush2.msra.mxu0 0.0
    %1095 = vmatprep.subr.mxu0 0.0
    %1096 = vmatpush2.msra.mxu0 0.0
    %1097 = vmatprep.subr.mxu0 0.0
    %1098 = vmatpush2.msra.mxu0 0.0
    %1099 = vmatprep.subr.mxu0 0.0
    %1100 = vmatpush2.msra.mxu0 0.0
    %1101 = vmatprep.subr.mxu0 0.0
    %1102 = vmatpush2.msra.mxu0 0.0
    %1103 = vmatprep.subr.mxu0 0.0
    %1104 = vmatpush2.msra.mxu0 0.0
    %1105 = vmatprep.subr.mxu0 0.0
    %1106 = vmatpush2.msra.mxu0 0.0
    %1107 = vmatprep.subr.mxu0 0.0
    %1108 = vmatpush2.msra.mxu0 0.0
    %1109 = vmatprep.subr.mxu0 0.0
    %1110 = vmatpush2.msra.mxu0 0.0
    %1111 = vmatprep.subr.mxu0 0.0
    %1112 = vmatpush2.msra.mxu0 0.0
    %1113 = vmatprep.subr.mxu0 0.0
    %1114 = vmatpush2.msra.mxu0 0.0
    %1115 = vmatprep.subr.mxu0 0.0
    %1116 = vmatpush2.msra.mxu0 0.0
    %1117 = vmatprep.subr.mxu0 0.0
    %1118 = vmatpush2.msra.mxu0 0.0
    %1119 = vmatprep.subr.mxu0 0.0
    %1120 = vmatpush2.msra.mxu0 0.0
    %1121 = vmatprep.mubr.f32.mxu0 0.0
    %1122 = vmatmul.mubr.f32.gmra.mxu0 %v241
    %v1123 = vpop.f32.mrf.mxu0
    %v1124 = vadd.f32 0.0, %v1123
    %v1125 = vpop.f32.mrf.mxu0
    %1126 = vdwg.mxu0
    %v1127 = vadd.f32 %v1052, %v1124
    %v1128 = vld [vmem:[#allocation7] sm:$0xff]
    %v1129 = vld [vmem:[#allocation7 + $0x8] sm:$0xff]
    %v1130 = vld [vmem:[#allocation7 + $0x10] sm:$0xff]
    %v1131 = vld [vmem:[#allocation7 + $0x18] sm:$0xff]
    %1132 = vmatprep.subr.mxu0 0.0
    %1133 = vmatpush1.msra.mxu0 0.0
    %1134 = vmatprep.subr.mxu0 0.0
    %1135 = vmatpush1.msra.mxu0 0.0
    %1136 = vmatprep.subr.mxu0 0.0
    %1137 = vmatpush1.msra.mxu0 0.0
    %1138 = vmatprep.subr.mxu0 0.0
    %1139 = vmatpush1.msra.mxu0 0.0
    %1140 = vmatprep.subr.mxu0 0.0
    %1141 = vmatpush1.msra.mxu0 0.0
    %1142 = vmatprep.subr.mxu0 0.0
    %1143 = vmatpush1.msra.mxu0 0.0
    %1144 = vmatprep.subr.mxu0 0.0
    %1145 = vmatpush1.msra.mxu0 0.0
    %1146 = vmatprep.subr.mxu0 0.0
    %1147 = vmatpush1.msra.mxu0 0.0
    %1148 = vmatprep.subr.mxu0 0.0
    %1149 = vmatpush1.msra.mxu0 0.0
    %1150 = vmatprep.subr.mxu0 0.0
    %1151 = vmatpush1.msra.mxu0 0.0
    %1152 = vmatprep.subr.mxu0 0.0
    %1153 = vmatpush1.msra.mxu0 0.0
    %1154 = vmatprep.subr.mxu0 0.0
    %1155 = vmatpush1.msra.mxu0 0.0
    %1156 = vmatprep.subr.mxu0 0.0
    %1157 = vmatpush1.msra.mxu0 %v1131
    %1158 = vmatprep.subr.mxu0 0.0
    %1159 = vmatpush1.msra.mxu0 %v1130
    %1160 = vmatprep.subr.mxu0 0.0
    %1161 = vmatpush1.msra.mxu0 %v1129
    %1162 = vmatprep.subr.mxu0 0.0
    %1163 = vmatpush1.msra.mxu0 %v1128
    %1164 = vmatprep.subr.mxu0 0.0
    %1165 = vmatpush2.msra.mxu0 0.0
    %1166 = vmatprep.subr.mxu0 0.0
    %1167 = vmatpush2.msra.mxu0 0.0
    %1168 = vmatprep.subr.mxu0 0.0
    %1169 = vmatpush2.msra.mxu0 0.0
    %1170 = vmatprep.subr.mxu0 0.0
    %1171 = vmatpush2.msra.mxu0 0.0
    %1172 = vmatprep.subr.mxu0 0.0
    %1173 = vmatpush2.msra.mxu0 0.0
    %1174 = vmatprep.subr.mxu0 0.0
    %1175 = vmatpush2.msra.mxu0 0.0
    %1176 = vmatprep.subr.mxu0 0.0
    %1177 = vmatpush2.msra.mxu0 0.0
    %1178 = vmatprep.subr.mxu0 0.0
    %1179 = vmatpush2.msra.mxu0 0.0
    %1180 = vmatprep.subr.mxu0 0.0
    %1181 = vmatpush2.msra.mxu0 0.0
    %1182 = vmatprep.subr.mxu0 0.0
    %1183 = vmatpush2.msra.mxu0 0.0
    %1184 = vmatprep.subr.mxu0 0.0
    %1185 = vmatpush2.msra.mxu0 0.0
    %1186 = vmatprep.subr.mxu0 0.0
    %1187 = vmatpush2.msra.mxu0 0.0
    %1188 = vmatprep.subr.mxu0 0.0
    %1189 = vmatpush2.msra.mxu0 0.0
    %1190 = vmatprep.subr.mxu0 0.0
    %1191 = vmatpush2.msra.mxu0 0.0
    %1192 = vmatprep.subr.mxu0 0.0
    %1193 = vmatpush2.msra.mxu0 0.0
    %1194 = vmatprep.subr.mxu0 0.0
    %1195 = vmatpush2.msra.mxu0 0.0
    %1196 = vmatprep.mubr.f32.mxu0 0.0
    %1197 = vmatmul.mubr.f32.gmra.mxu0 %v241
    %v1198 = vpop.f32.mrf.mxu0
    %v1199 = vadd.f32 0.0, %v1198
    %v1200 = vpop.f32.mrf.mxu0
    %1201 = vdwg.mxu0
    %v1202 = vadd.f32 %v1127, %v1199
    %v1203 = vld [vmem:[#allocation8] sm:$0x1]
    %v1205 = vlaneseq
    %v1206 = vshrl.u32 %v1205, 7
    %v1207 = vsub.s32 0, %v1206
    %v1208 = vrot.slane %v1203, %v1207
    %v1210 = vadd.f32 %v1202, %v1208
    %v1211 = vxor.u32 %v1210, 2147483648
    %v1212 = vmul.f32 %v1211, 1.442695
    %v1213 = vpow.pop %v1212
    %v1214 = vadd.f32 %v1213, 1.0
    %v1215 = vrcp.pop %v1214
    %v1216 = vmul.f32 1.0, %v1215
    %v1217 = vtanh.pop %v1210
    %v1218 = vmul.f32 %v1216, 0.0
    %1220 = vrot.lane.b32.xlu0 %v1217, 64
    %v1221 = vpop.permute.xlu0 %1220
    %v1223 = vmul.f32 %v1216, %v1221
    %1225 = vrot.lane.b32.xlu0 %v1223, 32
    %v1226 = vpop.permute.xlu0 %1225
    %v1228 = vadd.f32 %v1218, %v1226
    %v1229 = vtanh.pop %v1228
    %1231 = vrot.lane.b32.xlu0 %v1229, 64
    %v1232 = vpop.permute.xlu0 %1231
    %v1234 = vmul.f32 %v1216, %v1232
    %1236 = vrot.lane.b32.xlu0 %v1234, 32
    %v1237 = vpop.permute.xlu0 %1236
    %vm1239 = vcmask 257024
    %v1240 = vsel %vm1239, %v1237, 0.0
    %1241 = vadd.xlane.f32.xlu0 %v1240
    %v1242 = vpop.xlane.xlu0 %1241
    %vm1243 = vcmask 1043456
    %v1244 = vsel %vm1243, %v1242, 0.0
    %v1245 = vrot.slane %v1244, 4
    %v1246 = vadd.f32 %v1244, %v1245
    %v1247 = vrot.slane %v1246, 2
    %v1248 = vadd.f32 %v1246, %v1247
    %v1249 = vrot.slane %v1248, 1
    %v1250 = vadd.f32 %v1248, %v1249
    %v1251 = vrcp.pop 128.0
    %v1252 = vmul.f32 %v1250, %v1251
    %v1253 = vsub.f32 %v1234, %v1252
    %v1254 = vmul.f32 %v1253, %v1253
    %1256 = vrot.lane.b32.xlu0 %v1254, 32
    %v1257 = vpop.permute.xlu0 %1256
    %v1259 = vsel %vm1239, %v1257, 0.0
    %1260 = vadd.xlane.f32.xlu0 %v1259
    %v1261 = vpop.xlane.xlu0 %1260
    %v1262 = vsel %vm1243, %v1261, 0.0
    %v1263 = vrot.slane %v1262, 4
    %v1264 = vadd.f32 %v1262, %v1263
    %v1265 = vrot.slane %v1264, 2
    %v1266 = vadd.f32 %v1264, %v1265
    %v1267 = vrot.slane %v1266, 1
    %v1268 = vadd.f32 %v1266, %v1267
    %v1269 = vrcp.pop 127.0
    %v1270 = vmul.f32 %v1268, %v1269
    %v1271 = vrsqrt.pop %v1270
    %v1272 = vmul.f32 %v1270, %v1271
    %vm1273 = vcmp.eq.f32.partialorder %v1270, inf
    %v1274 = vsel %vm1273, %v1270, %v1272
    %vm1275 = vcmp.eq.f32.partialorder %v1270, 0.0
    %v1276 = vand.u32 %v1270, 2147483648
    %v1277 = vsel %vm1275, %v1276, %v1274
    %v1278 = vsub.f32 0.0, %v1254
    %v1279 = vrcp.pop %v1270
    %v1280 = vmul.f32 0.5, %v1279
    %v1281 = vmul.f32 %v1278, %v1280
    %v1282 = vlog2.pop %v1270
    %v1283 = vmul.f32 %v1282, 0.6931472
    %v1284 = vmul.f32 %v1283, 0.5
    %v1285 = vadd.f32 %v1284, 0.9189385
    %v1286 = vsub.f32 %v1281, %v1285
    %vm1287 = vcmask 1044224
    %v1288 = vsel %vm1287, %v1286, -inf
    %1289 = vmax.xlane.f32.xlu0 %v1288
    %v1290 = vpop.xlane.xlu0 %1289
    %v1291 = vsel %vm1243, %v1290, -inf
    %v1292 = vrot.slane %v1291, 4
    %v1293 = vmax.f32 %v1291, %v1292
    %v1294 = vrot.slane %v1293, 2
    %v1295 = vmax.f32 %v1293, %v1294
    %v1296 = vrot.slane %v1295, 1
    %v1297 = vmax.f32 %v1295, %v1296
    %v1298 = vsub.f32 %v1286, %v1297
    %v1299 = vmul.f32 %v1298, 1.442695
    %v1300 = vpow.pop %v1299
    %1302 = vrot.lane.b32.xlu0 %v1300, 32
    %v1303 = vpop.permute.xlu0 %1302
    %v1305 = vsel %vm1239, %v1303, 0.0
    %1306 = vadd.xlane.f32.xlu0 %v1305
    %v1307 = vpop.xlane.xlu0 %1306
    %v1308 = vsel %vm1243, %v1307, 0.0
    %v1309 = vrot.slane %v1308, 4
    %v1310 = vadd.f32 %v1308, %v1309
    %v1311 = vrot.slane %v1310, 2
    %v1312 = vadd.f32 %v1310, %v1311
    %v1313 = vrot.slane %v1312, 1
    %v1314 = vadd.f32 %v1312, %v1313
    %v1315 = vlog2.pop %v1314
    %v1316 = vmul.f32 %v1315, 0.6931472
    %v1317 = vadd.f32 %v1297, %v1316
    %v1318 = vmul.f32 %v1297, 1.442695
    %v1319 = vpow.pop %v1318
    %v1320 = vmul.f32 %v1319, %v1314
    %v1321 = vadd.f32 %v1320, 1.0
    %v1322 = vlog2.pop %v1321
    %v1323 = vmul.f32 %v1322, 0.6931472
    %v1324 = vsub.f32 0.0, %v1297
    %v1325 = vmul.f32 %v1324, 1.442695
    %v1326 = vpow.pop %v1325
    %v1327 = vadd.f32 %v1326, %v1314
    %v1328 = vlog2.pop %v1327
    %v1329 = vmul.f32 %v1328, 0.6931472
    %v1330 = vadd.f32 %v1297, %v1329
    %vm1331 = vcmp.lt.f32.partialorder %v1297, 0.0
    %v1332 = vsel %vm1331, %v1323, %v1330
    %v1333 = vsub.f32 %v1332, %v1317
    %v1334 = vsub.f32 %v1333, %v226
    %v1335 = vmul.f32 %v1334, %v1237
    %1336 = vst.msk [vmem:[#allocation21] sm:$0xf] %vm1239, %v1334
    %v1337 = vld [vmem:[#allocation10] sm:$0xff]
    %v1338 = vld [vmem:[#allocation10 + $0x8] sm:$0xff]
    %v1339 = vld [vmem:[#allocation10 + $0x10] sm:$0xff]
    %v1340 = vld [vmem:[#allocation10 + $0x18] sm:$0xff]
    %v1341 = vld [vmem:[#allocation11] sm:$0x1]
    %v1343 = vlaneseq
    %v1344 = vshrl.u32 %v1343, 7
    %v1345 = vsub.s32 0, %v1344
    %v1346 = vrot.slane %v1341, %v1345
    %v1349 = vsel %vm239, %v1335, 0
    %1351 = vmatprep.subr.mxu0 0.0
    %1352 = vmatpush1.msra.mxu0 0.0
    %1353 = vmatprep.subr.mxu0 0.0
    %1354 = vmatpush1.msra.mxu0 0.0
    %1355 = vmatprep.subr.mxu0 0.0
    %1356 = vmatpush1.msra.mxu0 0.0
    %1357 = vmatprep.subr.mxu0 0.0
    %1358 = vmatpush1.msra.mxu0 0.0
    %1359 = vmatprep.subr.mxu0 0.0
    %1360 = vmatpush1.msra.mxu0 0.0
    %1361 = vmatprep.subr.mxu0 0.0
    %1362 = vmatpush1.msra.mxu0 0.0
    %1363 = vmatprep.subr.mxu0 0.0
    %1364 = vmatpush1.msra.mxu0 0.0
    %1365 = vmatprep.subr.mxu0 0.0
    %1366 = vmatpush1.msra.mxu0 0.0
    %1367 = vmatprep.subr.mxu0 0.0
    %1368 = vmatpush1.msra.mxu0 0.0
    %1369 = vmatprep.subr.mxu0 0.0
    %1370 = vmatpush1.msra.mxu0 0.0
    %1371 = vmatprep.subr.mxu0 0.0
    %1372 = vmatpush1.msra.mxu0 0.0
    %1373 = vmatprep.subr.mxu0 0.0
    %1374 = vmatpush1.msra.mxu0 0.0
    %1375 = vmatprep.subr.mxu0 0.0
    %1376 = vmatpush1.msra.mxu0 %v1340
    %1377 = vmatprep.subr.mxu0 0.0
    %1378 = vmatpush1.msra.mxu0 %v1339
    %1379 = vmatprep.subr.mxu0 0.0
    %1380 = vmatpush1.msra.mxu0 %v1338
    %1381 = vmatprep.subr.mxu0 0.0
    %1382 = vmatpush1.msra.mxu0 %v1337
    %1383 = vmatprep.subr.mxu0 0.0
    %1384 = vmatpush2.msra.mxu0 0.0
    %1385 = vmatprep.subr.mxu0 0.0
    %1386 = vmatpush2.msra.mxu0 0.0
    %1387 = vmatprep.subr.mxu0 0.0
    %1388 = vmatpush2.msra.mxu0 0.0
    %1389 = vmatprep.subr.mxu0 0.0
    %1390 = vmatpush2.msra.mxu0 0.0
    %1391 = vmatprep.subr.mxu0 0.0
    %1392 = vmatpush2.msra.mxu0 0.0
    %1393 = vmatprep.subr.mxu0 0.0
    %1394 = vmatpush2.msra.mxu0 0.0
    %1395 = vmatprep.subr.mxu0 0.0
    %1396 = vmatpush2.msra.mxu0 0.0
    %1397 = vmatprep.subr.mxu0 0.0
    %1398 = vmatpush2.msra.mxu0 0.0
    %1399 = vmatprep.subr.mxu0 0.0
    %1400 = vmatpush2.msra.mxu0 0.0
    %1401 = vmatprep.subr.mxu0 0.0
    %1402 = vmatpush2.msra.mxu0 0.0
    %1403 = vmatprep.subr.mxu0 0.0
    %1404 = vmatpush2.msra.mxu0 0.0
    %1405 = vmatprep.subr.mxu0 0.0
    %1406 = vmatpush2.msra.mxu0 0.0
    %1407 = vmatprep.subr.mxu0 0.0
    %1408 = vmatpush2.msra.mxu0 0.0
    %1409 = vmatprep.subr.mxu0 0.0
    %1410 = vmatpush2.msra.mxu0 0.0
    %1411 = vmatprep.subr.mxu0 0.0
    %1412 = vmatpush2.msra.mxu0 0.0
    %1413 = vmatprep.subr.mxu0 0.0
    %1414 = vmatpush2.msra.mxu0 0.0
    %1415 = vmatprep.mubr.f32.mxu0 0.0
    %1416 = vmatmul.mubr.f32.gmra.mxu0 %v1349
    %v1417 = vpop.f32.mrf.mxu0
    %v1418 = vadd.f32 %v1346, %v1417
    %v1419 = vpop.f32.mrf.mxu0
    %1420 = vdwg.mxu0
    %v1421 = vmul.f32 %v1418, 1.442695
    %v1422 = vpow.pop %v1421
    %v1423 = vld [vmem:[#allocation2] sm:$0xf]
    %1425 = vrot.lane.b32.xlu0 %v1423, 8
    %v1426 = vpop.permute.xlu0 %1425
    %v1428 = vmul.f32 %v1422, %v1426
    %1430 = vrot.lane.b32.xlu0 %v1428, 120
    %v1431 = vpop.permute.xlu0 %1430
    %v1433 = vadd.f32 %v1418, %v1431
    %v1434 = vld [vmem:[%s12] sm:$0xff]
    %v1435 = vld [vmem:[#allocation13] sm:$0xff]
    %v1436 = vld [vmem:[#allocation13 + $0x8] sm:$0xff]
    %v1437 = vld [vmem:[#allocation13 + $0x10] sm:$0xff]
    %v1438 = vld [vmem:[#allocation13 + $0x18] sm:$0xff]
    %1439 = vmatprep.subr.mxu0 0.0
    %1440 = vmatpush1.msra.mxu0 0.0
    %1441 = vmatprep.subr.mxu0 0.0
    %1442 = vmatpush1.msra.mxu0 0.0
    %1443 = vmatprep.subr.mxu0 0.0
    %1444 = vmatpush1.msra.mxu0 0.0
    %1445 = vmatprep.subr.mxu0 0.0
    %1446 = vmatpush1.msra.mxu0 0.0
    %1447 = vmatprep.subr.mxu0 0.0
    %1448 = vmatpush1.msra.mxu0 0.0
    %1449 = vmatprep.subr.mxu0 0.0
    %1450 = vmatpush1.msra.mxu0 0.0
    %1451 = vmatprep.subr.mxu0 0.0
    %1452 = vmatpush1.msra.mxu0 0.0
    %1453 = vmatprep.subr.mxu0 0.0
    %1454 = vmatpush1.msra.mxu0 0.0
    %1455 = vmatprep.subr.mxu0 0.0
    %1456 = vmatpush1.msra.mxu0 0.0
    %1457 = vmatprep.subr.mxu0 0.0
    %1458 = vmatpush1.msra.mxu0 0.0
    %1459 = vmatprep.subr.mxu0 0.0
    %1460 = vmatpush1.msra.mxu0 0.0
    %1461 = vmatprep.subr.mxu0 0.0
    %1462 = vmatpush1.msra.mxu0 0.0
    %1463 = vmatprep.subr.mxu0 0.0
    %1464 = vmatpush1.msra.mxu0 %v1438
    %1465 = vmatprep.subr.mxu0 0.0
    %1466 = vmatpush1.msra.mxu0 %v1437
    %1467 = vmatprep.subr.mxu0 0.0
    %1468 = vmatpush1.msra.mxu0 %v1436
    %1469 = vmatprep.subr.mxu0 0.0
    %1470 = vmatpush1.msra.mxu0 %v1435
    %1471 = vmatprep.subr.mxu0 0.0
    %1472 = vmatpush2.msra.mxu0 0.0
    %1473 = vmatprep.subr.mxu0 0.0
    %1474 = vmatpush2.msra.mxu0 0.0
    %1475 = vmatprep.subr.mxu0 0.0
    %1476 = vmatpush2.msra.mxu0 0.0
    %1477 = vmatprep.subr.mxu0 0.0
    %1478 = vmatpush2.msra.mxu0 0.0
    %1479 = vmatprep.subr.mxu0 0.0
    %1480 = vmatpush2.msra.mxu0 0.0
    %1481 = vmatprep.subr.mxu0 0.0
    %1482 = vmatpush2.msra.mxu0 0.0
    %1483 = vmatprep.subr.mxu0 0.0
    %1484 = vmatpush2.msra.mxu0 0.0
    %1485 = vmatprep.subr.mxu0 0.0
    %1486 = vmatpush2.msra.mxu0 0.0
    %1487 = vmatprep.subr.mxu0 0.0
    %1488 = vmatpush2.msra.mxu0 0.0
    %1489 = vmatprep.subr.mxu0 0.0
    %1490 = vmatpush2.msra.mxu0 0.0
    %1491 = vmatprep.subr.mxu0 0.0
    %1492 = vmatpush2.msra.mxu0 0.0
    %1493 = vmatprep.subr.mxu0 0.0
    %1494 = vmatpush2.msra.mxu0 0.0
    %1495 = vmatprep.subr.mxu0 0.0
    %1496 = vmatpush2.msra.mxu0 0.0
    %1497 = vmatprep.subr.mxu0 0.0
    %1498 = vmatpush2.msra.mxu0 0.0
    %1499 = vmatprep.subr.mxu0 0.0
    %1500 = vmatpush2.msra.mxu0 0.0
    %1501 = vmatprep.subr.mxu0 0.0
    %1502 = vmatpush2.msra.mxu0 0.0
    %1503 = vmatprep.mubr.f32.mxu0 0.0
    %1504 = vmatmul.mubr.f32.gmra.mxu0 %v241
    %v1505 = vpop.f32.mrf.mxu0
    %v1506 = vadd.f32 0.0, %v1505
    %v1507 = vpop.f32.mrf.mxu0
    %1508 = vdwg.mxu0
    %vm1509 = vcmask 64512
    %v1511 = vsel %vm1509, %v1433, 0
    %1513 = vmatprep.subr.mxu0 0.0
    %1514 = vmatpush1.msra.mxu0 0.0
    %1515 = vmatprep.subr.mxu0 0.0
    %1516 = vmatpush1.msra.mxu0 0.0
    %1517 = vmatprep.subr.mxu0 0.0
    %1518 = vmatpush1.msra.mxu0 0.0
    %1519 = vmatprep.subr.mxu0 0.0
    %1520 = vmatpush1.msra.mxu0 0.0
    %1521 = vmatprep.subr.mxu0 0.0
    %1522 = vmatpush1.msra.mxu0 0.0
    %1523 = vmatprep.subr.mxu0 0.0
    %1524 = vmatpush1.msra.mxu0 0.0
    %1525 = vmatprep.subr.mxu0 0.0
    %1526 = vmatpush1.msra.mxu0 0.0
    %1527 = vmatprep.subr.mxu0 0.0
    %1528 = vmatpush1.msra.mxu0 0.0
    %1529 = vmatprep.subr.mxu0 0.0
    %1530 = vmatpush1.msra.mxu0 0.0
    %1531 = vmatprep.subr.mxu0 0.0
    %1532 = vmatpush1.msra.mxu0 0.0
    %1533 = vmatprep.subr.mxu0 0.0
    %1534 = vmatpush1.msra.mxu0 0.0
    %1535 = vmatprep.subr.mxu0 0.0
    %1536 = vmatpush1.msra.mxu0 0.0
    %1537 = vmatprep.subr.mxu0 0.0
    %1538 = vmatpush1.msra.mxu0 0.0
    %1539 = vmatprep.subr.mxu0 0.0
    %1540 = vmatpush1.msra.mxu0 0.0
    %1541 = vmatprep.subr.mxu0 0.0
    %1542 = vmatpush1.msra.mxu0 0.0
    %1543 = vmatprep.subr.mxu0 0.0
    %1544 = vmatpush1.msra.mxu0 %v1434
    %1545 = vmatprep.subr.mxu0 0.0
    %1546 = vmatpush2.msra.mxu0 0.0
    %1547 = vmatprep.subr.mxu0 0.0
    %1548 = vmatpush2.msra.mxu0 0.0
    %1549 = vmatprep.subr.mxu0 0.0
    %1550 = vmatpush2.msra.mxu0 0.0
    %1551 = vmatprep.subr.mxu0 0.0
    %1552 = vmatpush2.msra.mxu0 0.0
    %1553 = vmatprep.subr.mxu0 0.0
    %1554 = vmatpush2.msra.mxu0 0.0
    %1555 = vmatprep.subr.mxu0 0.0
    %1556 = vmatpush2.msra.mxu0 0.0
    %1557 = vmatprep.subr.mxu0 0.0
    %1558 = vmatpush2.msra.mxu0 0.0
    %1559 = vmatprep.subr.mxu0 0.0
    %1560 = vmatpush2.msra.mxu0 0.0
    %1561 = vmatprep.subr.mxu0 0.0
    %1562 = vmatpush2.msra.mxu0 0.0
    %1563 = vmatprep.subr.mxu0 0.0
    %1564 = vmatpush2.msra.mxu0 0.0
    %1565 = vmatprep.subr.mxu0 0.0
    %1566 = vmatpush2.msra.mxu0 0.0
    %1567 = vmatprep.subr.mxu0 0.0
    %1568 = vmatpush2.msra.mxu0 0.0
    %1569 = vmatprep.subr.mxu0 0.0
    %1570 = vmatpush2.msra.mxu0 0.0
    %1571 = vmatprep.subr.mxu0 0.0
    %1572 = vmatpush2.msra.mxu0 0.0
    %1573 = vmatprep.subr.mxu0 0.0
    %1574 = vmatpush2.msra.mxu0 0.0
    %1575 = vmatprep.subr.mxu0 0.0
    %1576 = vmatpush2.msra.mxu0 0.0
    %1577 = vmatprep.mubr.f32.mxu0 0.0
    %1578 = vmatmul.mubr.f32.gmra.mxu0 %v1511
    %v1579 = vpop.f32.mrf.mxu0
    %v1580 = vadd.f32 %v1506, %v1579
    %v1581 = vpop.f32.mrf.mxu0
    %1582 = vdwg.mxu0
    %v1583 = vld [vmem:[#allocation14] sm:$0x1]
    %v1585 = vlaneseq
    %v1586 = vshrl.u32 %v1585, 7
    %v1587 = vsub.s32 0, %v1586
    %v1588 = vrot.slane %v1583, %v1587
    %v1590 = vadd.f32 %v1580, %v1588
    %v1591 = vxor.u32 %v1590, 2147483648
    %v1592 = vmul.f32 %v1591, 1.442695
    %v1593 = vpow.pop %v1592
    %v1594 = vadd.f32 %v1593, 1.0
    %v1595 = vrcp.pop %v1594
    %v1596 = vmul.f32 1.0, %v1595
    %v1597 = vtanh.pop %v1590
    %v1598 = vmul.f32 %v1596, 0.0
    %1600 = vrot.lane.b32.xlu0 %v1597, 64
    %v1601 = vpop.permute.xlu0 %1600
    %v1603 = vmul.f32 %v1596, %v1601
    %1605 = vrot.lane.b32.xlu0 %v1603, 32
    %v1606 = vpop.permute.xlu0 %1605
    %v1608 = vadd.f32 %v1598, %v1606
    %v1609 = vtanh.pop %v1608
    %1611 = vrot.lane.b32.xlu0 %v1609, 64
    %v1612 = vpop.permute.xlu0 %1611
    %v1614 = vmul.f32 %v1596, %v1612
    %1616 = vrot.lane.b32.xlu0 %v1614, 32
    %v1617 = vpop.permute.xlu0 %1616
    %v1619 = vsel %vm1239, %v1617, 0.0
    %1620 = vadd.xlane.f32.xlu0 %v1619
    %v1621 = vpop.xlane.xlu0 %1620
    %v1622 = vsel %vm1243, %v1621, 0.0
    %v1623 = vrot.slane %v1622, 4
    %v1624 = vadd.f32 %v1622, %v1623
    %v1625 = vrot.slane %v1624, 2
    %v1626 = vadd.f32 %v1624, %v1625
    %v1627 = vrot.slane %v1626, 1
    %v1628 = vadd.f32 %v1626, %v1627
    %v1629 = vmul.f32 %v1628, %v1251
    %v1630 = vsub.f32 %v1614, %v1629
    %v1631 = vmul.f32 %v1630, %v1630
    %1633 = vrot.lane.b32.xlu0 %v1631, 32
    %v1634 = vpop.permute.xlu0 %1633
    %v1636 = vsel %vm1239, %v1634, 0.0
    %1637 = vadd.xlane.f32.xlu0 %v1636
    %v1638 = vpop.xlane.xlu0 %1637
    %v1639 = vsel %vm1243, %v1638, 0.0
    %v1640 = vrot.slane %v1639, 4
    %v1641 = vadd.f32 %v1639, %v1640
    %v1642 = vrot.slane %v1641, 2
    %v1643 = vadd.f32 %v1641, %v1642
    %v1644 = vrot.slane %v1643, 1
    %v1645 = vadd.f32 %v1643, %v1644
    %v1646 = vmul.f32 %v1645, %v1269
    %v1647 = vrsqrt.pop %v1646
    %v1648 = vmul.f32 %v1646, %v1647
    %vm1649 = vcmp.eq.f32.partialorder %v1646, inf
    %v1650 = vsel %vm1649, %v1646, %v1648
    %vm1651 = vcmp.eq.f32.partialorder %v1646, 0.0
    %v1652 = vand.u32 %v1646, 2147483648
    %v1653 = vsel %vm1651, %v1652, %v1650
    %v1654 = vsub.f32 0.0, %v1631
    %v1655 = vrcp.pop %v1646
    %v1656 = vmul.f32 0.5, %v1655
    %v1657 = vmul.f32 %v1654, %v1656
    %v1658 = vlog2.pop %v1646
    %v1659 = vmul.f32 %v1658, 0.6931472
    %v1660 = vmul.f32 %v1659, 0.5
    %v1661 = vadd.f32 %v1660, 0.9189385
    %v1662 = vsub.f32 %v1657, %v1661
    %v1663 = vsel %vm1287, %v1662, -inf
    %1664 = vmax.xlane.f32.xlu0 %v1663
    %v1665 = vpop.xlane.xlu0 %1664
    %v1666 = vsel %vm1243, %v1665, -inf
    %v1667 = vrot.slane %v1666, 4
    %v1668 = vmax.f32 %v1666, %v1667
    %v1669 = vrot.slane %v1668, 2
    %v1670 = vmax.f32 %v1668, %v1669
    %v1671 = vrot.slane %v1670, 1
    %v1672 = vmax.f32 %v1670, %v1671
    %v1673 = vsub.f32 %v1662, %v1672
    %v1674 = vmul.f32 %v1673, 1.442695
    %v1675 = vpow.pop %v1674
    %1677 = vrot.lane.b32.xlu0 %v1675, 32
    %v1678 = vpop.permute.xlu0 %1677
    %v1680 = vsel %vm1239, %v1678, 0.0
    %1681 = vadd.xlane.f32.xlu0 %v1680
    %v1682 = vpop.xlane.xlu0 %1681
    %v1683 = vsel %vm1243, %v1682, 0.0
    %v1684 = vrot.slane %v1683, 4
    %v1685 = vadd.f32 %v1683, %v1684
    %v1686 = vrot.slane %v1685, 2
    %v1687 = vadd.f32 %v1685, %v1686
    %v1688 = vrot.slane %v1687, 1
    %v1689 = vadd.f32 %v1687, %v1688
    %v1690 = vlog2.pop %v1689
    %v1691 = vmul.f32 %v1690, 0.6931472
    %v1692 = vadd.f32 %v1672, %v1691
    %v1693 = vmul.f32 %v1672, 1.442695
    %v1694 = vpow.pop %v1693
    %v1695 = vmul.f32 %v1694, %v1689
    %v1696 = vadd.f32 %v1695, 1.0
    %v1697 = vlog2.pop %v1696
    %v1698 = vmul.f32 %v1697, 0.6931472
    %v1699 = vsub.f32 0.0, %v1672
    %v1700 = vmul.f32 %v1699, 1.442695
    %v1701 = vpow.pop %v1700
    %v1702 = vadd.f32 %v1701, %v1689
    %v1703 = vlog2.pop %v1702
    %v1704 = vmul.f32 %v1703, 0.6931472
    %v1705 = vadd.f32 %v1672, %v1704
    %vm1706 = vcmp.lt.f32.partialorder %v1672, 0.0
    %v1707 = vsel %vm1706, %v1698, %v1705
    %v1708 = vsub.f32 %v1707, %v1692
    %v1709 = vsub.f32 %v1708, %v227
    %v1710 = vmul.f32 %v1709, %v1617
    %1711 = vst.msk [vmem:[#allocation23] sm:$0xf] %vm1239, %v1709
    %vm1712 = vcmask 7168
    %v1713 = vsel %vm1712, %v1252, %v1277
    %vm1714 = vcmask 15360
    %v1715 = vsel %vm1714, %v1713, 128.0
    %vm1716 = vcmask 23552
    %v1717 = vsel %vm1716, %v1715, %v1332
    %vm1718 = vcmask 31744
    %v1719 = vsel %vm1718, %v1717, %v1629
    %vm1720 = vcmask 39936
    %v1721 = vsel %vm1720, %v1719, %v1653
    %vm1722 = vcmask 48128
    %v1723 = vsel %vm1722, %v1721, 128.0
    %vm1724 = vcmask 56320
    %v1725 = vsel %vm1724, %v1723, %v1707
    %vm1726 = vcmask 57344
    %1727 = vst.msk [vmem:[#allocation20] sm:$0x1] %vm1726, %v1725
    %v1728 = vld [vmem:[%s4] sm:$0xff]
    %v1729 = vld [vmem:[%s4 + $0x8] sm:$0xff]
    %v1730 = vld [vmem:[%s4 + $0x10] sm:$0xff]
    %v1731 = vld [vmem:[%s4 + $0x18] sm:$0xff]
    %v1732 = vld [vmem:[#allocation5] sm:$0x1]
    %v1734 = vlaneseq
    %v1735 = vshrl.u32 %v1734, 7
    %v1736 = vsub.s32 0, %v1735
    %v1737 = vrot.slane %v1732, %v1736
    %v1740 = vsel %vm239, %v1710, 0
    %1742 = vmatprep.subr.mxu0 0.0
    %1743 = vmatpush1.msra.mxu0 0.0
    %1744 = vmatprep.subr.mxu0 0.0
    %1745 = vmatpush1.msra.mxu0 0.0
    %1746 = vmatprep.subr.mxu0 0.0
    %1747 = vmatpush1.msra.mxu0 0.0
    %1748 = vmatprep.subr.mxu0 0.0
    %1749 = vmatpush1.msra.mxu0 0.0
    %1750 = vmatprep.subr.mxu0 0.0
    %1751 = vmatpush1.msra.mxu0 0.0
    %1752 = vmatprep.subr.mxu0 0.0
    %1753 = vmatpush1.msra.mxu0 0.0
    %1754 = vmatprep.subr.mxu0 0.0
    %1755 = vmatpush1.msra.mxu0 0.0
    %1756 = vmatprep.subr.mxu0 0.0
    %1757 = vmatpush1.msra.mxu0 0.0
    %1758 = vmatprep.subr.mxu0 0.0
    %1759 = vmatpush1.msra.mxu0 0.0
    %1760 = vmatprep.subr.mxu0 0.0
    %1761 = vmatpush1.msra.mxu0 0.0
    %1762 = vmatprep.subr.mxu0 0.0
    %1763 = vmatpush1.msra.mxu0 0.0
    %1764 = vmatprep.subr.mxu0 0.0
    %1765 = vmatpush1.msra.mxu0 0.0
    %1766 = vmatprep.subr.mxu0 0.0
    %1767 = vmatpush1.msra.mxu0 %v1731
    %1768 = vmatprep.subr.mxu0 0.0
    %1769 = vmatpush1.msra.mxu0 %v1730
    %1770 = vmatprep.subr.mxu0 0.0
    %1771 = vmatpush1.msra.mxu0 %v1729
    %1772 = vmatprep.subr.mxu0 0.0
    %1773 = vmatpush1.msra.mxu0 %v1728
    %1774 = vmatprep.subr.mxu0 0.0
    %1775 = vmatpush2.msra.mxu0 0.0
    %1776 = vmatprep.subr.mxu0 0.0
    %1777 = vmatpush2.msra.mxu0 0.0
    %1778 = vmatprep.subr.mxu0 0.0
    %1779 = vmatpush2.msra.mxu0 0.0
    %1780 = vmatprep.subr.mxu0 0.0
    %1781 = vmatpush2.msra.mxu0 0.0
    %1782 = vmatprep.subr.mxu0 0.0
    %1783 = vmatpush2.msra.mxu0 0.0
    %1784 = vmatprep.subr.mxu0 0.0
    %1785 = vmatpush2.msra.mxu0 0.0
    %1786 = vmatprep.subr.mxu0 0.0
    %1787 = vmatpush2.msra.mxu0 0.0
    %1788 = vmatprep.subr.mxu0 0.0
    %1789 = vmatpush2.msra.mxu0 0.0
    %1790 = vmatprep.subr.mxu0 0.0
    %1791 = vmatpush2.msra.mxu0 0.0
    %1792 = vmatprep.subr.mxu0 0.0
    %1793 = vmatpush2.msra.mxu0 0.0
    %1794 = vmatprep.subr.mxu0 0.0
    %1795 = vmatpush2.msra.mxu0 0.0
    %1796 = vmatprep.subr.mxu0 0.0
    %1797 = vmatpush2.msra.mxu0 0.0
    %1798 = vmatprep.subr.mxu0 0.0
    %1799 = vmatpush2.msra.mxu0 0.0
    %1800 = vmatprep.subr.mxu0 0.0
    %1801 = vmatpush2.msra.mxu0 0.0
    %1802 = vmatprep.subr.mxu0 0.0
    %1803 = vmatpush2.msra.mxu0 0.0
    %1804 = vmatprep.subr.mxu0 0.0
    %1805 = vmatpush2.msra.mxu0 0.0
    %1806 = vmatprep.mubr.f32.mxu0 0.0
    %1807 = vmatmul.mubr.f32.gmra.mxu0 %v1740
    %v1808 = vpop.f32.mrf.mxu0
    %v1809 = vadd.f32 %v1737, %v1808
    %v1810 = vpop.f32.mrf.mxu0
    %1811 = vdwg.mxu0
    %v1812 = vadd.f32 %v1809, 1.0
    %v1813 = vmul.f32 %v1812, 4.5
    %v1814 = vmul.f32 %v1809, 1.442695
    %v1815 = vpow.pop %v1814
    %v1816 = vmul.f32 %v1815, 2.3333333
    %1818 = vset.pattern.permute.xlu0 3
    %1819 = vperm.xlu0 %1818, %v1816
    %v1820 = vpop.permute.xlu0 %1819
    %v1822 = vmul.f32 %v318, %v1820
    %1824 = vset.pattern.permute.xlu0 1
    %1825 = vperm.xlu0 %1824, %v1813
    %v1826 = vpop.permute.xlu0 %1825
    %v1828 = vadd.f32 %v1822, %v1826
    %v1829 = vsub.f32 %v224, %v1828
    %v1830 = vmul.f32 %v1815, 2.0
    %1832 = vset.pattern.permute.xlu0 2
    %1833 = vperm.xlu0 %1832, %v1830
    %v1834 = vpop.permute.xlu0 %1833
    %v1836 = vrcp.pop %v1834
    %v1837 = vmul.f32 %v1829, %v1836
    %v1838 = vsub.f32 0.0, %v1837
    %v1839 = vmul.f32 %v1838, %v1837
    %v1840 = vmul.f32 %v1839, 1.442695
    %v1841 = vpow.pop %v1840
    %v1842 = vld [vmem:[#allocation16] sm:$0xff]
    %v1843 = vld [vmem:[#allocation16 + $0x8] sm:$0xff]
    %v1844 = vld [vmem:[#allocation16 + $0x10] sm:$0xff]
    %v1845 = vld [vmem:[#allocation16 + $0x18] sm:$0xff]
    %v1847 = vsel %vm239, %v1841, 0
    %1849 = vmatprep.subr.mxu0 0.0
    %1850 = vmatpush1.msra.mxu0 0.0
    %1851 = vmatprep.subr.mxu0 0.0
    %1852 = vmatpush1.msra.mxu0 0.0
    %1853 = vmatprep.subr.mxu0 0.0
    %1854 = vmatpush1.msra.mxu0 0.0
    %1855 = vmatprep.subr.mxu0 0.0
    %1856 = vmatpush1.msra.mxu0 0.0
    %1857 = vmatprep.subr.mxu0 0.0
    %1858 = vmatpush1.msra.mxu0 0.0
    %1859 = vmatprep.subr.mxu0 0.0
    %1860 = vmatpush1.msra.mxu0 0.0
    %1861 = vmatprep.subr.mxu0 0.0
    %1862 = vmatpush1.msra.mxu0 0.0
    %1863 = vmatprep.subr.mxu0 0.0
    %1864 = vmatpush1.msra.mxu0 0.0
    %1865 = vmatprep.subr.mxu0 0.0
    %1866 = vmatpush1.msra.mxu0 0.0
    %1867 = vmatprep.subr.mxu0 0.0
    %1868 = vmatpush1.msra.mxu0 0.0
    %1869 = vmatprep.subr.mxu0 0.0
    %1870 = vmatpush1.msra.mxu0 0.0
    %1871 = vmatprep.subr.mxu0 0.0
    %1872 = vmatpush1.msra.mxu0 0.0
    %1873 = vmatprep.subr.mxu0 0.0
    %1874 = vmatpush1.msra.mxu0 %v1845
    %1875 = vmatprep.subr.mxu0 0.0
    %1876 = vmatpush1.msra.mxu0 %v1844
    %1877 = vmatprep.subr.mxu0 0.0
    %1878 = vmatpush1.msra.mxu0 %v1843
    %1879 = vmatprep.subr.mxu0 0.0
    %1880 = vmatpush1.msra.mxu0 %v1842
    %1881 = vmatprep.subr.mxu0 0.0
    %1882 = vmatpush2.msra.mxu0 0.0
    %1883 = vmatprep.subr.mxu0 0.0
    %1884 = vmatpush2.msra.mxu0 0.0
    %1885 = vmatprep.subr.mxu0 0.0
    %1886 = vmatpush2.msra.mxu0 0.0
    %1887 = vmatprep.subr.mxu0 0.0
    %1888 = vmatpush2.msra.mxu0 0.0
    %1889 = vmatprep.subr.mxu0 0.0
    %1890 = vmatpush2.msra.mxu0 0.0
    %1891 = vmatprep.subr.mxu0 0.0
    %1892 = vmatpush2.msra.mxu0 0.0
    %1893 = vmatprep.subr.mxu0 0.0
    %1894 = vmatpush2.msra.mxu0 0.0
    %1895 = vmatprep.subr.mxu0 0.0
    %1896 = vmatpush2.msra.mxu0 0.0
    %1897 = vmatprep.subr.mxu0 0.0
    %1898 = vmatpush2.msra.mxu0 0.0
    %1899 = vmatprep.subr.mxu0 0.0
    %1900 = vmatpush2.msra.mxu0 0.0
    %1901 = vmatprep.subr.mxu0 0.0
    %1902 = vmatpush2.msra.mxu0 0.0
    %1903 = vmatprep.subr.mxu0 0.0
    %1904 = vmatpush2.msra.mxu0 0.0
    %1905 = vmatprep.subr.mxu0 0.0
    %1906 = vmatpush2.msra.mxu0 0.0
    %1907 = vmatprep.subr.mxu0 0.0
    %1908 = vmatpush2.msra.mxu0 0.0
    %1909 = vmatprep.subr.mxu0 0.0
    %1910 = vmatpush2.msra.mxu0 0.0
    %1911 = vmatprep.subr.mxu0 0.0
    %1912 = vmatpush2.msra.mxu0 0.0
    %1913 = vmatprep.mubr.f32.mxu0 0.0
    %1914 = vmatmul.mubr.f32.gmra.mxu0 %v1847
    %v1915 = vpop.f32.mrf.mxu0
    %v1916 = vadd.f32 1e-09, %v1915
    %v1917 = vpop.f32.mrf.mxu0
    %1918 = vdwg.mxu0
    %v1919 = vrcp.pop %v1916
    %v1920 = vmul.f32 %v1841, %v1919
    %1921 = vset.pattern.permute.xlu0 0
    %1922 = vperm.xlu0 %1921, %v1813
    %v1923 = vpop.permute.xlu0 %1922
    %v1925 = vadd.f32 %v1822, %v1923
    %v1926 = vsub.f32 %v224, %v1925
    %v1927 = vmul.f32 %v1926, %v1836
    %v1928 = vsub.f32 0.0, %v1927
    %v1929 = vmul.f32 %v1928, %v1927
    %v1930 = vmul.f32 %v1929, 1.442695
    %v1931 = vpow.pop %v1930
    %v1933 = vsel %vm239, %v1931, 0
    %1935 = vmatprep.subr.mxu0 0.0
    %1936 = vmatpush1.msra.mxu0 0.0
    %1937 = vmatprep.subr.mxu0 0.0
    %1938 = vmatpush1.msra.mxu0 0.0
    %1939 = vmatprep.subr.mxu0 0.0
    %1940 = vmatpush1.msra.mxu0 0.0
    %1941 = vmatprep.subr.mxu0 0.0
    %1942 = vmatpush1.msra.mxu0 0.0
    %1943 = vmatprep.subr.mxu0 0.0
    %1944 = vmatpush1.msra.mxu0 0.0
    %1945 = vmatprep.subr.mxu0 0.0
    %1946 = vmatpush1.msra.mxu0 0.0
    %1947 = vmatprep.subr.mxu0 0.0
    %1948 = vmatpush1.msra.mxu0 0.0
    %1949 = vmatprep.subr.mxu0 0.0
    %1950 = vmatpush1.msra.mxu0 0.0
    %1951 = vmatprep.subr.mxu0 0.0
    %1952 = vmatpush1.msra.mxu0 0.0
    %1953 = vmatprep.subr.mxu0 0.0
    %1954 = vmatpush1.msra.mxu0 0.0
    %1955 = vmatprep.subr.mxu0 0.0
    %1956 = vmatpush1.msra.mxu0 0.0
    %1957 = vmatprep.subr.mxu0 0.0
    %1958 = vmatpush1.msra.mxu0 0.0
    %1959 = vmatprep.subr.mxu0 0.0
    %1960 = vmatpush1.msra.mxu0 %v1845
    %1961 = vmatprep.subr.mxu0 0.0
    %1962 = vmatpush1.msra.mxu0 %v1844
    %1963 = vmatprep.subr.mxu0 0.0
    %1964 = vmatpush1.msra.mxu0 %v1843
    %1965 = vmatprep.subr.mxu0 0.0
    %1966 = vmatpush1.msra.mxu0 %v1842
    %1967 = vmatprep.subr.mxu0 0.0
    %1968 = vmatpush2.msra.mxu0 0.0
    %1969 = vmatprep.subr.mxu0 0.0
    %1970 = vmatpush2.msra.mxu0 0.0
    %1971 = vmatprep.subr.mxu0 0.0
    %1972 = vmatpush2.msra.mxu0 0.0
    %1973 = vmatprep.subr.mxu0 0.0
    %1974 = vmatpush2.msra.mxu0 0.0
    %1975 = vmatprep.subr.mxu0 0.0
    %1976 = vmatpush2.msra.mxu0 0.0
    %1977 = vmatprep.subr.mxu0 0.0
    %1978 = vmatpush2.msra.mxu0 0.0
    %1979 = vmatprep.subr.mxu0 0.0
    %1980 = vmatpush2.msra.mxu0 0.0
    %1981 = vmatprep.subr.mxu0 0.0
    %1982 = vmatpush2.msra.mxu0 0.0
    %1983 = vmatprep.subr.mxu0 0.0
    %1984 = vmatpush2.msra.mxu0 0.0
    %1985 = vmatprep.subr.mxu0 0.0
    %1986 = vmatpush2.msra.mxu0 0.0
    %1987 = vmatprep.subr.mxu0 0.0
    %1988 = vmatpush2.msra.mxu0 0.0
    %1989 = vmatprep.subr.mxu0 0.0
    %1990 = vmatpush2.msra.mxu0 0.0
    %1991 = vmatprep.subr.mxu0 0.0
    %1992 = vmatpush2.msra.mxu0 0.0
    %1993 = vmatprep.subr.mxu0 0.0
    %1994 = vmatpush2.msra.mxu0 0.0
    %1995 = vmatprep.subr.mxu0 0.0
    %1996 = vmatpush2.msra.mxu0 0.0
    %1997 = vmatprep.subr.mxu0 0.0
    %1998 = vmatpush2.msra.mxu0 0.0
    %1999 = vmatprep.mubr.f32.mxu0 0.0
    %2000 = vmatmul.mubr.f32.gmra.mxu0 %v1933
    %v2001 = vpop.f32.mrf.mxu0
    %v2002 = vadd.f32 1e-09, %v2001
    %v2003 = vpop.f32.mrf.mxu0
    %2004 = vdwg.mxu0
    %v2005 = vrcp.pop %v2002
    %v2006 = vmul.f32 %v1931, %v2005
    %v2007 = vld [vmem:[#allocation19] sm:$0xff]
    %v2008 = vld [vmem:[#allocation19 + $0x8] sm:$0xff]
    %2010 = vrot.lane.b32.xlu0 %v1809, 123
    %v2011 = vpop.permute.xlu0 %2010
    %vm2012 = vcmask 130048
    %v2013 = vsel %vm2012, %v2011, 0
    %2015 = vmatprep.subr.mxu0 0.0
    %2016 = vmatpush1.msra.mxu0 0.0
    %2017 = vmatprep.subr.mxu0 0.0
    %2018 = vmatpush1.msra.mxu0 0.0
    %2019 = vmatprep.subr.mxu0 0.0
    %2020 = vmatpush1.msra.mxu0 0.0
    %2021 = vmatprep.subr.mxu0 0.0
    %2022 = vmatpush1.msra.mxu0 0.0
    %2023 = vmatprep.subr.mxu0 0.0
    %2024 = vmatpush1.msra.mxu0 0.0
    %2025 = vmatprep.subr.mxu0 0.0
    %2026 = vmatpush1.msra.mxu0 0.0
    %2027 = vmatprep.subr.mxu0 0.0
    %2028 = vmatpush1.msra.mxu0 0.0
    %2029 = vmatprep.subr.mxu0 0.0
    %2030 = vmatpush1.msra.mxu0 0.0
    %2031 = vmatprep.subr.mxu0 0.0
    %2032 = vmatpush1.msra.mxu0 0.0
    %2033 = vmatprep.subr.mxu0 0.0
    %2034 = vmatpush1.msra.mxu0 0.0
    %2035 = vmatprep.subr.mxu0 0.0
    %2036 = vmatpush1.msra.mxu0 0.0
    %2037 = vmatprep.subr.mxu0 0.0
    %2038 = vmatpush1.msra.mxu0 0.0
    %2039 = vmatprep.subr.mxu0 0.0
    %2040 = vmatpush1.msra.mxu0 0.0
    %2041 = vmatprep.subr.mxu0 0.0
    %2042 = vmatpush1.msra.mxu0 0.0
    %2043 = vmatprep.subr.mxu0 0.0
    %2044 = vmatpush1.msra.mxu0 %v2008
    %2045 = vmatprep.subr.mxu0 0.0
    %2046 = vmatpush1.msra.mxu0 %v2007
    %2047 = vmatprep.subr.mxu0 0.0
    %2048 = vmatpush2.msra.mxu0 0.0
    %2049 = vmatprep.subr.mxu0 0.0
    %2050 = vmatpush2.msra.mxu0 0.0
    %2051 = vmatprep.subr.mxu0 0.0
    %2052 = vmatpush2.msra.mxu0 0.0
    %2053 = vmatprep.subr.mxu0 0.0
    %2054 = vmatpush2.msra.mxu0 0.0
    %2055 = vmatprep.subr.mxu0 0.0
    %2056 = vmatpush2.msra.mxu0 0.0
    %2057 = vmatprep.subr.mxu0 0.0
    %2058 = vmatpush2.msra.mxu0 0.0
    %2059 = vmatprep.subr.mxu0 0.0
    %2060 = vmatpush2.msra.mxu0 0.0
    %2061 = vmatprep.subr.mxu0 0.0
    %2062 = vmatpush2.msra.mxu0 0.0
    %2063 = vmatprep.subr.mxu0 0.0
    %2064 = vmatpush2.msra.mxu0 0.0
    %2065 = vmatprep.subr.mxu0 0.0
    %2066 = vmatpush2.msra.mxu0 0.0
    %2067 = vmatprep.subr.mxu0 0.0
    %2068 = vmatpush2.msra.mxu0 0.0
    %2069 = vmatprep.subr.mxu0 0.0
    %2070 = vmatpush2.msra.mxu0 0.0
    %2071 = vmatprep.subr.mxu0 0.0
    %2072 = vmatpush2.msra.mxu0 0.0
    %2073 = vmatprep.subr.mxu0 0.0
    %2074 = vmatpush2.msra.mxu0 0.0
    %2075 = vmatprep.subr.mxu0 0.0
    %2076 = vmatpush2.msra.mxu0 0.0
    %2077 = vmatprep.subr.mxu0 0.0
    %2078 = vmatpush2.msra.mxu0 0.0
    %2079 = vmatprep.mubr.f32.mxu0 0.0
    %2080 = vmatmul.mubr.f32.gmra.mxu0 %v2013
    %v2081 = vpop.f32.mrf.mxu0
    %v2082 = vadd.f32 0.0, %v2081
    %v2083 = vpop.f32.mrf.mxu0
    %2084 = vdwg.mxu0
    %2086 = vrot.lane.b32.xlu0 %v2006, 32
    %v2087 = vpop.permute.xlu0 %2086
    %2089 = vrot.lane.b32.xlu0 %v2006, 64
    %v2090 = vpop.permute.xlu0 %2089
    %2092 = vrot.lane.b32.xlu0 %v2006, 96
    %v2093 = vpop.permute.xlu0 %2092
    %v2095 = vsel %vm239, %v2006, %v2087
    %v2096 = vsel %vm603, %v2095, %v2090
    %v2097 = vsel %vm605, %v2096, %v2093
    %v2098 = vmul.f32 %v2082, %v2097
    %v2099 = vld [vmem:[%s20] sm:$0xff]
    %v2100 = vld [vmem:[%s20 + $0x8] sm:$0xff]
    %v2101 = vld [vmem:[%s20 + $0x10] sm:$0xff]
    %v2102 = vld [vmem:[%s20 + $0x18] sm:$0xff]
    %v2103 = vld [vmem:[%s20 + $0x20] sm:$0xff]
    %v2104 = vld [vmem:[%s20 + $0x28] sm:$0xff]
    %v2105 = vld [vmem:[%s20 + $0x30] sm:$0xff]
    %v2106 = vld [vmem:[%s20 + $0x38] sm:$0xff]
    %v2107 = vld [vmem:[%s20 + $0x40] sm:$0xff]
    %v2108 = vld [vmem:[%s20 + $0x48] sm:$0xff]
    %v2109 = vld [vmem:[%s20 + $0x50] sm:$0xff]
    %v2110 = vld [vmem:[%s20 + $0x58] sm:$0xff]
    %v2111 = vld [vmem:[%s20 + $0x60] sm:$0xff]
    %v2112 = vld [vmem:[%s20 + $0x68] sm:$0xff]
    %v2113 = vld [vmem:[%s20 + $0x70] sm:$0xff]
    %v2114 = vld [vmem:[%s20 + $0x78] sm:$0xff]
    %2115 = vmatprep.subr.mxu0 0.0
    %2116 = vmatpush1.msra.mxu0 %v2114
    %2117 = vmatprep.subr.mxu0 0.0
    %2118 = vmatpush1.msra.mxu0 %v2113
    %2119 = vmatprep.subr.mxu0 0.0
    %2120 = vmatpush1.msra.mxu0 %v2112
    %2121 = vmatprep.subr.mxu0 0.0
    %2122 = vmatpush1.msra.mxu0 %v2111
    %2123 = vmatprep.subr.mxu0 0.0
    %2124 = vmatpush1.msra.mxu0 %v2110
    %2125 = vmatprep.subr.mxu0 0.0
    %2126 = vmatpush1.msra.mxu0 %v2109
    %2127 = vmatprep.subr.mxu0 0.0
    %2128 = vmatpush1.msra.mxu0 %v2108
    %2129 = vmatprep.subr.mxu0 0.0
    %2130 = vmatpush1.msra.mxu0 %v2107
    %2131 = vmatprep.subr.mxu0 0.0
    %2132 = vmatpush1.msra.mxu0 %v2106
    %2133 = vmatprep.subr.mxu0 0.0
    %2134 = vmatpush1.msra.mxu0 %v2105
    %2135 = vmatprep.subr.mxu0 0.0
    %2136 = vmatpush1.msra.mxu0 %v2104
    %2137 = vmatprep.subr.mxu0 0.0
    %2138 = vmatpush1.msra.mxu0 %v2103
    %2139 = vmatprep.subr.mxu0 0.0
    %2140 = vmatpush1.msra.mxu0 %v2102
    %2141 = vmatprep.subr.mxu0 0.0
    %2142 = vmatpush1.msra.mxu0 %v2101
    %2143 = vmatprep.subr.mxu0 0.0
    %2144 = vmatpush1.msra.mxu0 %v2100
    %2145 = vmatprep.subr.mxu0 0.0
    %2146 = vmatpush1.msra.mxu0 %v2099
    %2147 = vmatprep.subr.mxu0 0.0
    %2148 = vmatpush2.msra.mxu0 0.0
    %2149 = vmatprep.subr.mxu0 0.0
    %2150 = vmatpush2.msra.mxu0 0.0
    %2151 = vmatprep.subr.mxu0 0.0
    %2152 = vmatpush2.msra.mxu0 0.0
    %2153 = vmatprep.subr.mxu0 0.0
    %2154 = vmatpush2.msra.mxu0 0.0
    %2155 = vmatprep.subr.mxu0 0.0
    %2156 = vmatpush2.msra.mxu0 0.0
    %2157 = vmatprep.subr.mxu0 0.0
    %2158 = vmatpush2.msra.mxu0 0.0
    %2159 = vmatprep.subr.mxu0 0.0
    %2160 = vmatpush2.msra.mxu0 0.0
    %2161 = vmatprep.subr.mxu0 0.0
    %2162 = vmatpush2.msra.mxu0 0.0
    %2163 = vmatprep.subr.mxu0 0.0
    %2164 = vmatpush2.msra.mxu0 0.0
    %2165 = vmatprep.subr.mxu0 0.0
    %2166 = vmatpush2.msra.mxu0 0.0
    %2167 = vmatprep.subr.mxu0 0.0
    %2168 = vmatpush2.msra.mxu0 0.0
    %2169 = vmatprep.subr.mxu0 0.0
    %2170 = vmatpush2.msra.mxu0 0.0
    %2171 = vmatprep.subr.mxu0 0.0
    %2172 = vmatpush2.msra.mxu0 0.0
    %2173 = vmatprep.subr.mxu0 0.0
    %2174 = vmatpush2.msra.mxu0 0.0
    %2175 = vmatprep.subr.mxu0 0.0
    %2176 = vmatpush2.msra.mxu0 0.0
    %2177 = vmatprep.subr.mxu0 0.0
    %2178 = vmatpush2.msra.mxu0 0.0
    %2179 = vmatprep.mubr.f32.mxu0 0.0
    %2180 = vmatmul.mubr.f32.gmra.mxu0 %v2098
    %v2181 = vpop.f32.mrf.mxu0
    %v2182 = vadd.f32 0.0, %v2181
    %v2183 = vpop.f32.mrf.mxu0
    %2184 = vdwg.mxu0
    %v2185 = vld [vmem:[%s21] sm:$0xff]
    %v2186 = vld [vmem:[%s21 + $0x8] sm:$0xff]
    %v2187 = vld [vmem:[%s21 + $0x10] sm:$0xff]
    %v2188 = vld [vmem:[%s21 + $0x18] sm:$0xff]
    %v2189 = vld [vmem:[%s21 + $0x20] sm:$0xff]
    %v2190 = vld [vmem:[%s21 + $0x28] sm:$0xff]
    %v2191 = vld [vmem:[%s21 + $0x30] sm:$0xff]
    %v2192 = vld [vmem:[%s21 + $0x38] sm:$0xff]
    %v2194 = vsel %vm239, %v2182, 0
    %2196 = vmatprep.subr.mxu0 0.0
    %2197 = vmatpush1.msra.mxu0 0.0
    %2198 = vmatprep.subr.mxu0 0.0
    %2199 = vmatpush1.msra.mxu0 0.0
    %2200 = vmatprep.subr.mxu0 0.0
    %2201 = vmatpush1.msra.mxu0 0.0
    %2202 = vmatprep.subr.mxu0 0.0
    %2203 = vmatpush1.msra.mxu0 0.0
    %2204 = vmatprep.subr.mxu0 0.0
    %2205 = vmatpush1.msra.mxu0 0.0
    %2206 = vmatprep.subr.mxu0 0.0
    %2207 = vmatpush1.msra.mxu0 0.0
    %2208 = vmatprep.subr.mxu0 0.0
    %2209 = vmatpush1.msra.mxu0 0.0
    %2210 = vmatprep.subr.mxu0 0.0
    %2211 = vmatpush1.msra.mxu0 0.0
    %2212 = vmatprep.subr.mxu0 0.0
    %2213 = vmatpush1.msra.mxu0 0.0
    %2214 = vmatprep.subr.mxu0 0.0
    %2215 = vmatpush1.msra.mxu0 0.0
    %2216 = vmatprep.subr.mxu0 0.0
    %2217 = vmatpush1.msra.mxu0 0.0
    %2218 = vmatprep.subr.mxu0 0.0
    %2219 = vmatpush1.msra.mxu0 0.0
    %2220 = vmatprep.subr.mxu0 %v2192
    %2221 = vmatpush1.msra.mxu0 %v2191
    %2222 = vmatprep.subr.mxu0 %v2190
    %2223 = vmatpush1.msra.mxu0 %v2189
    %2224 = vmatprep.subr.mxu0 %v2188
    %2225 = vmatpush1.msra.mxu0 %v2187
    %2226 = vmatprep.subr.mxu0 %v2186
    %2227 = vmatpush1.msra.mxu0 %v2185
    %2228 = vmatprep.subr.mxu0 0.0
    %2229 = vmatpush2.msra.mxu0 0.0
    %2230 = vmatprep.subr.mxu0 0.0
    %2231 = vmatpush2.msra.mxu0 0.0
    %2232 = vmatprep.subr.mxu0 0.0
    %2233 = vmatpush2.msra.mxu0 0.0
    %2234 = vmatprep.subr.mxu0 0.0
    %2235 = vmatpush2.msra.mxu0 0.0
    %2236 = vmatprep.subr.mxu0 0.0
    %2237 = vmatpush2.msra.mxu0 0.0
    %2238 = vmatprep.subr.mxu0 0.0
    %2239 = vmatpush2.msra.mxu0 0.0
    %2240 = vmatprep.subr.mxu0 0.0
    %2241 = vmatpush2.msra.mxu0 0.0
    %2242 = vmatprep.subr.mxu0 0.0
    %2243 = vmatpush2.msra.mxu0 0.0
    %2244 = vmatprep.subr.mxu0 0.0
    %2245 = vmatpush2.msra.mxu0 0.0
    %2246 = vmatprep.subr.mxu0 0.0
    %2247 = vmatpush2.msra.mxu0 0.0
    %2248 = vmatprep.subr.mxu0 0.0
    %2249 = vmatpush2.msra.mxu0 0.0
    %2250 = vmatprep.subr.mxu0 0.0
    %2251 = vmatpush2.msra.mxu0 0.0
    %2252 = vmatprep.subr.mxu0 0.0
    %2253 = vmatpush2.msra.mxu0 0.0
    %2254 = vmatprep.subr.mxu0 0.0
    %2255 = vmatpush2.msra.mxu0 0.0
    %2256 = vmatprep.subr.mxu0 0.0
    %2257 = vmatpush2.msra.mxu0 0.0
    %2258 = vmatprep.subr.mxu0 0.0
    %2259 = vmatpush2.msra.mxu0 0.0
    %2260 = vmatprep.mubr.f32.mxu0 0.0
    %2261 = vmatmul.mubr.f32.gmra.mxu0 %v2194
    %v2262 = vpop.f32.mrf.mxu0
    %v2263 = vadd.f32 0.0, %v2262
    %v2264 = vpop.f32.mrf.mxu0
    %v2265 = vadd.f32 0.0, %v2264
    %2266 = vdwg.mxu0
    %v2267 = vld [vmem:[%s16] sm:$0xff]
    %v2268 = vld [vmem:[%s16 + $0x8] sm:$0xff]
    %v2269 = vld [vmem:[%s16 + $0x10] sm:$0xff]
    %v2270 = vld [vmem:[%s16 + $0x18] sm:$0xff]
    %v2271 = vld [vmem:[%s16 + $0x20] sm:$0xff]
    %v2272 = vld [vmem:[%s16 + $0x28] sm:$0xff]
    %v2273 = vld [vmem:[%s16 + $0x30] sm:$0xff]
    %v2274 = vld [vmem:[%s16 + $0x38] sm:$0xff]
    %v2276 = vsel %vm239, %v1920, 0
    %2278 = vmatprep.subr.mxu0 0.0
    %2279 = vmatpush1.msra.mxu0 0.0
    %2280 = vmatprep.subr.mxu0 0.0
    %2281 = vmatpush1.msra.mxu0 0.0
    %2282 = vmatprep.subr.mxu0 0.0
    %2283 = vmatpush1.msra.mxu0 0.0
    %2284 = vmatprep.subr.mxu0 0.0
    %2285 = vmatpush1.msra.mxu0 0.0
    %2286 = vmatprep.subr.mxu0 0.0
    %2287 = vmatpush1.msra.mxu0 0.0
    %2288 = vmatprep.subr.mxu0 0.0
    %2289 = vmatpush1.msra.mxu0 0.0
    %2290 = vmatprep.subr.mxu0 0.0
    %2291 = vmatpush1.msra.mxu0 0.0
    %2292 = vmatprep.subr.mxu0 0.0
    %2293 = vmatpush1.msra.mxu0 0.0
    %2294 = vmatprep.subr.mxu0 0.0
    %2295 = vmatpush1.msra.mxu0 0.0
    %2296 = vmatprep.subr.mxu0 0.0
    %2297 = vmatpush1.msra.mxu0 0.0
    %2298 = vmatprep.subr.mxu0 0.0
    %2299 = vmatpush1.msra.mxu0 0.0
    %2300 = vmatprep.subr.mxu0 0.0
    %2301 = vmatpush1.msra.mxu0 0.0
    %2302 = vmatprep.subr.mxu0 %v2274
    %2303 = vmatpush1.msra.mxu0 %v2273
    %2304 = vmatprep.subr.mxu0 %v2272
    %2305 = vmatpush1.msra.mxu0 %v2271
    %2306 = vmatprep.subr.mxu0 %v2270
    %2307 = vmatpush1.msra.mxu0 %v2269
    %2308 = vmatprep.subr.mxu0 %v2268
    %2309 = vmatpush1.msra.mxu0 %v2267
    %2310 = vmatprep.subr.mxu0 0.0
    %2311 = vmatpush2.msra.mxu0 0.0
    %2312 = vmatprep.subr.mxu0 0.0
    %2313 = vmatpush2.msra.mxu0 0.0
    %2314 = vmatprep.subr.mxu0 0.0
    %2315 = vmatpush2.msra.mxu0 0.0
    %2316 = vmatprep.subr.mxu0 0.0
    %2317 = vmatpush2.msra.mxu0 0.0
    %2318 = vmatprep.subr.mxu0 0.0
    %2319 = vmatpush2.msra.mxu0 0.0
    %2320 = vmatprep.subr.mxu0 0.0
    %2321 = vmatpush2.msra.mxu0 0.0
    %2322 = vmatprep.subr.mxu0 0.0
    %2323 = vmatpush2.msra.mxu0 0.0
    %2324 = vmatprep.subr.mxu0 0.0
    %2325 = vmatpush2.msra.mxu0 0.0
    %2326 = vmatprep.subr.mxu0 0.0
    %2327 = vmatpush2.msra.mxu0 0.0
    %2328 = vmatprep.subr.mxu0 0.0
    %2329 = vmatpush2.msra.mxu0 0.0
    %2330 = vmatprep.subr.mxu0 0.0
    %2331 = vmatpush2.msra.mxu0 0.0
    %2332 = vmatprep.subr.mxu0 0.0
    %2333 = vmatpush2.msra.mxu0 0.0
    %2334 = vmatprep.subr.mxu0 0.0
    %2335 = vmatpush2.msra.mxu0 0.0
    %2336 = vmatprep.subr.mxu0 0.0
    %2337 = vmatpush2.msra.mxu0 0.0
    %2338 = vmatprep.subr.mxu0 0.0
    %2339 = vmatpush2.msra.mxu0 0.0
    %2340 = vmatprep.subr.mxu0 0.0
    %2341 = vmatpush2.msra.mxu0 0.0
    %2342 = vmatprep.mubr.f32.mxu0 0.0
    %2343 = vmatmul.mubr.f32.gmra.mxu0 %v2276
    %v2344 = vpop.f32.mrf.mxu0
    %v2345 = vadd.f32 0.0, %v2344
    %v2346 = vpop.f32.mrf.mxu0
    %v2347 = vadd.f32 0.0, %v2346
    %2348 = vdwg.mxu0
    %v2349 = vmul.f32 %v2345, %v2263
    %v2350 = vmul.f32 %v2347, %v2265
    %2352 = vrot.lane.b32.xlu0 %v2349, 64
    %v2353 = vpop.permute.xlu0 %2352
    %v2355 = vadd.f32 %v2349, %v2353
    %v2356 = vadd.f32 %v2355, %v2350
    %2358 = vrot.lane.b32.xlu0 %v2350, 64
    %v2359 = vpop.permute.xlu0 %2358
    %v2361 = vadd.f32 %v2356, %v2359
    %2363 = vset.pattern.permute.xlu0 4
    %2364 = vperm.xlu0 %2363, %v1815
    %v2365 = vpop.permute.xlu0 %2364
    %v2367 = vrcp.pop %v2365
    %v2368 = vmul.f32 %v2361, %v2367
    %v2369 = vadd.f32 %v2368, 0.0
    %v2370 = vxor.u32 %v2369, 2147483648
    %v2371 = vmul.f32 %v2370, 1.442695
    %v2372 = vpow.pop %v2371
    %v2373 = vadd.f32 %v2372, 1.0
    %v2374 = vrcp.pop %v2373
    %v2375 = vmul.f32 1.0, %v2374
    %v2376 = vsub.f32 %v225, %v2375
    %v2377 = vmul.f32 %v2345, %v611
    %v2378 = vmul.f32 %v2347, %v611
    %v2379 = vld [vmem:[%s17] sm:$0xff]
    %v2380 = vld [vmem:[%s17 + $0x8] sm:$0xff]
    %v2381 = vld [vmem:[%s17 + $0x10] sm:$0xff]
    %v2382 = vld [vmem:[%s17 + $0x18] sm:$0xff]
    %v2383 = vld [vmem:[%s17 + $0x20] sm:$0xff]
    %v2384 = vld [vmem:[%s17 + $0x28] sm:$0xff]
    %v2385 = vld [vmem:[%s17 + $0x30] sm:$0xff]
    %v2386 = vld [vmem:[%s17 + $0x38] sm:$0xff]
    %v2387 = vld [vmem:[%s17 + $0x40] sm:$0xff]
    %v2388 = vld [vmem:[%s17 + $0x48] sm:$0xff]
    %v2389 = vld [vmem:[%s17 + $0x50] sm:$0xff]
    %v2390 = vld [vmem:[%s17 + $0x58] sm:$0xff]
    %v2391 = vld [vmem:[%s17 + $0x60] sm:$0xff]
    %v2392 = vld [vmem:[%s17 + $0x68] sm:$0xff]
    %v2393 = vld [vmem:[%s17 + $0x70] sm:$0xff]
    %v2394 = vld [vmem:[%s17 + $0x78] sm:$0xff]
    %v2395 = vld [vmem:[%s17 + $0x80] sm:$0xff]
    %v2396 = vld [vmem:[%s17 + $0x88] sm:$0xff]
    %v2397 = vld [vmem:[%s17 + $0x90] sm:$0xff]
    %v2398 = vld [vmem:[%s17 + $0x98] sm:$0xff]
    %v2399 = vld [vmem:[%s17 + $0xa0] sm:$0xff]
    %v2400 = vld [vmem:[%s17 + $0xa8] sm:$0xff]
    %v2401 = vld [vmem:[%s17 + $0xb0] sm:$0xff]
    %v2402 = vld [vmem:[%s17 + $0xb8] sm:$0xff]
    %v2403 = vld [vmem:[%s17 + $0xc0] sm:$0xff]
    %v2404 = vld [vmem:[%s17 + $0xc8] sm:$0xff]
    %v2405 = vld [vmem:[%s17 + $0xd0] sm:$0xff]
    %v2406 = vld [vmem:[%s17 + $0xd8] sm:$0xff]
    %v2407 = vld [vmem:[%s17 + $0xe0] sm:$0xff]
    %v2408 = vld [vmem:[%s17 + $0xe8] sm:$0xff]
    %v2409 = vld [vmem:[%s17 + $0xf0] sm:$0xff]
    %v2410 = vld [vmem:[%s17 + $0xf8] sm:$0xff]
    %2411 = vmatprep.subr.mxu0 0.0
    %2412 = vmatpush1.msra.mxu0 %v2394
    %2413 = vmatprep.subr.mxu0 0.0
    %2414 = vmatpush1.msra.mxu0 %v2393
    %2415 = vmatprep.subr.mxu0 0.0
    %2416 = vmatpush1.msra.mxu0 %v2392
    %2417 = vmatprep.subr.mxu0 0.0
    %2418 = vmatpush1.msra.mxu0 %v2391
    %2419 = vmatprep.subr.mxu0 0.0
    %2420 = vmatpush1.msra.mxu0 %v2390
    %2421 = vmatprep.subr.mxu0 0.0
    %2422 = vmatpush1.msra.mxu0 %v2389
    %2423 = vmatprep.subr.mxu0 0.0
    %2424 = vmatpush1.msra.mxu0 %v2388
    %2425 = vmatprep.subr.mxu0 0.0
    %2426 = vmatpush1.msra.mxu0 %v2387
    %2427 = vmatprep.subr.mxu0 0.0
    %2428 = vmatpush1.msra.mxu0 %v2386
    %2429 = vmatprep.subr.mxu0 0.0
    %2430 = vmatpush1.msra.mxu0 %v2385
    %2431 = vmatprep.subr.mxu0 0.0
    %2432 = vmatpush1.msra.mxu0 %v2384
    %2433 = vmatprep.subr.mxu0 0.0
    %2434 = vmatpush1.msra.mxu0 %v2383
    %2435 = vmatprep.subr.mxu0 0.0
    %2436 = vmatpush1.msra.mxu0 %v2382
    %2437 = vmatprep.subr.mxu0 0.0
    %2438 = vmatpush1.msra.mxu0 %v2381
    %2439 = vmatprep.subr.mxu0 0.0
    %2440 = vmatpush1.msra.mxu0 %v2380
    %2441 = vmatprep.subr.mxu0 0.0
    %2442 = vmatpush1.msra.mxu0 %v2379
    %2443 = vmatprep.subr.mxu0 0.0
    %2444 = vmatpush2.msra.mxu0 %v2410
    %2445 = vmatprep.subr.mxu0 0.0
    %2446 = vmatpush2.msra.mxu0 %v2409
    %2447 = vmatprep.subr.mxu0 0.0
    %2448 = vmatpush2.msra.mxu0 %v2408
    %2449 = vmatprep.subr.mxu0 0.0
    %2450 = vmatpush2.msra.mxu0 %v2407
    %2451 = vmatprep.subr.mxu0 0.0
    %2452 = vmatpush2.msra.mxu0 %v2406
    %2453 = vmatprep.subr.mxu0 0.0
    %2454 = vmatpush2.msra.mxu0 %v2405
    %2455 = vmatprep.subr.mxu0 0.0
    %2456 = vmatpush2.msra.mxu0 %v2404
    %2457 = vmatprep.subr.mxu0 0.0
    %2458 = vmatpush2.msra.mxu0 %v2403
    %2459 = vmatprep.subr.mxu0 0.0
    %2460 = vmatpush2.msra.mxu0 %v2402
    %2461 = vmatprep.subr.mxu0 0.0
    %2462 = vmatpush2.msra.mxu0 %v2401
    %2463 = vmatprep.subr.mxu0 0.0
    %2464 = vmatpush2.msra.mxu0 %v2400
    %2465 = vmatprep.subr.mxu0 0.0
    %2466 = vmatpush2.msra.mxu0 %v2399
    %2467 = vmatprep.subr.mxu0 0.0
    %2468 = vmatpush2.msra.mxu0 %v2398
    %2469 = vmatprep.subr.mxu0 0.0
    %2470 = vmatpush2.msra.mxu0 %v2397
    %2471 = vmatprep.subr.mxu0 0.0
    %2472 = vmatpush2.msra.mxu0 %v2396
    %2473 = vmatprep.subr.mxu0 0.0
    %2474 = vmatpush2.msra.mxu0 %v2395
    %2475 = vmatprep.mubr.f32.mxu0 %v2378
    %2476 = vmatmul.mubr.f32.gmra.mxu0 %v2377
    %v2477 = vpop.f32.mrf.mxu0
    %v2478 = vadd.f32 0.0, %v2477
    %v2479 = vpop.f32.mrf.mxu0
    %2480 = vdwg.mxu0
    %v2481 = vld [vmem:[#allocation17] sm:$0xff]
    %v2482 = vld [vmem:[#allocation17 + $0x8] sm:$0xff]
    %v2483 = vld [vmem:[#allocation17 + $0x10] sm:$0xff]
    %v2484 = vld [vmem:[#allocation17 + $0x18] sm:$0xff]
    %v2486 = vsel %vm239, %v2478, 0
    %2488 = vmatprep.subr.mxu0 0.0
    %2489 = vmatpush1.msra.mxu0 0.0
    %2490 = vmatprep.subr.mxu0 0.0
    %2491 = vmatpush1.msra.mxu0 0.0
    %2492 = vmatprep.subr.mxu0 0.0
    %2493 = vmatpush1.msra.mxu0 0.0
    %2494 = vmatprep.subr.mxu0 0.0
    %2495 = vmatpush1.msra.mxu0 0.0
    %2496 = vmatprep.subr.mxu0 0.0
    %2497 = vmatpush1.msra.mxu0 0.0
    %2498 = vmatprep.subr.mxu0 0.0
    %2499 = vmatpush1.msra.mxu0 0.0
    %2500 = vmatprep.subr.mxu0 0.0
    %2501 = vmatpush1.msra.mxu0 0.0
    %2502 = vmatprep.subr.mxu0 0.0
    %2503 = vmatpush1.msra.mxu0 0.0
    %2504 = vmatprep.subr.mxu0 0.0
    %2505 = vmatpush1.msra.mxu0 0.0
    %2506 = vmatprep.subr.mxu0 0.0
    %2507 = vmatpush1.msra.mxu0 0.0
    %2508 = vmatprep.subr.mxu0 0.0
    %2509 = vmatpush1.msra.mxu0 0.0
    %2510 = vmatprep.subr.mxu0 0.0
    %2511 = vmatpush1.msra.mxu0 0.0
    %2512 = vmatprep.subr.mxu0 0.0
    %2513 = vmatpush1.msra.mxu0 %v2484
    %2514 = vmatprep.subr.mxu0 0.0
    %2515 = vmatpush1.msra.mxu0 %v2483
    %2516 = vmatprep.subr.mxu0 0.0
    %2517 = vmatpush1.msra.mxu0 %v2482
    %2518 = vmatprep.subr.mxu0 0.0
    %2519 = vmatpush1.msra.mxu0 %v2481
    %2520 = vmatprep.subr.mxu0 0.0
    %2521 = vmatpush2.msra.mxu0 0.0
    %2522 = vmatprep.subr.mxu0 0.0
    %2523 = vmatpush2.msra.mxu0 0.0
    %2524 = vmatprep.subr.mxu0 0.0
    %2525 = vmatpush2.msra.mxu0 0.0
    %2526 = vmatprep.subr.mxu0 0.0
    %2527 = vmatpush2.msra.mxu0 0.0
    %2528 = vmatprep.subr.mxu0 0.0
    %2529 = vmatpush2.msra.mxu0 0.0
    %2530 = vmatprep.subr.mxu0 0.0
    %2531 = vmatpush2.msra.mxu0 0.0
    %2532 = vmatprep.subr.mxu0 0.0
    %2533 = vmatpush2.msra.mxu0 0.0
    %2534 = vmatprep.subr.mxu0 0.0
    %2535 = vmatpush2.msra.mxu0 0.0
    %2536 = vmatprep.subr.mxu0 0.0
    %2537 = vmatpush2.msra.mxu0 0.0
    %2538 = vmatprep.subr.mxu0 0.0
    %2539 = vmatpush2.msra.mxu0 0.0
    %2540 = vmatprep.subr.mxu0 0.0
    %2541 = vmatpush2.msra.mxu0 0.0
    %2542 = vmatprep.subr.mxu0 0.0
    %2543 = vmatpush2.msra.mxu0 0.0
    %2544 = vmatprep.subr.mxu0 0.0
    %2545 = vmatpush2.msra.mxu0 0.0
    %2546 = vmatprep.subr.mxu0 0.0
    %2547 = vmatpush2.msra.mxu0 0.0
    %2548 = vmatprep.subr.mxu0 0.0
    %2549 = vmatpush2.msra.mxu0 0.0
    %2550 = vmatprep.subr.mxu0 0.0
    %2551 = vmatpush2.msra.mxu0 0.0
    %2552 = vmatprep.mubr.f32.mxu0 0.0
    %2553 = vmatmul.mubr.f32.gmra.mxu0 %v2486
    %v2554 = vpop.f32.mrf.mxu0
    %v2555 = vadd.f32 0.0, %v2554
    %v2556 = vpop.f32.mrf.mxu0
    %2557 = vdwg.mxu0
    %v2558 = vmul.f32 %v2555, %v2097
    %2560 = vrot.lane.b32.xlu0 %v2376, 64
    %v2561 = vpop.permute.xlu0 %2560
    %v2563 = vsel %vm603, %v2376, %v2561
    %v2564 = vmul.f32 %v2345, %v2563
    %v2565 = vmul.f32 %v2347, %v2563
    %2566 = vmatprep.subr.mxu0 0.0
    %2567 = vmatpush1.msra.mxu0 %v2394
    %2568 = vmatprep.subr.mxu0 0.0
    %2569 = vmatpush1.msra.mxu0 %v2393
    %2570 = vmatprep.subr.mxu0 0.0
    %2571 = vmatpush1.msra.mxu0 %v2392
    %2572 = vmatprep.subr.mxu0 0.0
    %2573 = vmatpush1.msra.mxu0 %v2391
    %2574 = vmatprep.subr.mxu0 0.0
    %2575 = vmatpush1.msra.mxu0 %v2390
    %2576 = vmatprep.subr.mxu0 0.0
    %2577 = vmatpush1.msra.mxu0 %v2389
    %2578 = vmatprep.subr.mxu0 0.0
    %2579 = vmatpush1.msra.mxu0 %v2388
    %2580 = vmatprep.subr.mxu0 0.0
    %2581 = vmatpush1.msra.mxu0 %v2387
    %2582 = vmatprep.subr.mxu0 0.0
    %2583 = vmatpush1.msra.mxu0 %v2386
    %2584 = vmatprep.subr.mxu0 0.0
    %2585 = vmatpush1.msra.mxu0 %v2385
    %2586 = vmatprep.subr.mxu0 0.0
    %2587 = vmatpush1.msra.mxu0 %v2384
    %2588 = vmatprep.subr.mxu0 0.0
    %2589 = vmatpush1.msra.mxu0 %v2383
    %2590 = vmatprep.subr.mxu0 0.0
    %2591 = vmatpush1.msra.mxu0 %v2382
    %2592 = vmatprep.subr.mxu0 0.0
    %2593 = vmatpush1.msra.mxu0 %v2381
    %2594 = vmatprep.subr.mxu0 0.0
    %2595 = vmatpush1.msra.mxu0 %v2380
    %2596 = vmatprep.subr.mxu0 0.0
    %2597 = vmatpush1.msra.mxu0 %v2379
    %2598 = vmatprep.subr.mxu0 0.0
    %2599 = vmatpush2.msra.mxu0 %v2410
    %2600 = vmatprep.subr.mxu0 0.0
    %2601 = vmatpush2.msra.mxu0 %v2409
    %2602 = vmatprep.subr.mxu0 0.0
    %2603 = vmatpush2.msra.mxu0 %v2408
    %2604 = vmatprep.subr.mxu0 0.0
    %2605 = vmatpush2.msra.mxu0 %v2407
    %2606 = vmatprep.subr.mxu0 0.0
    %2607 = vmatpush2.msra.mxu0 %v2406
    %2608 = vmatprep.subr.mxu0 0.0
    %2609 = vmatpush2.msra.mxu0 %v2405
    %2610 = vmatprep.subr.mxu0 0.0
    %2611 = vmatpush2.msra.mxu0 %v2404
    %2612 = vmatprep.subr.mxu0 0.0
    %2613 = vmatpush2.msra.mxu0 %v2403
    %2614 = vmatprep.subr.mxu0 0.0
    %2615 = vmatpush2.msra.mxu0 %v2402
    %2616 = vmatprep.subr.mxu0 0.0
    %2617 = vmatpush2.msra.mxu0 %v2401
    %2618 = vmatprep.subr.mxu0 0.0
    %2619 = vmatpush2.msra.mxu0 %v2400
    %2620 = vmatprep.subr.mxu0 0.0
    %2621 = vmatpush2.msra.mxu0 %v2399
    %2622 = vmatprep.subr.mxu0 0.0
    %2623 = vmatpush2.msra.mxu0 %v2398
    %2624 = vmatprep.subr.mxu0 0.0
    %2625 = vmatpush2.msra.mxu0 %v2397
    %2626 = vmatprep.subr.mxu0 0.0
    %2627 = vmatpush2.msra.mxu0 %v2396
    %2628 = vmatprep.subr.mxu0 0.0
    %2629 = vmatpush2.msra.mxu0 %v2395
    %2630 = vmatprep.mubr.f32.mxu0 %v2565
    %2631 = vmatmul.mubr.f32.gmra.mxu0 %v2564
    %v2632 = vpop.f32.mrf.mxu0
    %v2633 = vadd.f32 0.0, %v2632
    %v2634 = vpop.f32.mrf.mxu0
    %2635 = vdwg.mxu0
    %v2637 = vsel %vm239, %v2633, 0
    %2639 = vmatprep.subr.mxu0 0.0
    %2640 = vmatpush1.msra.mxu0 0.0
    %2641 = vmatprep.subr.mxu0 0.0
    %2642 = vmatpush1.msra.mxu0 0.0
    %2643 = vmatprep.subr.mxu0 0.0
    %2644 = vmatpush1.msra.mxu0 0.0
    %2645 = vmatprep.subr.mxu0 0.0
    %2646 = vmatpush1.msra.mxu0 0.0
    %2647 = vmatprep.subr.mxu0 0.0
    %2648 = vmatpush1.msra.mxu0 0.0
    %2649 = vmatprep.subr.mxu0 0.0
    %2650 = vmatpush1.msra.mxu0 0.0
    %2651 = vmatprep.subr.mxu0 0.0
    %2652 = vmatpush1.msra.mxu0 0.0
    %2653 = vmatprep.subr.mxu0 0.0
    %2654 = vmatpush1.msra.mxu0 0.0
    %2655 = vmatprep.subr.mxu0 0.0
    %2656 = vmatpush1.msra.mxu0 0.0
    %2657 = vmatprep.subr.mxu0 0.0
    %2658 = vmatpush1.msra.mxu0 0.0
    %2659 = vmatprep.subr.mxu0 0.0
    %2660 = vmatpush1.msra.mxu0 0.0
    %2661 = vmatprep.subr.mxu0 0.0
    %2662 = vmatpush1.msra.mxu0 0.0
    %2663 = vmatprep.subr.mxu0 0.0
    %2664 = vmatpush1.msra.mxu0 %v2484
    %2665 = vmatprep.subr.mxu0 0.0
    %2666 = vmatpush1.msra.mxu0 %v2483
    %2667 = vmatprep.subr.mxu0 0.0
    %2668 = vmatpush1.msra.mxu0 %v2482
    %2669 = vmatprep.subr.mxu0 0.0
    %2670 = vmatpush1.msra.mxu0 %v2481
    %2671 = vmatprep.subr.mxu0 0.0
    %2672 = vmatpush2.msra.mxu0 0.0
    %2673 = vmatprep.subr.mxu0 0.0
    %2674 = vmatpush2.msra.mxu0 0.0
    %2675 = vmatprep.subr.mxu0 0.0
    %2676 = vmatpush2.msra.mxu0 0.0
    %2677 = vmatprep.subr.mxu0 0.0
    %2678 = vmatpush2.msra.mxu0 0.0
    %2679 = vmatprep.subr.mxu0 0.0
    %2680 = vmatpush2.msra.mxu0 0.0
    %2681 = vmatprep.subr.mxu0 0.0
    %2682 = vmatpush2.msra.mxu0 0.0
    %2683 = vmatprep.subr.mxu0 0.0
    %2684 = vmatpush2.msra.mxu0 0.0
    %2685 = vmatprep.subr.mxu0 0.0
    %2686 = vmatpush2.msra.mxu0 0.0
    %2687 = vmatprep.subr.mxu0 0.0
    %2688 = vmatpush2.msra.mxu0 0.0
    %2689 = vmatprep.subr.mxu0 0.0
    %2690 = vmatpush2.msra.mxu0 0.0
    %2691 = vmatprep.subr.mxu0 0.0
    %2692 = vmatpush2.msra.mxu0 0.0
    %2693 = vmatprep.subr.mxu0 0.0
    %2694 = vmatpush2.msra.mxu0 0.0
    %2695 = vmatprep.subr.mxu0 0.0
    %2696 = vmatpush2.msra.mxu0 0.0
    %2697 = vmatprep.subr.mxu0 0.0
    %2698 = vmatpush2.msra.mxu0 0.0
    %2699 = vmatprep.subr.mxu0 0.0
    %2700 = vmatpush2.msra.mxu0 0.0
    %2701 = vmatprep.subr.mxu0 0.0
    %2702 = vmatpush2.msra.mxu0 0.0
    %2703 = vmatprep.mubr.f32.mxu0 0.0
    %2704 = vmatmul.mubr.f32.gmra.mxu0 %v2637
    %v2705 = vpop.f32.mrf.mxu0
    %v2706 = vadd.f32 0.0, %v2705
    %v2707 = vpop.f32.mrf.mxu0
    %2708 = vdwg.mxu0
    %v2709 = vmul.f32 %v2706, %v2097
    %v2710 = vld [vmem:[%s6] sm:$0xff]
    %v2711 = vld [vmem:[%s6 + $0x8] sm:$0xff]
    %v2712 = vld [vmem:[%s6 + $0x10] sm:$0xff]
    %v2713 = vld [vmem:[%s6 + $0x18] sm:$0xff]
    %v2714 = vld [vmem:[%s6 + $0x20] sm:$0xff]
    %v2715 = vld [vmem:[%s6 + $0x28] sm:$0xff]
    %v2716 = vld [vmem:[%s6 + $0x30] sm:$0xff]
    %v2717 = vld [vmem:[%s6 + $0x38] sm:$0xff]
    %v2718 = vld [vmem:[%s6 + $0x40] sm:$0xff]
    %v2719 = vld [vmem:[%s6 + $0x48] sm:$0xff]
    %v2720 = vld [vmem:[%s6 + $0x50] sm:$0xff]
    %v2721 = vld [vmem:[%s6 + $0x58] sm:$0xff]
    %v2722 = vld [vmem:[%s6 + $0x60] sm:$0xff]
    %v2723 = vld [vmem:[%s6 + $0x68] sm:$0xff]
    %v2724 = vld [vmem:[%s6 + $0x70] sm:$0xff]
    %v2725 = vld [vmem:[%s6 + $0x78] sm:$0xff]
    %v2726 = vld [vmem:[%s6 + $0x80] sm:$0xff]
    %v2727 = vld [vmem:[%s6 + $0x88] sm:$0xff]
    %v2728 = vld [vmem:[%s6 + $0x90] sm:$0xff]
    %v2729 = vld [vmem:[%s6 + $0x98] sm:$0xff]
    %v2730 = vld [vmem:[%s6 + $0xa0] sm:$0xff]
    %v2731 = vld [vmem:[%s6 + $0xa8] sm:$0xff]
    %v2732 = vld [vmem:[%s6 + $0xb0] sm:$0xff]
    %v2733 = vld [vmem:[%s6 + $0xb8] sm:$0xff]
    %v2734 = vld [vmem:[%s6 + $0xc0] sm:$0xff]
    %v2735 = vld [vmem:[%s6 + $0xc8] sm:$0xff]
    %v2736 = vld [vmem:[%s6 + $0xd0] sm:$0xff]
    %v2737 = vld [vmem:[%s6 + $0xd8] sm:$0xff]
    %v2738 = vld [vmem:[%s6 + $0xe0] sm:$0xff]
    %v2739 = vld [vmem:[%s6 + $0xe8] sm:$0xff]
    %v2740 = vld [vmem:[%s6 + $0xf0] sm:$0xff]
    %v2741 = vld [vmem:[%s6 + $0xf8] sm:$0xff]
    %2742 = vmatprep.subr.mxu0 0.0
    %2743 = vmatpush1.msra.mxu0 %v2725
    %2744 = vmatprep.subr.mxu0 0.0
    %2745 = vmatpush1.msra.mxu0 %v2724
    %2746 = vmatprep.subr.mxu0 0.0
    %2747 = vmatpush1.msra.mxu0 %v2723
    %2748 = vmatprep.subr.mxu0 0.0
    %2749 = vmatpush1.msra.mxu0 %v2722
    %2750 = vmatprep.subr.mxu0 0.0
    %2751 = vmatpush1.msra.mxu0 %v2721
    %2752 = vmatprep.subr.mxu0 0.0
    %2753 = vmatpush1.msra.mxu0 %v2720
    %2754 = vmatprep.subr.mxu0 0.0
    %2755 = vmatpush1.msra.mxu0 %v2719
    %2756 = vmatprep.subr.mxu0 0.0
    %2757 = vmatpush1.msra.mxu0 %v2718
    %2758 = vmatprep.subr.mxu0 0.0
    %2759 = vmatpush1.msra.mxu0 %v2717
    %2760 = vmatprep.subr.mxu0 0.0
    %2761 = vmatpush1.msra.mxu0 %v2716
    %2762 = vmatprep.subr.mxu0 0.0
    %2763 = vmatpush1.msra.mxu0 %v2715
    %2764 = vmatprep.subr.mxu0 0.0
    %2765 = vmatpush1.msra.mxu0 %v2714
    %2766 = vmatprep.subr.mxu0 0.0
    %2767 = vmatpush1.msra.mxu0 %v2713
    %2768 = vmatprep.subr.mxu0 0.0
    %2769 = vmatpush1.msra.mxu0 %v2712
    %2770 = vmatprep.subr.mxu0 0.0
    %2771 = vmatpush1.msra.mxu0 %v2711
    %2772 = vmatprep.subr.mxu0 0.0
    %2773 = vmatpush1.msra.mxu0 %v2710
    %2774 = vmatprep.subr.mxu0 0.0
    %2775 = vmatpush2.msra.mxu0 %v2741
    %2776 = vmatprep.subr.mxu0 0.0
    %2777 = vmatpush2.msra.mxu0 %v2740
    %2778 = vmatprep.subr.mxu0 0.0
    %2779 = vmatpush2.msra.mxu0 %v2739
    %2780 = vmatprep.subr.mxu0 0.0
    %2781 = vmatpush2.msra.mxu0 %v2738
    %2782 = vmatprep.subr.mxu0 0.0
    %2783 = vmatpush2.msra.mxu0 %v2737
    %2784 = vmatprep.subr.mxu0 0.0
    %2785 = vmatpush2.msra.mxu0 %v2736
    %2786 = vmatprep.subr.mxu0 0.0
    %2787 = vmatpush2.msra.mxu0 %v2735
    %2788 = vmatprep.subr.mxu0 0.0
    %2789 = vmatpush2.msra.mxu0 %v2734
    %2790 = vmatprep.subr.mxu0 0.0
    %2791 = vmatpush2.msra.mxu0 %v2733
    %2792 = vmatprep.subr.mxu0 0.0
    %2793 = vmatpush2.msra.mxu0 %v2732
    %2794 = vmatprep.subr.mxu0 0.0
    %2795 = vmatpush2.msra.mxu0 %v2731
    %2796 = vmatprep.subr.mxu0 0.0
    %2797 = vmatpush2.msra.mxu0 %v2730
    %2798 = vmatprep.subr.mxu0 0.0
    %2799 = vmatpush2.msra.mxu0 %v2729
    %2800 = vmatprep.subr.mxu0 0.0
    %2801 = vmatpush2.msra.mxu0 %v2728
    %2802 = vmatprep.subr.mxu0 0.0
    %2803 = vmatpush2.msra.mxu0 %v2727
    %2804 = vmatprep.subr.mxu0 0.0
    %2805 = vmatpush2.msra.mxu0 %v2726
    %2806 = vmatprep.mubr.f32.mxu0 %v2709
    %2807 = vmatmul.mubr.f32.gmra.mxu0 %v2558
    %v2808 = vpop.f32.mrf.mxu0
    %v2809 = vadd.f32 0.0, %v2808
    %v2810 = vpop.f32.mrf.mxu0
    %2811 = vdwg.mxu0
    %v2812 = vmul.f32 %v2365, %v2809
    %v2813 = vld [vmem:[%s7] sm:$0xff]
    %v2814 = vld [vmem:[%s7 + $0x8] sm:$0xff]
    %v2815 = vld [vmem:[%s7 + $0x10] sm:$0xff]
    %v2816 = vld [vmem:[%s7 + $0x18] sm:$0xff]
    %2817 = vmatprep.subr.mxu0 0.0
    %2818 = vmatpush1.msra.mxu0 0.0
    %2819 = vmatprep.subr.mxu0 0.0
    %2820 = vmatpush1.msra.mxu0 0.0
    %2821 = vmatprep.subr.mxu0 0.0
    %2822 = vmatpush1.msra.mxu0 0.0
    %2823 = vmatprep.subr.mxu0 0.0
    %2824 = vmatpush1.msra.mxu0 0.0
    %2825 = vmatprep.subr.mxu0 0.0
    %2826 = vmatpush1.msra.mxu0 0.0
    %2827 = vmatprep.subr.mxu0 0.0
    %2828 = vmatpush1.msra.mxu0 0.0
    %2829 = vmatprep.subr.mxu0 0.0
    %2830 = vmatpush1.msra.mxu0 0.0
    %2831 = vmatprep.subr.mxu0 0.0
    %2832 = vmatpush1.msra.mxu0 0.0
    %2833 = vmatprep.subr.mxu0 0.0
    %2834 = vmatpush1.msra.mxu0 0.0
    %2835 = vmatprep.subr.mxu0 0.0
    %2836 = vmatpush1.msra.mxu0 0.0
    %2837 = vmatprep.subr.mxu0 0.0
    %2838 = vmatpush1.msra.mxu0 0.0
    %2839 = vmatprep.subr.mxu0 0.0
    %2840 = vmatpush1.msra.mxu0 0.0
    %2841 = vmatprep.subr.mxu0 0.0
    %2842 = vmatpush1.msra.mxu0 %v2816
    %2843 = vmatprep.subr.mxu0 0.0
    %2844 = vmatpush1.msra.mxu0 %v2815
    %2845 = vmatprep.subr.mxu0 0.0
    %2846 = vmatpush1.msra.mxu0 %v2814
    %2847 = vmatprep.subr.mxu0 0.0
    %2848 = vmatpush1.msra.mxu0 %v2813
    %2849 = vmatprep.subr.mxu0 0.0
    %2850 = vmatpush2.msra.mxu0 0.0
    %2851 = vmatprep.subr.mxu0 0.0
    %2852 = vmatpush2.msra.mxu0 0.0
    %2853 = vmatprep.subr.mxu0 0.0
    %2854 = vmatpush2.msra.mxu0 0.0
    %2855 = vmatprep.subr.mxu0 0.0
    %2856 = vmatpush2.msra.mxu0 0.0
    %2857 = vmatprep.subr.mxu0 0.0
    %2858 = vmatpush2.msra.mxu0 0.0
    %2859 = vmatprep.subr.mxu0 0.0
    %2860 = vmatpush2.msra.mxu0 0.0
    %2861 = vmatprep.subr.mxu0 0.0
    %2862 = vmatpush2.msra.mxu0 0.0
    %2863 = vmatprep.subr.mxu0 0.0
    %2864 = vmatpush2.msra.mxu0 0.0
    %2865 = vmatprep.subr.mxu0 0.0
    %2866 = vmatpush2.msra.mxu0 0.0
    %2867 = vmatprep.subr.mxu0 0.0
    %2868 = vmatpush2.msra.mxu0 0.0
    %2869 = vmatprep.subr.mxu0 0.0
    %2870 = vmatpush2.msra.mxu0 0.0
    %2871 = vmatprep.subr.mxu0 0.0
    %2872 = vmatpush2.msra.mxu0 0.0
    %2873 = vmatprep.subr.mxu0 0.0
    %2874 = vmatpush2.msra.mxu0 0.0
    %2875 = vmatprep.subr.mxu0 0.0
    %2876 = vmatpush2.msra.mxu0 0.0
    %2877 = vmatprep.subr.mxu0 0.0
    %2878 = vmatpush2.msra.mxu0 0.0
    %2879 = vmatprep.subr.mxu0 0.0
    %2880 = vmatpush2.msra.mxu0 0.0
    %2881 = vmatprep.mubr.f32.mxu0 0.0
    %2882 = vmatmul.mubr.f32.gmra.mxu0 %v1740
    %v2883 = vpop.f32.mrf.mxu0
    %v2884 = vadd.f32 0.0, %v2883
    %v2885 = vpop.f32.mrf.mxu0
    %2886 = vdwg.mxu0
    %v2887 = vadd.f32 %v2812, %v2884
    %v2888 = vld [vmem:[#allocation7] sm:$0xff]
    %v2889 = vld [vmem:[#allocation7 + $0x8] sm:$0xff]
    %v2890 = vld [vmem:[#allocation7 + $0x10] sm:$0xff]
    %v2891 = vld [vmem:[#allocation7 + $0x18] sm:$0xff]
    %2892 = vmatprep.subr.mxu0 0.0
    %2893 = vmatpush1.msra.mxu0 0.0
    %2894 = vmatprep.subr.mxu0 0.0
    %2895 = vmatpush1.msra.mxu0 0.0
    %2896 = vmatprep.subr.mxu0 0.0
    %2897 = vmatpush1.msra.mxu0 0.0
    %2898 = vmatprep.subr.mxu0 0.0
    %2899 = vmatpush1.msra.mxu0 0.0
    %2900 = vmatprep.subr.mxu0 0.0
    %2901 = vmatpush1.msra.mxu0 0.0
    %2902 = vmatprep.subr.mxu0 0.0
    %2903 = vmatpush1.msra.mxu0 0.0
    %2904 = vmatprep.subr.mxu0 0.0
    %2905 = vmatpush1.msra.mxu0 0.0
    %2906 = vmatprep.subr.mxu0 0.0
    %2907 = vmatpush1.msra.mxu0 0.0
    %2908 = vmatprep.subr.mxu0 0.0
    %2909 = vmatpush1.msra.mxu0 0.0
    %2910 = vmatprep.subr.mxu0 0.0
    %2911 = vmatpush1.msra.mxu0 0.0
    %2912 = vmatprep.subr.mxu0 0.0
    %2913 = vmatpush1.msra.mxu0 0.0
    %2914 = vmatprep.subr.mxu0 0.0
    %2915 = vmatpush1.msra.mxu0 0.0
    %2916 = vmatprep.subr.mxu0 0.0
    %2917 = vmatpush1.msra.mxu0 %v2891
    %2918 = vmatprep.subr.mxu0 0.0
    %2919 = vmatpush1.msra.mxu0 %v2890
    %2920 = vmatprep.subr.mxu0 0.0
    %2921 = vmatpush1.msra.mxu0 %v2889
    %2922 = vmatprep.subr.mxu0 0.0
    %2923 = vmatpush1.msra.mxu0 %v2888
    %2924 = vmatprep.subr.mxu0 0.0
    %2925 = vmatpush2.msra.mxu0 0.0
    %2926 = vmatprep.subr.mxu0 0.0
    %2927 = vmatpush2.msra.mxu0 0.0
    %2928 = vmatprep.subr.mxu0 0.0
    %2929 = vmatpush2.msra.mxu0 0.0
    %2930 = vmatprep.subr.mxu0 0.0
    %2931 = vmatpush2.msra.mxu0 0.0
    %2932 = vmatprep.subr.mxu0 0.0
    %2933 = vmatpush2.msra.mxu0 0.0
    %2934 = vmatprep.subr.mxu0 0.0
    %2935 = vmatpush2.msra.mxu0 0.0
    %2936 = vmatprep.subr.mxu0 0.0
    %2937 = vmatpush2.msra.mxu0 0.0
    %2938 = vmatprep.subr.mxu0 0.0
    %2939 = vmatpush2.msra.mxu0 0.0
    %2940 = vmatprep.subr.mxu0 0.0
    %2941 = vmatpush2.msra.mxu0 0.0
    %2942 = vmatprep.subr.mxu0 0.0
    %2943 = vmatpush2.msra.mxu0 0.0
    %2944 = vmatprep.subr.mxu0 0.0
    %2945 = vmatpush2.msra.mxu0 0.0
    %2946 = vmatprep.subr.mxu0 0.0
    %2947 = vmatpush2.msra.mxu0 0.0
    %2948 = vmatprep.subr.mxu0 0.0
    %2949 = vmatpush2.msra.mxu0 0.0
    %2950 = vmatprep.subr.mxu0 0.0
    %2951 = vmatpush2.msra.mxu0 0.0
    %2952 = vmatprep.subr.mxu0 0.0
    %2953 = vmatpush2.msra.mxu0 0.0
    %2954 = vmatprep.subr.mxu0 0.0
    %2955 = vmatpush2.msra.mxu0 0.0
    %2956 = vmatprep.mubr.f32.mxu0 0.0
    %2957 = vmatmul.mubr.f32.gmra.mxu0 %v1349
    %v2958 = vpop.f32.mrf.mxu0
    %v2959 = vadd.f32 0.0, %v2958
    %v2960 = vpop.f32.mrf.mxu0
    %2961 = vdwg.mxu0
    %v2962 = vadd.f32 %v2887, %v2959
    %v2963 = vld [vmem:[#allocation8] sm:$0x1]
    %v2965 = vlaneseq
    %v2966 = vshrl.u32 %v2965, 7
    %v2967 = vsub.s32 0, %v2966
    %v2968 = vrot.slane %v2963, %v2967
    %v2970 = vadd.f32 %v2962, %v2968
    %v2971 = vxor.u32 %v2970, 2147483648
    %v2972 = vmul.f32 %v2971, 1.442695
    %v2973 = vpow.pop %v2972
    %v2974 = vadd.f32 %v2973, 1.0
    %v2975 = vrcp.pop %v2974
    %v2976 = vmul.f32 1.0, %v2975
    %v2977 = vtanh.pop %v2970
    %v2978 = vmul.f32 %v2976, %v1228
    %2980 = vrot.lane.b32.xlu0 %v2977, 64
    %v2981 = vpop.permute.xlu0 %2980
    %v2983 = vmul.f32 %v2976, %v2981
    %2985 = vrot.lane.b32.xlu0 %v2983, 32
    %v2986 = vpop.permute.xlu0 %2985
    %v2988 = vadd.f32 %v2978, %v2986
    %v2989 = vtanh.pop %v2988
    %2991 = vrot.lane.b32.xlu0 %v2989, 64
    %v2992 = vpop.permute.xlu0 %2991
    %v2994 = vmul.f32 %v2976, %v2992
    %2996 = vrot.lane.b32.xlu0 %v2994, 32
    %v2997 = vpop.permute.xlu0 %2996
    %v2999 = vsel %vm1239, %v2997, 0.0
    %3000 = vadd.xlane.f32.xlu0 %v2999
    %v3001 = vpop.xlane.xlu0 %3000
    %v3002 = vsel %vm1243, %v3001, 0.0
    %v3003 = vrot.slane %v3002, 4
    %v3004 = vadd.f32 %v3002, %v3003
    %v3005 = vrot.slane %v3004, 2
    %v3006 = vadd.f32 %v3004, %v3005
    %v3007 = vrot.slane %v3006, 1
    %v3008 = vadd.f32 %v3006, %v3007
    %v3009 = vmul.f32 %v3008, %v1251
    %v3010 = vsub.f32 %v2994, %v3009
    %v3011 = vmul.f32 %v3010, %v3010
    %3013 = vrot.lane.b32.xlu0 %v3011, 32
    %v3014 = vpop.permute.xlu0 %3013
    %v3016 = vsel %vm1239, %v3014, 0.0
    %3017 = vadd.xlane.f32.xlu0 %v3016
    %v3018 = vpop.xlane.xlu0 %3017
    %v3019 = vsel %vm1243, %v3018, 0.0
    %v3020 = vrot.slane %v3019, 4
    %v3021 = vadd.f32 %v3019, %v3020
    %v3022 = vrot.slane %v3021, 2
    %v3023 = vadd.f32 %v3021, %v3022
    %v3024 = vrot.slane %v3023, 1
    %v3025 = vadd.f32 %v3023, %v3024
    %v3026 = vmul.f32 %v3025, %v1269
    %v3027 = vrsqrt.pop %v3026
    %v3028 = vmul.f32 %v3026, %v3027
    %vm3029 = vcmp.eq.f32.partialorder %v3026, inf
    %v3030 = vsel %vm3029, %v3026, %v3028
    %vm3031 = vcmp.eq.f32.partialorder %v3026, 0.0
    %v3032 = vand.u32 %v3026, 2147483648
    %v3033 = vsel %vm3031, %v3032, %v3030
    %v3034 = vsub.f32 0.0, %v3011
    %v3035 = vrcp.pop %v3026
    %v3036 = vmul.f32 0.5, %v3035
    %v3037 = vmul.f32 %v3034, %v3036
    %v3038 = vlog2.pop %v3026
    %v3039 = vmul.f32 %v3038, 0.6931472
    %v3040 = vmul.f32 %v3039, 0.5
    %v3041 = vadd.f32 %v3040, 0.9189385
    %v3042 = vsub.f32 %v3037, %v3041
    %v3043 = vsel %vm1287, %v3042, -inf
    %3044 = vmax.xlane.f32.xlu0 %v3043
    %v3045 = vpop.xlane.xlu0 %3044
    %v3046 = vsel %vm1243, %v3045, -inf
    %v3047 = vrot.slane %v3046, 4
    %v3048 = vmax.f32 %v3046, %v3047
    %v3049 = vrot.slane %v3048, 2
    %v3050 = vmax.f32 %v3048, %v3049
    %v3051 = vrot.slane %v3050, 1
    %v3052 = vmax.f32 %v3050, %v3051
    %v3053 = vsub.f32 %v3042, %v3052
    %v3054 = vmul.f32 %v3053, 1.442695
    %v3055 = vpow.pop %v3054
    %3057 = vrot.lane.b32.xlu0 %v3055, 32
    %v3058 = vpop.permute.xlu0 %3057
    %v3060 = vsel %vm1239, %v3058, 0.0
    %3061 = vadd.xlane.f32.xlu0 %v3060
    %v3062 = vpop.xlane.xlu0 %3061
    %v3063 = vsel %vm1243, %v3062, 0.0
    %v3064 = vrot.slane %v3063, 4
    %v3065 = vadd.f32 %v3063, %v3064
    %v3066 = vrot.slane %v3065, 2
    %v3067 = vadd.f32 %v3065, %v3066
    %v3068 = vrot.slane %v3067, 1
    %v3069 = vadd.f32 %v3067, %v3068
    %v3070 = vlog2.pop %v3069
    %v3071 = vmul.f32 %v3070, 0.6931472
    %v3072 = vadd.f32 %v3052, %v3071
    %v3073 = vmul.f32 %v3052, 1.442695
    %v3074 = vpow.pop %v3073
    %v3075 = vmul.f32 %v3074, %v3069
    %v3076 = vadd.f32 %v3075, 1.0
    %v3077 = vlog2.pop %v3076
    %v3078 = vmul.f32 %v3077, 0.6931472
    %v3079 = vsub.f32 0.0, %v3052
    %v3080 = vmul.f32 %v3079, 1.442695
    %v3081 = vpow.pop %v3080
    %v3082 = vadd.f32 %v3081, %v3069
    %v3083 = vlog2.pop %v3082
    %v3084 = vmul.f32 %v3083, 0.6931472
    %v3085 = vadd.f32 %v3052, %v3084
    %vm3086 = vcmp.lt.f32.partialorder %v3052, 0.0
    %v3087 = vsel %vm3086, %v3078, %v3085
    %v3088 = vsub.f32 %v3087, %v3072
    %v3089 = vsub.f32 %v3088, %v226
    %v3090 = vmul.f32 %v3089, %v2997
    %s3091 = scalar_lea.vmem [#allocation21], 4
    %3092 = vst.msk [vmem:[%s3091] sm:$0xf] %vm1239, %v3089
    %v3093 = vld [vmem:[#allocation10] sm:$0xff]
    %v3094 = vld [vmem:[#allocation10 + $0x8] sm:$0xff]
    %v3095 = vld [vmem:[#allocation10 + $0x10] sm:$0xff]
    %v3096 = vld [vmem:[#allocation10 + $0x18] sm:$0xff]
    %v3097 = vld [vmem:[#allocation11] sm:$0x1]
    %v3099 = vlaneseq
    %v3100 = vshrl.u32 %v3099, 7
    %v3101 = vsub.s32 0, %v3100
    %v3102 = vrot.slane %v3097, %v3101
    %v3105 = vsel %vm239, %v3090, 0
    %3107 = vmatprep.subr.mxu0 0.0
    %3108 = vmatpush1.msra.mxu0 0.0
    %3109 = vmatprep.subr.mxu0 0.0
    %3110 = vmatpush1.msra.mxu0 0.0
    %3111 = vmatprep.subr.mxu0 0.0
    %3112 = vmatpush1.msra.mxu0 0.0
    %3113 = vmatprep.subr.mxu0 0.0
    %3114 = vmatpush1.msra.mxu0 0.0
    %3115 = vmatprep.subr.mxu0 0.0
    %3116 = vmatpush1.msra.mxu0 0.0
    %3117 = vmatprep.subr.mxu0 0.0
    %3118 = vmatpush1.msra.mxu0 0.0
    %3119 = vmatprep.subr.mxu0 0.0
    %3120 = vmatpush1.msra.mxu0 0.0
    %3121 = vmatprep.subr.mxu0 0.0
    %3122 = vmatpush1.msra.mxu0 0.0
    %3123 = vmatprep.subr.mxu0 0.0
    %3124 = vmatpush1.msra.mxu0 0.0
    %3125 = vmatprep.subr.mxu0 0.0
    %3126 = vmatpush1.msra.mxu0 0.0
    %3127 = vmatprep.subr.mxu0 0.0
    %3128 = vmatpush1.msra.mxu0 0.0
    %3129 = vmatprep.subr.mxu0 0.0
    %3130 = vmatpush1.msra.mxu0 0.0
    %3131 = vmatprep.subr.mxu0 0.0
    %3132 = vmatpush1.msra.mxu0 %v3096
    %3133 = vmatprep.subr.mxu0 0.0
    %3134 = vmatpush1.msra.mxu0 %v3095
    %3135 = vmatprep.subr.mxu0 0.0
    %3136 = vmatpush1.msra.mxu0 %v3094
    %3137 = vmatprep.subr.mxu0 0.0
    %3138 = vmatpush1.msra.mxu0 %v3093
    %3139 = vmatprep.subr.mxu0 0.0
    %3140 = vmatpush2.msra.mxu0 0.0
    %3141 = vmatprep.subr.mxu0 0.0
    %3142 = vmatpush2.msra.mxu0 0.0
    %3143 = vmatprep.subr.mxu0 0.0
    %3144 = vmatpush2.msra.mxu0 0.0
    %3145 = vmatprep.subr.mxu0 0.0
    %3146 = vmatpush2.msra.mxu0 0.0
    %3147 = vmatprep.subr.mxu0 0.0
    %3148 = vmatpush2.msra.mxu0 0.0
    %3149 = vmatprep.subr.mxu0 0.0
    %3150 = vmatpush2.msra.mxu0 0.0
    %3151 = vmatprep.subr.mxu0 0.0
    %3152 = vmatpush2.msra.mxu0 0.0
    %3153 = vmatprep.subr.mxu0 0.0
    %3154 = vmatpush2.msra.mxu0 0.0
    %3155 = vmatprep.subr.mxu0 0.0
    %3156 = vmatpush2.msra.mxu0 0.0
    %3157 = vmatprep.subr.mxu0 0.0
    %3158 = vmatpush2.msra.mxu0 0.0
    %3159 = vmatprep.subr.mxu0 0.0
    %3160 = vmatpush2.msra.mxu0 0.0
    %3161 = vmatprep.subr.mxu0 0.0
    %3162 = vmatpush2.msra.mxu0 0.0
    %3163 = vmatprep.subr.mxu0 0.0
    %3164 = vmatpush2.msra.mxu0 0.0
    %3165 = vmatprep.subr.mxu0 0.0
    %3166 = vmatpush2.msra.mxu0 0.0
    %3167 = vmatprep.subr.mxu0 0.0
    %3168 = vmatpush2.msra.mxu0 0.0
    %3169 = vmatprep.subr.mxu0 0.0
    %3170 = vmatpush2.msra.mxu0 0.0
    %3171 = vmatprep.mubr.f32.mxu0 0.0
    %3172 = vmatmul.mubr.f32.gmra.mxu0 %v3105
    %v3173 = vpop.f32.mrf.mxu0
    %v3174 = vadd.f32 %v3102, %v3173
    %v3175 = vpop.f32.mrf.mxu0
    %3176 = vdwg.mxu0
    %v3177 = vmul.f32 %v3174, 1.442695
    %v3178 = vpow.pop %v3177
    %s3179 = scalar_lea.vmem [#allocation2], 4
    %v3180 = vld [vmem:[%s3179] sm:$0xf]
    %3182 = vrot.lane.b32.xlu0 %v3180, 8
    %v3183 = vpop.permute.xlu0 %3182
    %v3185 = vmul.f32 %v3178, %v3183
    %3187 = vrot.lane.b32.xlu0 %v3185, 120
    %v3188 = vpop.permute.xlu0 %3187
    %v3190 = vadd.f32 %v3174, %v3188
    %v3191 = vld [vmem:[%s12] sm:$0xff]
    %v3192 = vld [vmem:[#allocation13] sm:$0xff]
    %v3193 = vld [vmem:[#allocation13 + $0x8] sm:$0xff]
    %v3194 = vld [vmem:[#allocation13 + $0x10] sm:$0xff]
    %v3195 = vld [vmem:[#allocation13 + $0x18] sm:$0xff]
    %3196 = vmatprep.subr.mxu0 0.0
    %3197 = vmatpush1.msra.mxu0 0.0
    %3198 = vmatprep.subr.mxu0 0.0
    %3199 = vmatpush1.msra.mxu0 0.0
    %3200 = vmatprep.subr.mxu0 0.0
    %3201 = vmatpush1.msra.mxu0 0.0
    %3202 = vmatprep.subr.mxu0 0.0
    %3203 = vmatpush1.msra.mxu0 0.0
    %3204 = vmatprep.subr.mxu0 0.0
    %3205 = vmatpush1.msra.mxu0 0.0
    %3206 = vmatprep.subr.mxu0 0.0
    %3207 = vmatpush1.msra.mxu0 0.0
    %3208 = vmatprep.subr.mxu0 0.0
    %3209 = vmatpush1.msra.mxu0 0.0
    %3210 = vmatprep.subr.mxu0 0.0
    %3211 = vmatpush1.msra.mxu0 0.0
    %3212 = vmatprep.subr.mxu0 0.0
    %3213 = vmatpush1.msra.mxu0 0.0
    %3214 = vmatprep.subr.mxu0 0.0
    %3215 = vmatpush1.msra.mxu0 0.0
    %3216 = vmatprep.subr.mxu0 0.0
    %3217 = vmatpush1.msra.mxu0 0.0
    %3218 = vmatprep.subr.mxu0 0.0
    %3219 = vmatpush1.msra.mxu0 0.0
    %3220 = vmatprep.subr.mxu0 0.0
    %3221 = vmatpush1.msra.mxu0 %v3195
    %3222 = vmatprep.subr.mxu0 0.0
    %3223 = vmatpush1.msra.mxu0 %v3194
    %3224 = vmatprep.subr.mxu0 0.0
    %3225 = vmatpush1.msra.mxu0 %v3193
    %3226 = vmatprep.subr.mxu0 0.0
    %3227 = vmatpush1.msra.mxu0 %v3192
    %3228 = vmatprep.subr.mxu0 0.0
    %3229 = vmatpush2.msra.mxu0 0.0
    %3230 = vmatprep.subr.mxu0 0.0
    %3231 = vmatpush2.msra.mxu0 0.0
    %3232 = vmatprep.subr.mxu0 0.0
    %3233 = vmatpush2.msra.mxu0 0.0
    %3234 = vmatprep.subr.mxu0 0.0
    %3235 = vmatpush2.msra.mxu0 0.0
    %3236 = vmatprep.subr.mxu0 0.0
    %3237 = vmatpush2.msra.mxu0 0.0
    %3238 = vmatprep.subr.mxu0 0.0
    %3239 = vmatpush2.msra.mxu0 0.0
    %3240 = vmatprep.subr.mxu0 0.0
    %3241 = vmatpush2.msra.mxu0 0.0
    %3242 = vmatprep.subr.mxu0 0.0
    %3243 = vmatpush2.msra.mxu0 0.0
    %3244 = vmatprep.subr.mxu0 0.0
    %3245 = vmatpush2.msra.mxu0 0.0
    %3246 = vmatprep.subr.mxu0 0.0
    %3247 = vmatpush2.msra.mxu0 0.0
    %3248 = vmatprep.subr.mxu0 0.0
    %3249 = vmatpush2.msra.mxu0 0.0
    %3250 = vmatprep.subr.mxu0 0.0
    %3251 = vmatpush2.msra.mxu0 0.0
    %3252 = vmatprep.subr.mxu0 0.0
    %3253 = vmatpush2.msra.mxu0 0.0
    %3254 = vmatprep.subr.mxu0 0.0
    %3255 = vmatpush2.msra.mxu0 0.0
    %3256 = vmatprep.subr.mxu0 0.0
    %3257 = vmatpush2.msra.mxu0 0.0
    %3258 = vmatprep.subr.mxu0 0.0
    %3259 = vmatpush2.msra.mxu0 0.0
    %3260 = vmatprep.mubr.f32.mxu0 0.0
    %3261 = vmatmul.mubr.f32.gmra.mxu0 %v1740
    %v3262 = vpop.f32.mrf.mxu0
    %v3263 = vadd.f32 0.0, %v3262
    %v3264 = vpop.f32.mrf.mxu0
    %3265 = vdwg.mxu0
    %v3267 = vsel %vm1509, %v3190, 0
    %3269 = vmatprep.subr.mxu0 0.0
    %3270 = vmatpush1.msra.mxu0 0.0
    %3271 = vmatprep.subr.mxu0 0.0
    %3272 = vmatpush1.msra.mxu0 0.0
    %3273 = vmatprep.subr.mxu0 0.0
    %3274 = vmatpush1.msra.mxu0 0.0
    %3275 = vmatprep.subr.mxu0 0.0
    %3276 = vmatpush1.msra.mxu0 0.0
    %3277 = vmatprep.subr.mxu0 0.0
    %3278 = vmatpush1.msra.mxu0 0.0
    %3279 = vmatprep.subr.mxu0 0.0
    %3280 = vmatpush1.msra.mxu0 0.0
    %3281 = vmatprep.subr.mxu0 0.0
    %3282 = vmatpush1.msra.mxu0 0.0
    %3283 = vmatprep.subr.mxu0 0.0
    %3284 = vmatpush1.msra.mxu0 0.0
    %3285 = vmatprep.subr.mxu0 0.0
    %3286 = vmatpush1.msra.mxu0 0.0
    %3287 = vmatprep.subr.mxu0 0.0
    %3288 = vmatpush1.msra.mxu0 0.0
    %3289 = vmatprep.subr.mxu0 0.0
    %3290 = vmatpush1.msra.mxu0 0.0
    %3291 = vmatprep.subr.mxu0 0.0
    %3292 = vmatpush1.msra.mxu0 0.0
    %3293 = vmatprep.subr.mxu0 0.0
    %3294 = vmatpush1.msra.mxu0 0.0
    %3295 = vmatprep.subr.mxu0 0.0
    %3296 = vmatpush1.msra.mxu0 0.0
    %3297 = vmatprep.subr.mxu0 0.0
    %3298 = vmatpush1.msra.mxu0 0.0
    %3299 = vmatprep.subr.mxu0 0.0
    %3300 = vmatpush1.msra.mxu0 %v3191
    %3301 = vmatprep.subr.mxu0 0.0
    %3302 = vmatpush2.msra.mxu0 0.0
    %3303 = vmatprep.subr.mxu0 0.0
    %3304 = vmatpush2.msra.mxu0 0.0
    %3305 = vmatprep.subr.mxu0 0.0
    %3306 = vmatpush2.msra.mxu0 0.0
    %3307 = vmatprep.subr.mxu0 0.0
    %3308 = vmatpush2.msra.mxu0 0.0
    %3309 = vmatprep.subr.mxu0 0.0
    %3310 = vmatpush2.msra.mxu0 0.0
    %3311 = vmatprep.subr.mxu0 0.0
    %3312 = vmatpush2.msra.mxu0 0.0
    %3313 = vmatprep.subr.mxu0 0.0
    %3314 = vmatpush2.msra.mxu0 0.0
    %3315 = vmatprep.subr.mxu0 0.0
    %3316 = vmatpush2.msra.mxu0 0.0
    %3317 = vmatprep.subr.mxu0 0.0
    %3318 = vmatpush2.msra.mxu0 0.0
    %3319 = vmatprep.subr.mxu0 0.0
    %3320 = vmatpush2.msra.mxu0 0.0
    %3321 = vmatprep.subr.mxu0 0.0
    %3322 = vmatpush2.msra.mxu0 0.0
    %3323 = vmatprep.subr.mxu0 0.0
    %3324 = vmatpush2.msra.mxu0 0.0
    %3325 = vmatprep.subr.mxu0 0.0
    %3326 = vmatpush2.msra.mxu0 0.0
    %3327 = vmatprep.subr.mxu0 0.0
    %3328 = vmatpush2.msra.mxu0 0.0
    %3329 = vmatprep.subr.mxu0 0.0
    %3330 = vmatpush2.msra.mxu0 0.0
    %3331 = vmatprep.subr.mxu0 0.0
    %3332 = vmatpush2.msra.mxu0 0.0
    %3333 = vmatprep.mubr.f32.mxu0 0.0
    %3334 = vmatmul.mubr.f32.gmra.mxu0 %v3267
    %v3335 = vpop.f32.mrf.mxu0
    %v3336 = vadd.f32 %v3263, %v3335
    %v3337 = vpop.f32.mrf.mxu0
    %3338 = vdwg.mxu0
    %v3339 = vld [vmem:[#allocation14] sm:$0x1]
    %v3341 = vlaneseq
    %v3342 = vshrl.u32 %v3341, 7
    %v3343 = vsub.s32 0, %v3342
    %v3344 = vrot.slane %v3339, %v3343
    %v3346 = vadd.f32 %v3336, %v3344
    %v3347 = vxor.u32 %v3346, 2147483648
    %v3348 = vmul.f32 %v3347, 1.442695
    %v3349 = vpow.pop %v3348
    %v3350 = vadd.f32 %v3349, 1.0
    %v3351 = vrcp.pop %v3350
    %v3352 = vmul.f32 1.0, %v3351
    %v3353 = vtanh.pop %v3346
    %v3354 = vmul.f32 %v3352, %v1608
    %3356 = vrot.lane.b32.xlu0 %v3353, 64
    %v3357 = vpop.permute.xlu0 %3356
    %v3359 = vmul.f32 %v3352, %v3357
    %3361 = vrot.lane.b32.xlu0 %v3359, 32
    %v3362 = vpop.permute.xlu0 %3361
    %v3364 = vadd.f32 %v3354, %v3362
    %v3365 = vtanh.pop %v3364
    %3367 = vrot.lane.b32.xlu0 %v3365, 64
    %v3368 = vpop.permute.xlu0 %3367
    %v3370 = vmul.f32 %v3352, %v3368
    %3372 = vrot.lane.b32.xlu0 %v3370, 32
    %v3373 = vpop.permute.xlu0 %3372
    %v3375 = vsel %vm1239, %v3373, 0.0
    %3376 = vadd.xlane.f32.xlu0 %v3375
    %v3377 = vpop.xlane.xlu0 %3376
    %v3378 = vsel %vm1243, %v3377, 0.0
    %v3379 = vrot.slane %v3378, 4
    %v3380 = vadd.f32 %v3378, %v3379
    %v3381 = vrot.slane %v3380, 2
    %v3382 = vadd.f32 %v3380, %v3381
    %v3383 = vrot.slane %v3382, 1
    %v3384 = vadd.f32 %v3382, %v3383
    %v3385 = vmul.f32 %v3384, %v1251
    %v3386 = vsub.f32 %v3370, %v3385
    %v3387 = vmul.f32 %v3386, %v3386
    %3389 = vrot.lane.b32.xlu0 %v3387, 32
    %v3390 = vpop.permute.xlu0 %3389
    %v3392 = vsel %vm1239, %v3390, 0.0
    %3393 = vadd.xlane.f32.xlu0 %v3392
    %v3394 = vpop.xlane.xlu0 %3393
    %v3395 = vsel %vm1243, %v3394, 0.0
    %v3396 = vrot.slane %v3395, 4
    %v3397 = vadd.f32 %v3395, %v3396
    %v3398 = vrot.slane %v3397, 2
    %v3399 = vadd.f32 %v3397, %v3398
    %v3400 = vrot.slane %v3399, 1
    %v3401 = vadd.f32 %v3399, %v3400
    %v3402 = vmul.f32 %v3401, %v1269
    %v3403 = vrsqrt.pop %v3402
    %v3404 = vmul.f32 %v3402, %v3403
    %vm3405 = vcmp.eq.f32.partialorder %v3402, inf
    %v3406 = vsel %vm3405, %v3402, %v3404
    %vm3407 = vcmp.eq.f32.partialorder %v3402, 0.0
    %v3408 = vand.u32 %v3402, 2147483648
    %v3409 = vsel %vm3407, %v3408, %v3406
    %v3410 = vsub.f32 0.0, %v3387
    %v3411 = vrcp.pop %v3402
    %v3412 = vmul.f32 0.5, %v3411
    %v3413 = vmul.f32 %v3410, %v3412
    %v3414 = vlog2.pop %v3402
    %v3415 = vmul.f32 %v3414, 0.6931472
    %v3416 = vmul.f32 %v3415, 0.5
    %v3417 = vadd.f32 %v3416, 0.9189385
    %v3418 = vsub.f32 %v3413, %v3417
    %v3419 = vsel %vm1287, %v3418, -inf
    %3420 = vmax.xlane.f32.xlu0 %v3419
    %v3421 = vpop.xlane.xlu0 %3420
    %v3422 = vsel %vm1243, %v3421, -inf
    %v3423 = vrot.slane %v3422, 4
    %v3424 = vmax.f32 %v3422, %v3423
    %v3425 = vrot.slane %v3424, 2
    %v3426 = vmax.f32 %v3424, %v3425
    %v3427 = vrot.slane %v3426, 1
    %v3428 = vmax.f32 %v3426, %v3427
    %v3429 = vsub.f32 %v3418, %v3428
    %v3430 = vmul.f32 %v3429, 1.442695
    %v3431 = vpow.pop %v3430
    %3433 = vrot.lane.b32.xlu0 %v3431, 32
    %v3434 = vpop.permute.xlu0 %3433
    %v3436 = vsel %vm1239, %v3434, 0.0
    %3437 = vadd.xlane.f32.xlu0 %v3436
    %v3438 = vpop.xlane.xlu0 %3437
    %v3439 = vsel %vm1243, %v3438, 0.0
    %v3440 = vrot.slane %v3439, 4
    %v3441 = vadd.f32 %v3439, %v3440
    %v3442 = vrot.slane %v3441, 2
    %v3443 = vadd.f32 %v3441, %v3442
    %v3444 = vrot.slane %v3443, 1
    %v3445 = vadd.f32 %v3443, %v3444
    %v3446 = vlog2.pop %v3445
    %v3447 = vmul.f32 %v3446, 0.6931472
    %v3448 = vadd.f32 %v3428, %v3447
    %v3449 = vmul.f32 %v3428, 1.442695
    %v3450 = vpow.pop %v3449
    %v3451 = vmul.f32 %v3450, %v3445
    %v3452 = vadd.f32 %v3451, 1.0
    %v3453 = vlog2.pop %v3452
    %v3454 = vmul.f32 %v3453, 0.6931472
    %v3455 = vsub.f32 0.0, %v3428
    %v3456 = vmul.f32 %v3455, 1.442695
    %v3457 = vpow.pop %v3456
    %v3458 = vadd.f32 %v3457, %v3445
    %v3459 = vlog2.pop %v3458
    %v3460 = vmul.f32 %v3459, 0.6931472
    %v3461 = vadd.f32 %v3428, %v3460
    %vm3462 = vcmp.lt.f32.partialorder %v3428, 0.0
    %v3463 = vsel %vm3462, %v3454, %v3461
    %v3464 = vsub.f32 %v3463, %v3448
    %v3465 = vsub.f32 %v3464, %v227
    %v3466 = vmul.f32 %v3465, %v3373
    %s3467 = scalar_lea.vmem [#allocation23], 4
    %3468 = vst.msk [vmem:[%s3467] sm:$0xf] %vm1239, %v3465
    %v3469 = vsel %vm1712, %v3009, %v3033
    %v3470 = vsel %vm1714, %v3469, 128.0
    %v3471 = vsel %vm1716, %v3470, %v3087
    %v3472 = vsel %vm1718, %v3471, %v3385
    %v3473 = vsel %vm1720, %v3472, %v3409
    %v3474 = vsel %vm1722, %v3473, 128.0
    %v3475 = vsel %vm1724, %v3474, %v3463
    %s3476 = scalar_lea.vmem [#allocation20], 1
    %3477 = vst.msk [vmem:[%s3476] sm:$0x1] %vm1726, %v3475
    %v3478 = vld [vmem:[%s4] sm:$0xff]
    %v3479 = vld [vmem:[%s4 + $0x8] sm:$0xff]
    %v3480 = vld [vmem:[%s4 + $0x10] sm:$0xff]
    %v3481 = vld [vmem:[%s4 + $0x18] sm:$0xff]
    %v3482 = vld [vmem:[#allocation5] sm:$0x1]
    %v3484 = vlaneseq
    %v3485 = vshrl.u32 %v3484, 7
    %v3486 = vsub.s32 0, %v3485
    %v3487 = vrot.slane %v3482, %v3486
    %v3490 = vsel %vm239, %v3466, 0
    %3492 = vmatprep.subr.mxu0 0.0
    %3493 = vmatpush1.msra.mxu0 0.0
    %3494 = vmatprep.subr.mxu0 0.0
    %3495 = vmatpush1.msra.mxu0 0.0
    %3496 = vmatprep.subr.mxu0 0.0
    %3497 = vmatpush1.msra.mxu0 0.0
    %3498 = vmatprep.subr.mxu0 0.0
    %3499 = vmatpush1.msra.mxu0 0.0
    %3500 = vmatprep.subr.mxu0 0.0
    %3501 = vmatpush1.msra.mxu0 0.0
    %3502 = vmatprep.subr.mxu0 0.0
    %3503 = vmatpush1.msra.mxu0 0.0
    %3504 = vmatprep.subr.mxu0 0.0
    %3505 = vmatpush1.msra.mxu0 0.0
    %3506 = vmatprep.subr.mxu0 0.0
    %3507 = vmatpush1.msra.mxu0 0.0
    %3508 = vmatprep.subr.mxu0 0.0
    %3509 = vmatpush1.msra.mxu0 0.0
    %3510 = vmatprep.subr.mxu0 0.0
    %3511 = vmatpush1.msra.mxu0 0.0
    %3512 = vmatprep.subr.mxu0 0.0
    %3513 = vmatpush1.msra.mxu0 0.0
    %3514 = vmatprep.subr.mxu0 0.0
    %3515 = vmatpush1.msra.mxu0 0.0
    %3516 = vmatprep.subr.mxu0 0.0
    %3517 = vmatpush1.msra.mxu0 %v3481
    %3518 = vmatprep.subr.mxu0 0.0
    %3519 = vmatpush1.msra.mxu0 %v3480
    %3520 = vmatprep.subr.mxu0 0.0
    %3521 = vmatpush1.msra.mxu0 %v3479
    %3522 = vmatprep.subr.mxu0 0.0
    %3523 = vmatpush1.msra.mxu0 %v3478
    %3524 = vmatprep.subr.mxu0 0.0
    %3525 = vmatpush2.msra.mxu0 0.0
    %3526 = vmatprep.subr.mxu0 0.0
    %3527 = vmatpush2.msra.mxu0 0.0
    %3528 = vmatprep.subr.mxu0 0.0
    %3529 = vmatpush2.msra.mxu0 0.0
    %3530 = vmatprep.subr.mxu0 0.0
    %3531 = vmatpush2.msra.mxu0 0.0
    %3532 = vmatprep.subr.mxu0 0.0
    %3533 = vmatpush2.msra.mxu0 0.0
    %3534 = vmatprep.subr.mxu0 0.0
    %3535 = vmatpush2.msra.mxu0 0.0
    %3536 = vmatprep.subr.mxu0 0.0
    %3537 = vmatpush2.msra.mxu0 0.0
    %3538 = vmatprep.subr.mxu0 0.0
    %3539 = vmatpush2.msra.mxu0 0.0
    %3540 = vmatprep.subr.mxu0 0.0
    %3541 = vmatpush2.msra.mxu0 0.0
    %3542 = vmatprep.subr.mxu0 0.0
    %3543 = vmatpush2.msra.mxu0 0.0
    %3544 = vmatprep.subr.mxu0 0.0
    %3545 = vmatpush2.msra.mxu0 0.0
    %3546 = vmatprep.subr.mxu0 0.0
    %3547 = vmatpush2.msra.mxu0 0.0
    %3548 = vmatprep.subr.mxu0 0.0
    %3549 = vmatpush2.msra.mxu0 0.0
    %3550 = vmatprep.subr.mxu0 0.0
    %3551 = vmatpush2.msra.mxu0 0.0
    %3552 = vmatprep.subr.mxu0 0.0
    %3553 = vmatpush2.msra.mxu0 0.0
    %3554 = vmatprep.subr.mxu0 0.0
    %3555 = vmatpush2.msra.mxu0 0.0
    %3556 = vmatprep.mubr.f32.mxu0 0.0
    %3557 = vmatmul.mubr.f32.gmra.mxu0 %v3490
    %v3558 = vpop.f32.mrf.mxu0
    %v3559 = vadd.f32 %v3487, %v3558
    %v3560 = vpop.f32.mrf.mxu0
    %3561 = vdwg.mxu0
    %v3562 = vadd.f32 %v3559, 1.0
    %v3563 = vmul.f32 %v3562, 4.5
    %v3564 = vmul.f32 %v3559, 1.442695
    %v3565 = vpow.pop %v3564
    %v3566 = vmul.f32 %v3565, 2.3333333
    %3568 = vset.pattern.permute.xlu0 3
    %3569 = vperm.xlu0 %3568, %v3566
    %v3570 = vpop.permute.xlu0 %3569
    %v3572 = vmul.f32 %v318, %v3570
    %3574 = vset.pattern.permute.xlu0 1
    %3575 = vperm.xlu0 %3574, %v3563
    %v3576 = vpop.permute.xlu0 %3575
    %v3578 = vadd.f32 %v3572, %v3576
    %v3579 = vsub.f32 %v224, %v3578
    %v3580 = vmul.f32 %v3565, 2.0
    %3582 = vset.pattern.permute.xlu0 2
    %3583 = vperm.xlu0 %3582, %v3580
    %v3584 = vpop.permute.xlu0 %3583
    %v3586 = vrcp.pop %v3584
    %v3587 = vmul.f32 %v3579, %v3586
    %v3588 = vsub.f32 0.0, %v3587
    %v3589 = vmul.f32 %v3588, %v3587
    %v3590 = vmul.f32 %v3589, 1.442695
    %v3591 = vpow.pop %v3590
    %v3592 = vld [vmem:[#allocation16] sm:$0xff]
    %v3593 = vld [vmem:[#allocation16 + $0x8] sm:$0xff]
    %v3594 = vld [vmem:[#allocation16 + $0x10] sm:$0xff]
    %v3595 = vld [vmem:[#allocation16 + $0x18] sm:$0xff]
    %v3597 = vsel %vm239, %v3591, 0
    %3599 = vmatprep.subr.mxu0 0.0
    %3600 = vmatpush1.msra.mxu0 0.0
    %3601 = vmatprep.subr.mxu0 0.0
    %3602 = vmatpush1.msra.mxu0 0.0
    %3603 = vmatprep.subr.mxu0 0.0
    %3604 = vmatpush1.msra.mxu0 0.0
    %3605 = vmatprep.subr.mxu0 0.0
    %3606 = vmatpush1.msra.mxu0 0.0
    %3607 = vmatprep.subr.mxu0 0.0
    %3608 = vmatpush1.msra.mxu0 0.0
    %3609 = vmatprep.subr.mxu0 0.0
    %3610 = vmatpush1.msra.mxu0 0.0
    %3611 = vmatprep.subr.mxu0 0.0
    %3612 = vmatpush1.msra.mxu0 0.0
    %3613 = vmatprep.subr.mxu0 0.0
    %3614 = vmatpush1.msra.mxu0 0.0
    %3615 = vmatprep.subr.mxu0 0.0
    %3616 = vmatpush1.msra.mxu0 0.0
    %3617 = vmatprep.subr.mxu0 0.0
    %3618 = vmatpush1.msra.mxu0 0.0
    %3619 = vmatprep.subr.mxu0 0.0
    %3620 = vmatpush1.msra.mxu0 0.0
    %3621 = vmatprep.subr.mxu0 0.0
    %3622 = vmatpush1.msra.mxu0 0.0
    %3623 = vmatprep.subr.mxu0 0.0
    %3624 = vmatpush1.msra.mxu0 %v3595
    %3625 = vmatprep.subr.mxu0 0.0
    %3626 = vmatpush1.msra.mxu0 %v3594
    %3627 = vmatprep.subr.mxu0 0.0
    %3628 = vmatpush1.msra.mxu0 %v3593
    %3629 = vmatprep.subr.mxu0 0.0
    %3630 = vmatpush1.msra.mxu0 %v3592
    %3631 = vmatprep.subr.mxu0 0.0
    %3632 = vmatpush2.msra.mxu0 0.0
    %3633 = vmatprep.subr.mxu0 0.0
    %3634 = vmatpush2.msra.mxu0 0.0
    %3635 = vmatprep.subr.mxu0 0.0
    %3636 = vmatpush2.msra.mxu0 0.0
    %3637 = vmatprep.subr.mxu0 0.0
    %3638 = vmatpush2.msra.mxu0 0.0
    %3639 = vmatprep.subr.mxu0 0.0
    %3640 = vmatpush2.msra.mxu0 0.0
    %3641 = vmatprep.subr.mxu0 0.0
    %3642 = vmatpush2.msra.mxu0 0.0
    %3643 = vmatprep.subr.mxu0 0.0
    %3644 = vmatpush2.msra.mxu0 0.0
    %3645 = vmatprep.subr.mxu0 0.0
    %3646 = vmatpush2.msra.mxu0 0.0
    %3647 = vmatprep.subr.mxu0 0.0
    %3648 = vmatpush2.msra.mxu0 0.0
    %3649 = vmatprep.subr.mxu0 0.0
    %3650 = vmatpush2.msra.mxu0 0.0
    %3651 = vmatprep.subr.mxu0 0.0
    %3652 = vmatpush2.msra.mxu0 0.0
    %3653 = vmatprep.subr.mxu0 0.0
    %3654 = vmatpush2.msra.mxu0 0.0
    %3655 = vmatprep.subr.mxu0 0.0
    %3656 = vmatpush2.msra.mxu0 0.0
    %3657 = vmatprep.subr.mxu0 0.0
    %3658 = vmatpush2.msra.mxu0 0.0
    %3659 = vmatprep.subr.mxu0 0.0
    %3660 = vmatpush2.msra.mxu0 0.0
    %3661 = vmatprep.subr.mxu0 0.0
    %3662 = vmatpush2.msra.mxu0 0.0
    %3663 = vmatprep.mubr.f32.mxu0 0.0
    %3664 = vmatmul.mubr.f32.gmra.mxu0 %v3597
    %v3665 = vpop.f32.mrf.mxu0
    %v3666 = vadd.f32 1e-09, %v3665
    %v3667 = vpop.f32.mrf.mxu0
    %3668 = vdwg.mxu0
    %v3669 = vrcp.pop %v3666
    %v3670 = vmul.f32 %v3591, %v3669
    %3671 = vset.pattern.permute.xlu0 0
    %3672 = vperm.xlu0 %3671, %v3563
    %v3673 = vpop.permute.xlu0 %3672
    %v3675 = vadd.f32 %v3572, %v3673
    %v3676 = vsub.f32 %v224, %v3675
    %v3677 = vmul.f32 %v3676, %v3586
    %v3678 = vsub.f32 0.0, %v3677
    %v3679 = vmul.f32 %v3678, %v3677
    %v3680 = vmul.f32 %v3679, 1.442695
    %v3681 = vpow.pop %v3680
    %v3683 = vsel %vm239, %v3681, 0
    %3685 = vmatprep.subr.mxu0 0.0
    %3686 = vmatpush1.msra.mxu0 0.0
    %3687 = vmatprep.subr.mxu0 0.0
    %3688 = vmatpush1.msra.mxu0 0.0
    %3689 = vmatprep.subr.mxu0 0.0
    %3690 = vmatpush1.msra.mxu0 0.0
    %3691 = vmatprep.subr.mxu0 0.0
    %3692 = vmatpush1.msra.mxu0 0.0
    %3693 = vmatprep.subr.mxu0 0.0
    %3694 = vmatpush1.msra.mxu0 0.0
    %3695 = vmatprep.subr.mxu0 0.0
    %3696 = vmatpush1.msra.mxu0 0.0
    %3697 = vmatprep.subr.mxu0 0.0
    %3698 = vmatpush1.msra.mxu0 0.0
    %3699 = vmatprep.subr.mxu0 0.0
    %3700 = vmatpush1.msra.mxu0 0.0
    %3701 = vmatprep.subr.mxu0 0.0
    %3702 = vmatpush1.msra.mxu0 0.0
    %3703 = vmatprep.subr.mxu0 0.0
    %3704 = vmatpush1.msra.mxu0 0.0
    %3705 = vmatprep.subr.mxu0 0.0
    %3706 = vmatpush1.msra.mxu0 0.0
    %3707 = vmatprep.subr.mxu0 0.0
    %3708 = vmatpush1.msra.mxu0 0.0
    %3709 = vmatprep.subr.mxu0 0.0
    %3710 = vmatpush1.msra.mxu0 %v3595
    %3711 = vmatprep.subr.mxu0 0.0
    %3712 = vmatpush1.msra.mxu0 %v3594
    %3713 = vmatprep.subr.mxu0 0.0
    %3714 = vmatpush1.msra.mxu0 %v3593
    %3715 = vmatprep.subr.mxu0 0.0
    %3716 = vmatpush1.msra.mxu0 %v3592
    %3717 = vmatprep.subr.mxu0 0.0
    %3718 = vmatpush2.msra.mxu0 0.0
    %3719 = vmatprep.subr.mxu0 0.0
    %3720 = vmatpush2.msra.mxu0 0.0
    %3721 = vmatprep.subr.mxu0 0.0
    %3722 = vmatpush2.msra.mxu0 0.0
    %3723 = vmatprep.subr.mxu0 0.0
    %3724 = vmatpush2.msra.mxu0 0.0
    %3725 = vmatprep.subr.mxu0 0.0
    %3726 = vmatpush2.msra.mxu0 0.0
    %3727 = vmatprep.subr.mxu0 0.0
    %3728 = vmatpush2.msra.mxu0 0.0
    %3729 = vmatprep.subr.mxu0 0.0
    %3730 = vmatpush2.msra.mxu0 0.0
    %3731 = vmatprep.subr.mxu0 0.0
    %3732 = vmatpush2.msra.mxu0 0.0
    %3733 = vmatprep.subr.mxu0 0.0
    %3734 = vmatpush2.msra.mxu0 0.0
    %3735 = vmatprep.subr.mxu0 0.0
    %3736 = vmatpush2.msra.mxu0 0.0
    %3737 = vmatprep.subr.mxu0 0.0
    %3738 = vmatpush2.msra.mxu0 0.0
    %3739 = vmatprep.subr.mxu0 0.0
    %3740 = vmatpush2.msra.mxu0 0.0
    %3741 = vmatprep.subr.mxu0 0.0
    %3742 = vmatpush2.msra.mxu0 0.0
    %3743 = vmatprep.subr.mxu0 0.0
    %3744 = vmatpush2.msra.mxu0 0.0
    %3745 = vmatprep.subr.mxu0 0.0
    %3746 = vmatpush2.msra.mxu0 0.0
    %3747 = vmatprep.subr.mxu0 0.0
    %3748 = vmatpush2.msra.mxu0 0.0
    %3749 = vmatprep.mubr.f32.mxu0 0.0
    %3750 = vmatmul.mubr.f32.gmra.mxu0 %v3683
    %v3751 = vpop.f32.mrf.mxu0
    %v3752 = vadd.f32 1e-09, %v3751
    %v3753 = vpop.f32.mrf.mxu0
    %3754 = vdwg.mxu0
    %v3755 = vrcp.pop %v3752
    %v3756 = vmul.f32 %v3681, %v3755
    %v3757 = vld [vmem:[#allocation19] sm:$0xff]
    %v3758 = vld [vmem:[#allocation19 + $0x8] sm:$0xff]
    %3760 = vrot.lane.b32.xlu0 %v3559, 123
    %v3761 = vpop.permute.xlu0 %3760
    %v3762 = vsel %vm2012, %v3761, 0
    %3764 = vmatprep.subr.mxu0 0.0
    %3765 = vmatpush1.msra.mxu0 0.0
    %3766 = vmatprep.subr.mxu0 0.0
    %3767 = vmatpush1.msra.mxu0 0.0
    %3768 = vmatprep.subr.mxu0 0.0
    %3769 = vmatpush1.msra.mxu0 0.0
    %3770 = vmatprep.subr.mxu0 0.0
    %3771 = vmatpush1.msra.mxu0 0.0
    %3772 = vmatprep.subr.mxu0 0.0
    %3773 = vmatpush1.msra.mxu0 0.0
    %3774 = vmatprep.subr.mxu0 0.0
    %3775 = vmatpush1.msra.mxu0 0.0
    %3776 = vmatprep.subr.mxu0 0.0
    %3777 = vmatpush1.msra.mxu0 0.0
    %3778 = vmatprep.subr.mxu0 0.0
    %3779 = vmatpush1.msra.mxu0 0.0
    %3780 = vmatprep.subr.mxu0 0.0
    %3781 = vmatpush1.msra.mxu0 0.0
    %3782 = vmatprep.subr.mxu0 0.0
    %3783 = vmatpush1.msra.mxu0 0.0
    %3784 = vmatprep.subr.mxu0 0.0
    %3785 = vmatpush1.msra.mxu0 0.0
    %3786 = vmatprep.subr.mxu0 0.0
    %3787 = vmatpush1.msra.mxu0 0.0
    %3788 = vmatprep.subr.mxu0 0.0
    %3789 = vmatpush1.msra.mxu0 0.0
    %3790 = vmatprep.subr.mxu0 0.0
    %3791 = vmatpush1.msra.mxu0 0.0
    %3792 = vmatprep.subr.mxu0 0.0
    %3793 = vmatpush1.msra.mxu0 %v3758
    %3794 = vmatprep.subr.mxu0 0.0
    %3795 = vmatpush1.msra.mxu0 %v3757
    %3796 = vmatprep.subr.mxu0 0.0
    %3797 = vmatpush2.msra.mxu0 0.0
    %3798 = vmatprep.subr.mxu0 0.0
    %3799 = vmatpush2.msra.mxu0 0.0
    %3800 = vmatprep.subr.mxu0 0.0
    %3801 = vmatpush2.msra.mxu0 0.0
    %3802 = vmatprep.subr.mxu0 0.0
    %3803 = vmatpush2.msra.mxu0 0.0
    %3804 = vmatprep.subr.mxu0 0.0
    %3805 = vmatpush2.msra.mxu0 0.0
    %3806 = vmatprep.subr.mxu0 0.0
    %3807 = vmatpush2.msra.mxu0 0.0
    %3808 = vmatprep.subr.mxu0 0.0
    %3809 = vmatpush2.msra.mxu0 0.0
    %3810 = vmatprep.subr.mxu0 0.0
    %3811 = vmatpush2.msra.mxu0 0.0
    %3812 = vmatprep.subr.mxu0 0.0
    %3813 = vmatpush2.msra.mxu0 0.0
    %3814 = vmatprep.subr.mxu0 0.0
    %3815 = vmatpush2.msra.mxu0 0.0
    %3816 = vmatprep.subr.mxu0 0.0
    %3817 = vmatpush2.msra.mxu0 0.0
    %3818 = vmatprep.subr.mxu0 0.0
    %3819 = vmatpush2.msra.mxu0 0.0
    %3820 = vmatprep.subr.mxu0 0.0
    %3821 = vmatpush2.msra.mxu0 0.0
    %3822 = vmatprep.subr.mxu0 0.0
    %3823 = vmatpush2.msra.mxu0 0.0
    %3824 = vmatprep.subr.mxu0 0.0
    %3825 = vmatpush2.msra.mxu0 0.0
    %3826 = vmatprep.subr.mxu0 0.0
    %3827 = vmatpush2.msra.mxu0 0.0
    %3828 = vmatprep.mubr.f32.mxu0 0.0
    %3829 = vmatmul.mubr.f32.gmra.mxu0 %v3762
    %v3830 = vpop.f32.mrf.mxu0
    %v3831 = vadd.f32 0.0, %v3830
    %v3832 = vpop.f32.mrf.mxu0
    %3833 = vdwg.mxu0
    %3835 = vrot.lane.b32.xlu0 %v3756, 32
    %v3836 = vpop.permute.xlu0 %3835
    %3838 = vrot.lane.b32.xlu0 %v3756, 64
    %v3839 = vpop.permute.xlu0 %3838
    %3841 = vrot.lane.b32.xlu0 %v3756, 96
    %v3842 = vpop.permute.xlu0 %3841
    %v3844 = vsel %vm239, %v3756, %v3836
    %v3845 = vsel %vm603, %v3844, %v3839
    %v3846 = vsel %vm605, %v3845, %v3842
    %v3847 = vmul.f32 %v3831, %v3846
    %v3848 = vld [vmem:[%s20] sm:$0xff]
    %v3849 = vld [vmem:[%s20 + $0x8] sm:$0xff]
    %v3850 = vld [vmem:[%s20 + $0x10] sm:$0xff]
    %v3851 = vld [vmem:[%s20 + $0x18] sm:$0xff]
    %v3852 = vld [vmem:[%s20 + $0x20] sm:$0xff]
    %v3853 = vld [vmem:[%s20 + $0x28] sm:$0xff]
    %v3854 = vld [vmem:[%s20 + $0x30] sm:$0xff]
    %v3855 = vld [vmem:[%s20 + $0x38] sm:$0xff]
    %v3856 = vld [vmem:[%s20 + $0x40] sm:$0xff]
    %v3857 = vld [vmem:[%s20 + $0x48] sm:$0xff]
    %v3858 = vld [vmem:[%s20 + $0x50] sm:$0xff]
    %v3859 = vld [vmem:[%s20 + $0x58] sm:$0xff]
    %v3860 = vld [vmem:[%s20 + $0x60] sm:$0xff]
    %v3861 = vld [vmem:[%s20 + $0x68] sm:$0xff]
    %v3862 = vld [vmem:[%s20 + $0x70] sm:$0xff]
    %v3863 = vld [vmem:[%s20 + $0x78] sm:$0xff]
    %3864 = vmatprep.subr.mxu0 0.0
    %3865 = vmatpush1.msra.mxu0 %v3863
    %3866 = vmatprep.subr.mxu0 0.0
    %3867 = vmatpush1.msra.mxu0 %v3862
    %3868 = vmatprep.subr.mxu0 0.0
    %3869 = vmatpush1.msra.mxu0 %v3861
    %3870 = vmatprep.subr.mxu0 0.0
    %3871 = vmatpush1.msra.mxu0 %v3860
    %3872 = vmatprep.subr.mxu0 0.0
    %3873 = vmatpush1.msra.mxu0 %v3859
    %3874 = vmatprep.subr.mxu0 0.0
    %3875 = vmatpush1.msra.mxu0 %v3858
    %3876 = vmatprep.subr.mxu0 0.0
    %3877 = vmatpush1.msra.mxu0 %v3857
    %3878 = vmatprep.subr.mxu0 0.0
    %3879 = vmatpush1.msra.mxu0 %v3856
    %3880 = vmatprep.subr.mxu0 0.0
    %3881 = vmatpush1.msra.mxu0 %v3855
    %3882 = vmatprep.subr.mxu0 0.0
    %3883 = vmatpush1.msra.mxu0 %v3854
    %3884 = vmatprep.subr.mxu0 0.0
    %3885 = vmatpush1.msra.mxu0 %v3853
    %3886 = vmatprep.subr.mxu0 0.0
    %3887 = vmatpush1.msra.mxu0 %v3852
    %3888 = vmatprep.subr.mxu0 0.0
    %3889 = vmatpush1.msra.mxu0 %v3851
    %3890 = vmatprep.subr.mxu0 0.0
    %3891 = vmatpush1.msra.mxu0 %v3850
    %3892 = vmatprep.subr.mxu0 0.0
    %3893 = vmatpush1.msra.mxu0 %v3849
    %3894 = vmatprep.subr.mxu0 0.0
    %3895 = vmatpush1.msra.mxu0 %v3848
    %3896 = vmatprep.subr.mxu0 0.0
    %3897 = vmatpush2.msra.mxu0 0.0
    %3898 = vmatprep.subr.mxu0 0.0
    %3899 = vmatpush2.msra.mxu0 0.0
    %3900 = vmatprep.subr.mxu0 0.0
    %3901 = vmatpush2.msra.mxu0 0.0
    %3902 = vmatprep.subr.mxu0 0.0
    %3903 = vmatpush2.msra.mxu0 0.0
    %3904 = vmatprep.subr.mxu0 0.0
    %3905 = vmatpush2.msra.mxu0 0.0
    %3906 = vmatprep.subr.mxu0 0.0
    %3907 = vmatpush2.msra.mxu0 0.0
    %3908 = vmatprep.subr.mxu0 0.0
    %3909 = vmatpush2.msra.mxu0 0.0
    %3910 = vmatprep.subr.mxu0 0.0
    %3911 = vmatpush2.msra.mxu0 0.0
    %3912 = vmatprep.subr.mxu0 0.0
    %3913 = vmatpush2.msra.mxu0 0.0
    %3914 = vmatprep.subr.mxu0 0.0
    %3915 = vmatpush2.msra.mxu0 0.0
    %3916 = vmatprep.subr.mxu0 0.0
    %3917 = vmatpush2.msra.mxu0 0.0
    %3918 = vmatprep.subr.mxu0 0.0
    %3919 = vmatpush2.msra.mxu0 0.0
    %3920 = vmatprep.subr.mxu0 0.0
    %3921 = vmatpush2.msra.mxu0 0.0
    %3922 = vmatprep.subr.mxu0 0.0
    %3923 = vmatpush2.msra.mxu0 0.0
    %3924 = vmatprep.subr.mxu0 0.0
    %3925 = vmatpush2.msra.mxu0 0.0
    %3926 = vmatprep.subr.mxu0 0.0
    %3927 = vmatpush2.msra.mxu0 0.0
    %3928 = vmatprep.mubr.f32.mxu0 0.0
    %3929 = vmatmul.mubr.f32.gmra.mxu0 %v3847
    %v3930 = vpop.f32.mrf.mxu0
    %v3931 = vadd.f32 0.0, %v3930
    %v3932 = vpop.f32.mrf.mxu0
    %3933 = vdwg.mxu0
    %v3934 = vld [vmem:[%s21] sm:$0xff]
    %v3935 = vld [vmem:[%s21 + $0x8] sm:$0xff]
    %v3936 = vld [vmem:[%s21 + $0x10] sm:$0xff]
    %v3937 = vld [vmem:[%s21 + $0x18] sm:$0xff]
    %v3938 = vld [vmem:[%s21 + $0x20] sm:$0xff]
    %v3939 = vld [vmem:[%s21 + $0x28] sm:$0xff]
    %v3940 = vld [vmem:[%s21 + $0x30] sm:$0xff]
    %v3941 = vld [vmem:[%s21 + $0x38] sm:$0xff]
    %v3943 = vsel %vm239, %v3931, 0
    %3945 = vmatprep.subr.mxu0 0.0
    %3946 = vmatpush1.msra.mxu0 0.0
    %3947 = vmatprep.subr.mxu0 0.0
    %3948 = vmatpush1.msra.mxu0 0.0
    %3949 = vmatprep.subr.mxu0 0.0
    %3950 = vmatpush1.msra.mxu0 0.0
    %3951 = vmatprep.subr.mxu0 0.0
    %3952 = vmatpush1.msra.mxu0 0.0
    %3953 = vmatprep.subr.mxu0 0.0
    %3954 = vmatpush1.msra.mxu0 0.0
    %3955 = vmatprep.subr.mxu0 0.0
    %3956 = vmatpush1.msra.mxu0 0.0
    %3957 = vmatprep.subr.mxu0 0.0
    %3958 = vmatpush1.msra.mxu0 0.0
    %3959 = vmatprep.subr.mxu0 0.0
    %3960 = vmatpush1.msra.mxu0 0.0
    %3961 = vmatprep.subr.mxu0 0.0
    %3962 = vmatpush1.msra.mxu0 0.0
    %3963 = vmatprep.subr.mxu0 0.0
    %3964 = vmatpush1.msra.mxu0 0.0
    %3965 = vmatprep.subr.mxu0 0.0
    %3966 = vmatpush1.msra.mxu0 0.0
    %3967 = vmatprep.subr.mxu0 0.0
    %3968 = vmatpush1.msra.mxu0 0.0
    %3969 = vmatprep.subr.mxu0 %v3941
    %3970 = vmatpush1.msra.mxu0 %v3940
    %3971 = vmatprep.subr.mxu0 %v3939
    %3972 = vmatpush1.msra.mxu0 %v3938
    %3973 = vmatprep.subr.mxu0 %v3937
    %3974 = vmatpush1.msra.mxu0 %v3936
    %3975 = vmatprep.subr.mxu0 %v3935
    %3976 = vmatpush1.msra.mxu0 %v3934
    %3977 = vmatprep.subr.mxu0 0.0
    %3978 = vmatpush2.msra.mxu0 0.0
    %3979 = vmatprep.subr.mxu0 0.0
    %3980 = vmatpush2.msra.mxu0 0.0
    %3981 = vmatprep.subr.mxu0 0.0
    %3982 = vmatpush2.msra.mxu0 0.0
    %3983 = vmatprep.subr.mxu0 0.0
    %3984 = vmatpush2.msra.mxu0 0.0
    %3985 = vmatprep.subr.mxu0 0.0
    %3986 = vmatpush2.msra.mxu0 0.0
    %3987 = vmatprep.subr.mxu0 0.0
    %3988 = vmatpush2.msra.mxu0 0.0
    %3989 = vmatprep.subr.mxu0 0.0
    %3990 = vmatpush2.msra.mxu0 0.0
    %3991 = vmatprep.subr.mxu0 0.0
    %3992 = vmatpush2.msra.mxu0 0.0
    %3993 = vmatprep.subr.mxu0 0.0
    %3994 = vmatpush2.msra.mxu0 0.0
    %3995 = vmatprep.subr.mxu0 0.0
    %3996 = vmatpush2.msra.mxu0 0.0
    %3997 = vmatprep.subr.mxu0 0.0
    %3998 = vmatpush2.msra.mxu0 0.0
    %3999 = vmatprep.subr.mxu0 0.0
    %4000 = vmatpush2.msra.mxu0 0.0
    %4001 = vmatprep.subr.mxu0 0.0
    %4002 = vmatpush2.msra.mxu0 0.0
    %4003 = vmatprep.subr.mxu0 0.0
    %4004 = vmatpush2.msra.mxu0 0.0
    %4005 = vmatprep.subr.mxu0 0.0
    %4006 = vmatpush2.msra.mxu0 0.0
    %4007 = vmatprep.subr.mxu0 0.0
    %4008 = vmatpush2.msra.mxu0 0.0
    %4009 = vmatprep.mubr.f32.mxu0 0.0
    %4010 = vmatmul.mubr.f32.gmra.mxu0 %v3943
    %v4011 = vpop.f32.mrf.mxu0
    %v4012 = vadd.f32 0.0, %v4011
    %v4013 = vpop.f32.mrf.mxu0
    %v4014 = vadd.f32 0.0, %v4013
    %4015 = vdwg.mxu0
    %v4016 = vld [vmem:[%s16] sm:$0xff]
    %v4017 = vld [vmem:[%s16 + $0x8] sm:$0xff]
    %v4018 = vld [vmem:[%s16 + $0x10] sm:$0xff]
    %v4019 = vld [vmem:[%s16 + $0x18] sm:$0xff]
    %v4020 = vld [vmem:[%s16 + $0x20] sm:$0xff]
    %v4021 = vld [vmem:[%s16 + $0x28] sm:$0xff]
    %v4022 = vld [vmem:[%s16 + $0x30] sm:$0xff]
    %v4023 = vld [vmem:[%s16 + $0x38] sm:$0xff]
    %v4025 = vsel %vm239, %v3670, 0
    %4027 = vmatprep.subr.mxu0 0.0
    %4028 = vmatpush1.msra.mxu0 0.0
    %4029 = vmatprep.subr.mxu0 0.0
    %4030 = vmatpush1.msra.mxu0 0.0
    %4031 = vmatprep.subr.mxu0 0.0
    %4032 = vmatpush1.msra.mxu0 0.0
    %4033 = vmatprep.subr.mxu0 0.0
    %4034 = vmatpush1.msra.mxu0 0.0
    %4035 = vmatprep.subr.mxu0 0.0
    %4036 = vmatpush1.msra.mxu0 0.0
    %4037 = vmatprep.subr.mxu0 0.0
    %4038 = vmatpush1.msra.mxu0 0.0
    %4039 = vmatprep.subr.mxu0 0.0
    %4040 = vmatpush1.msra.mxu0 0.0
    %4041 = vmatprep.subr.mxu0 0.0
    %4042 = vmatpush1.msra.mxu0 0.0
    %4043 = vmatprep.subr.mxu0 0.0
    %4044 = vmatpush1.msra.mxu0 0.0
    %4045 = vmatprep.subr.mxu0 0.0
    %4046 = vmatpush1.msra.mxu0 0.0
    %4047 = vmatprep.subr.mxu0 0.0
    %4048 = vmatpush1.msra.mxu0 0.0
    %4049 = vmatprep.subr.mxu0 0.0
    %4050 = vmatpush1.msra.mxu0 0.0
    %4051 = vmatprep.subr.mxu0 %v4023
    %4052 = vmatpush1.msra.mxu0 %v4022
    %4053 = vmatprep.subr.mxu0 %v4021
    %4054 = vmatpush1.msra.mxu0 %v4020
    %4055 = vmatprep.subr.mxu0 %v4019
    %4056 = vmatpush1.msra.mxu0 %v4018
    %4057 = vmatprep.subr.mxu0 %v4017
    %4058 = vmatpush1.msra.mxu0 %v4016
    %4059 = vmatprep.subr.mxu0 0.0
    %4060 = vmatpush2.msra.mxu0 0.0
    %4061 = vmatprep.subr.mxu0 0.0
    %4062 = vmatpush2.msra.mxu0 0.0
    %4063 = vmatprep.subr.mxu0 0.0
    %4064 = vmatpush2.msra.mxu0 0.0
    %4065 = vmatprep.subr.mxu0 0.0
    %4066 = vmatpush2.msra.mxu0 0.0
    %4067 = vmatprep.subr.mxu0 0.0
    %4068 = vmatpush2.msra.mxu0 0.0
    %4069 = vmatprep.subr.mxu0 0.0
    %4070 = vmatpush2.msra.mxu0 0.0
    %4071 = vmatprep.subr.mxu0 0.0
    %4072 = vmatpush2.msra.mxu0 0.0
    %4073 = vmatprep.subr.mxu0 0.0
    %4074 = vmatpush2.msra.mxu0 0.0
    %4075 = vmatprep.subr.mxu0 0.0
    %4076 = vmatpush2.msra.mxu0 0.0
    %4077 = vmatprep.subr.mxu0 0.0
    %4078 = vmatpush2.msra.mxu0 0.0
    %4079 = vmatprep.subr.mxu0 0.0
    %4080 = vmatpush2.msra.mxu0 0.0
    %4081 = vmatprep.subr.mxu0 0.0
    %4082 = vmatpush2.msra.mxu0 0.0
    %4083 = vmatprep.subr.mxu0 0.0
    %4084 = vmatpush2.msra.mxu0 0.0
    %4085 = vmatprep.subr.mxu0 0.0
    %4086 = vmatpush2.msra.mxu0 0.0
    %4087 = vmatprep.subr.mxu0 0.0
    %4088 = vmatpush2.msra.mxu0 0.0
    %4089 = vmatprep.subr.mxu0 0.0
    %4090 = vmatpush2.msra.mxu0 0.0
    %4091 = vmatprep.mubr.f32.mxu0 0.0
    %4092 = vmatmul.mubr.f32.gmra.mxu0 %v4025
    %v4093 = vpop.f32.mrf.mxu0
    %v4094 = vadd.f32 0.0, %v4093
    %v4095 = vpop.f32.mrf.mxu0
    %v4096 = vadd.f32 0.0, %v4095
    %4097 = vdwg.mxu0
    %v4098 = vmul.f32 %v4094, %v4012
    %v4099 = vmul.f32 %v4096, %v4014
    %4101 = vrot.lane.b32.xlu0 %v4098, 64
    %v4102 = vpop.permute.xlu0 %4101
    %v4104 = vadd.f32 %v4098, %v4102
    %v4105 = vadd.f32 %v4104, %v4099
    %4107 = vrot.lane.b32.xlu0 %v4099, 64
    %v4108 = vpop.permute.xlu0 %4107
    %v4110 = vadd.f32 %v4105, %v4108
    %4112 = vset.pattern.permute.xlu0 4
    %4113 = vperm.xlu0 %4112, %v3565
    %v4114 = vpop.permute.xlu0 %4113
    %v4116 = vrcp.pop %v4114
    %v4117 = vmul.f32 %v4110, %v4116
    %v4118 = vadd.f32 %v2369, %v4117
    %vm4119 = vcmask 519168
    %4120 = vst.msk [vmem:[%s25] sm:$0xf] %vm4119, %v4118
    // Predicated region
    $region134: #{draw_forward.1} parent=1 // pred_check
      _
    $region135: #{draw_forward.1} parent=1 // pred_check_branch
      %4122 = sbr.rel (0) target = $region137
    $region136: #{draw_forward.1} parent=1 // pred_region
      %s4124 = ssub.s32 32, 32
      %4125 = vsyncadd [#allocation4], %s4124
      %s4126 = sshll.u32 [#allocation20], 4
      %s4127 = int_to_ptr.vmem [resolvable:$true] %s4126
      %4132 = dma.vmem_to_hbm [thread:$0]  %s4127, 32, %s22, [#allocation4], 16, 16, 1
    $region137: #{draw_forward.1} parent=1 // pred_fallthru
      _
    // Predicated region
    $region138: #{draw_forward.1} parent=1 // pred_check
      _
    $region139: #{draw_forward.1} parent=1 // pred_check_branch
      %4134 = sbr.rel (0) target = $region141
    $region140: #{draw_forward.1} parent=1 // pred_region
      %s4136 = ssub.s32 128, 128
      %4137 = vsyncadd [#allocation22], %s4136
      %s4138 = sshll.u32 [#allocation21], 4
      %s4139 = int_to_ptr.vmem [resolvable:$true] %s4138
      %4144 = dma.vmem_to_hbm [thread:$0]  %s4139, 128, %s23, [#allocation22], 64, 64, 4
    $region141: #{draw_forward.1} parent=1 // pred_fallthru
      _
    // Predicated region
    $region142: #{draw_forward.1} parent=1 // pred_check
      _
    $region143: #{draw_forward.1} parent=1 // pred_check_branch
      %4146 = sbr.rel (0) target = $region145
    $region144: #{draw_forward.1} parent=1 // pred_region
      %s4148 = ssub.s32 128, 128
      %4149 = vsyncadd [#allocation22], %s4148
      %s4150 = sshll.u32 [#allocation23], 4
      %s4151 = int_to_ptr.vmem [resolvable:$true] %s4150
      %4156 = dma.vmem_to_hbm [thread:$0]  %s4151, 128, %s24, [#allocation22], 64, 64, 4
    $region145: #{draw_forward.1} parent=1 // pred_fallthru
      _
    // Predicated region
    $region146: #{draw_forward.1} parent=1 // pred_check
      _
    $region147: #{draw_forward.1} parent=1 // pred_check_branch
      %4158 = sbr.rel (0) target = $region149
    $region148: #{draw_forward.1} parent=1 // pred_region
      _
    $region149: #{draw_forward.1} parent=1 // pred_fallthru
      _
    // Predicated region
    $region150: #{draw_forward.1} parent=1 // pred_check
      _
    $region151: #{draw_forward.1} parent=1 // pred_check_branch
      %4160 = sbr.rel (0) target = $region153
    $region152: #{draw_forward.1} parent=1 // pred_region
      %4161 = dma.done [#allocation4], 32
    $region153: #{draw_forward.1} parent=1 // pred_fallthru
      _
    // Predicated region
    $region154: #{draw_forward.1} parent=1 // pred_check
      _
    $region155: #{draw_forward.1} parent=1 // pred_check_branch
      %4163 = sbr.rel (0) target = $region157
    $region156: #{draw_forward.1} parent=1 // pred_region
      %4164 = dma.done [#allocation22], 128
    $region157: #{draw_forward.1} parent=1 // pred_fallthru
      _
    // Predicated region
    $region158: #{draw_forward.1} parent=1 // pred_check
      _
    $region159: #{draw_forward.1} parent=1 // pred_check_branch
      %4166 = sbr.rel (0) target = $region161
    $region160: #{draw_forward.1} parent=1 // pred_region
      %4167 = dma.done [#allocation22], 128
    $region161: #{draw_forward.1} parent=1 // pred_fallthru
      _
    // Predicated region
    $region162: #{draw_forward.1} parent=1 // pred_check
      _
    $region163: #{draw_forward.1} parent=1 // pred_check_branch
      %4169 = sbr.rel (0) target = $region165
    $region164: #{draw_forward.1} parent=1 // pred_region
      _
    $region165: #{draw_forward.1} parent=1 // pred_fallthru
      _
    %4170 = vsyncpa [#allocation3], 1
    %4171 = vsyncpa [#allocation6], 1
    %4172 = vsyncpa [#allocation9], 1
    %4173 = vsyncpa [#allocation12], 1
    %4174 = vsyncpa [#allocation15], 1
    %4175 = vsyncpa [#allocation18], 1
    %4176 = vsyncpa [#allocation4], 1
    %4177 = vsyncpa [#allocation22], 1

</llo_original>
